<compile_context>
chip_gen: v5e
topology: v5e:2x2
jax: 0.10.0
libtpu: 0.0.40
codegen_flags: <defaults>
</compile_context>

<pallas_src>
import jax
import jax.numpy as jnp
from jax.experimental import pallas as pl
from jax.experimental.pallas import tpu as pltpu


def _make_kernel(bb, T, P, W):
    """Build the kernel with all (tiny) shape constants baked in."""

    def kernel(control_ref, prims_ref, out_ref):
        # control_ref : VMEM (bb, T, P*W) f32 — c_{b,t,p} replicated over its W-lane segment
        # prims_ref   : VMEM (W, P*W)     f32 — [identity | softmax(primitiveScores)] lane-packed
        # out_ref     : VMEM (bb, W, W)   f32 — per-batch action
        prims = prims_ref[...]  # (W, P*W): 4 dense vregs at W=32, P=4; loaded once

        def mix(b, t):
            # step_{b,t} = sum_p c_{b,t,p} * prim_p
            # one full-width FMA against the packed slab, then reduce the P
            # W-lane segments (XLU rolls when P is a power of two).
            row = control_ref[b, t : t + 1, :]          # (1, P*W), sublane-broadcast below
            m = prims * row                              # (W, P*W)  VPU
            if P & (P - 1) == 0:                         # power-of-two P: log2(P) roll+adds
                seg = P * W
                while seg > W:
                    seg //= 2
                    m = m + pltpu.roll(m, shift=seg, axis=1)
                return m[:, :W]                          # (W, W)
            else:                                        # generic fallback: segment slices
                s = m[:, 0:W]
                for p in range(1, P):
                    s = s + m[:, p * W : (p + 1) * W]
                return s

        def mm(a, b):
            # tiny 32x32 matmuls; HIGHEST precision is free (kernel is not MXU-bound)
            return jnp.dot(a, b,
                           precision=jax.lax.Precision.HIGHEST,
                           preferred_element_type=jnp.float32)

        for b in range(bb):  # static unroll: independent chains interleave on the MXU
            if T == 1:
                out_ref[b] = mix(b, 0)
                continue
            # Fuse mixing with tree level 1: never keep all T step matrices live.
            prods = []
            for k in range(T // 2):
                s0 = mix(b, 2 * k)
                s1 = mix(b, 2 * k + 1)
                prods.append(mm(s0, s1))
            if T % 2 == 1:                   # odd leftover keeps its (rightmost) position
                prods.append(mix(b, T - 1))
            # Pairwise tree over the remaining ordered partial products (associative,
            # order preserved -> same product as the PyTorch left fold).
            while len(prods) > 1:
                nxt = []
                for i in range(0, len(prods) - 1, 2):
                    nxt.append(mm(prods[i], prods[i + 1]))
                if len(prods) % 2 == 1:
                    nxt.append(prods[-1])
                prods = nxt
            out_ref[b] = prods[0]

    return kernel


def execution_unit_forward(control, primitive_scores):
    """control: (B, T, P) f32; primitive_scores: (P-1, W, W) f32 -> (B, W, W) f32."""
    B, T, P = control.shape
    n_prim_m1, W, W2 = primitive_scores.shape
    assert W == W2 and n_prim_m1 == P - 1
    assert T >= 1

    # get_primitives(): dropout(p=0.0) is a no-op; softmax over last axis; prepend identity.
    # Depends only on the parameters -> hoisted out of the kernel.
    prims = jnp.concatenate(
        [
            jnp.eye(W, dtype=jnp.float32)[None],
            jax.nn.softmax(primitive_scores.astype(jnp.float32), axis=-1),
        ],
        axis=0,
    )  # (P, W, W)

    # Lane-pack primitives: prims_packed[:, p*W:(p+1)*W] == prims[p]  -> (W, P*W) = (32, 128)
    prims_packed = jnp.transpose(prims, (1, 0, 2)).reshape(W, P * W)

    # Lane-replicated control table: control_lanes[b, t, p*W + j] == control[b, t, p]
    control_lanes = jnp.repeat(
        control.reshape(B * T, P).astype(jnp.float32), W, axis=1
    ).reshape(B, T, P * W)

    # Batch blocking: single grid step for small B (full collapse), parallel grid axis
    # (megacore / v7x 2-TC sharding) once B grows.
    bb = max(d for d in (1, 2, 3, 4) if d <= B and B % d == 0)
    grid = (B // bb,)

    return pl.pallas_call(
        _make_kernel(bb, T, P, W),
        out_shape=jax.ShapeDtypeStruct((B, W, W), jnp.float32),
        grid=grid,
        in_specs=[
            pl.BlockSpec((bb, T, P * W), lambda i: (i, 0, 0)),  # control (lane-replicated)
            pl.BlockSpec((W, P * W), lambda i: (0, 0)),         # packed primitives
        ],
        out_specs=pl.BlockSpec((bb, W, W), lambda i: (i, 0, 0)),
        compiler_params=pltpu.CompilerParams(dimension_semantics=("parallel",)),
    )(control_lanes, prims_packed)


if __name__ == "__main__":
    # Small shapes implied by the module: input_width=32, n_primitives=4,
    # batch=2, program_steps=8.
    B, T = 2, 8
    W, P = 32, 4

    key = jax.random.PRNGKey(0)
    k_scores, k_ctrl = jax.random.split(key)
    # Deterministic "parameter" init (stands in for torch.randn primitiveScores).
    primitive_scores = jax.random.normal(k_scores, (P - 1, W, W), dtype=jnp.float32)
    control = jax.random.normal(k_ctrl, (B, T, P), dtype=jnp.float32)

    out = jax.jit(execution_unit_forward)(control, primitive_scores)
    out = jax.block_until_ready(out)

    # Pure-JAX reference (mirrors the PyTorch forward) for a sanity check.
    prims_ref = jnp.concatenate(
        [jnp.eye(W, dtype=jnp.float32)[None], jax.nn.softmax(primitive_scores, axis=2)],
        axis=0,
    )
    action = jnp.broadcast_to(jnp.eye(W, dtype=jnp.float32)[None], (B, W, W))
    for t in range(T):
        step = jnp.einsum(
            "bp,pij->bij", control[:, t], prims_ref, precision=jax.lax.Precision.HIGHEST
        )
        action = jnp.matmul(action, step, precision=jax.lax.Precision.HIGHEST)

    assert out.shape == (B, W, W) and out.dtype == jnp.float32
    rel_err = float(jnp.max(jnp.abs(out - action)) / (jnp.max(jnp.abs(action)) + 1e-6))
    assert rel_err < 1e-4, f"mismatch vs reference: rel_err={rel_err}"
    print("KERNEL_OK")
</pallas_src>

<mosaic_0001>
module attributes {stable_mosaic.version = 11 : i64} {
  func.func @kernel(%arg0: i32, %arg1: memref<2x8x128xf32, #tpu.memory_space<vmem>>, %arg2: memref<32x128xf32, #tpu.memory_space<vmem>>, %arg3: memref<2x32x32xf32, #tpu.memory_space<vmem>>) attributes {dimension_semantics = [#tpu.dimension_semantics<parallel>], iteration_bounds = array<i64: 1>, scalar_prefetch = 0 : i64, scratch_operands = 0 : i64, tpu.core_type = #tpu.core_type<tc>, window_params = [{transform_indices = @transform_0, window_bounds = array<i64: 2, 8, 128>}, {pipeline_mode = #tpu.pipeline_mode<synchronous>, transform_indices = @transform_1, window_bounds = array<i64: 32, 128>}, {transform_indices = @transform_2, window_bounds = array<i64: 2, 32, 32>}]} {
    %c0 = arith.constant 0 : index
    %c0_0 = arith.constant 0 : index
    %0 = vector.load %arg2[%c0, %c0_0] : memref<32x128xf32, #tpu.memory_space<vmem>>, vector<32x128xf32>
    %c0_1 = arith.constant 0 : index
    %c0_2 = arith.constant 0 : index
    %c0_3 = arith.constant 0 : index
    %1 = vector.load %arg1[%c0_1, %c0_2, %c0_3] : memref<2x8x128xf32, #tpu.memory_space<vmem>>, vector<1x1x128xf32>
    %2 = vector.shape_cast %1 : vector<1x1x128xf32> to vector<1x128xf32>
    %3 = vector.broadcast %2 : vector<1x128xf32> to vector<32x128xf32>
    %4 = arith.mulf %0, %3 : vector<32x128xf32>
    %c64_i32 = arith.constant 64 : i32
    %5 = tpu.dynamic_rotate %4 by %c64_i32 dim 1 : vector<32x128xf32>, i32 -> vector<32x128xf32>
    %6 = arith.addf %4, %5 : vector<32x128xf32>
    %c32_i32 = arith.constant 32 : i32
    %7 = tpu.dynamic_rotate %6 by %c32_i32 dim 1 : vector<32x128xf32>, i32 -> vector<32x128xf32>
    %8 = arith.addf %6, %7 : vector<32x128xf32>
    %9 = vector.extract_strided_slice %8 {offsets = [0, 0], sizes = [32, 32], strides = [1, 1]} : vector<32x128xf32> to vector<32x32xf32>
    %c0_4 = arith.constant 0 : index
    %c1 = arith.constant 1 : index
    %c0_5 = arith.constant 0 : index
    %10 = vector.load %arg1[%c0_4, %c1, %c0_5] : memref<2x8x128xf32, #tpu.memory_space<vmem>>, vector<1x1x128xf32>
    %11 = vector.shape_cast %10 : vector<1x1x128xf32> to vector<1x128xf32>
    %12 = vector.broadcast %11 : vector<1x128xf32> to vector<32x128xf32>
    %13 = arith.mulf %0, %12 : vector<32x128xf32>
    %c64_i32_6 = arith.constant 64 : i32
    %14 = tpu.dynamic_rotate %13 by %c64_i32_6 dim 1 : vector<32x128xf32>, i32 -> vector<32x128xf32>
    %15 = arith.addf %13, %14 : vector<32x128xf32>
    %c32_i32_7 = arith.constant 32 : i32
    %16 = tpu.dynamic_rotate %15 by %c32_i32_7 dim 1 : vector<32x128xf32>, i32 -> vector<32x128xf32>
    %17 = arith.addf %15, %16 : vector<32x128xf32>
    %18 = vector.extract_strided_slice %17 {offsets = [0, 0], sizes = [32, 32], strides = [1, 1]} : vector<32x128xf32> to vector<32x32xf32>
    %cst = arith.constant dense<0.000000e+00> : vector<32x32xf32>
    %19 = tpu.matmul %9, %18, %cst {dimension_numbers = #tpu.dot_dimension_numbers<[1], [0], [0], [1], [0, 0, 1, 1], [], []>, precision = #tpu.contract_precision<fp32>} : vector<32x32xf32>, vector<32x32xf32>, vector<32x32xf32> -> vector<32x32xf32>
    %c0_8 = arith.constant 0 : index
    %c2 = arith.constant 2 : index
    %c0_9 = arith.constant 0 : index
    %20 = vector.load %arg1[%c0_8, %c2, %c0_9] : memref<2x8x128xf32, #tpu.memory_space<vmem>>, vector<1x1x128xf32>
    %21 = vector.shape_cast %20 : vector<1x1x128xf32> to vector<1x128xf32>
    %22 = vector.broadcast %21 : vector<1x128xf32> to vector<32x128xf32>
    %23 = arith.mulf %0, %22 : vector<32x128xf32>
    %c64_i32_10 = arith.constant 64 : i32
    %24 = tpu.dynamic_rotate %23 by %c64_i32_10 dim 1 : vector<32x128xf32>, i32 -> vector<32x128xf32>
    %25 = arith.addf %23, %24 : vector<32x128xf32>
    %c32_i32_11 = arith.constant 32 : i32
    %26 = tpu.dynamic_rotate %25 by %c32_i32_11 dim 1 : vector<32x128xf32>, i32 -> vector<32x128xf32>
    %27 = arith.addf %25, %26 : vector<32x128xf32>
    %28 = vector.extract_strided_slice %27 {offsets = [0, 0], sizes = [32, 32], strides = [1, 1]} : vector<32x128xf32> to vector<32x32xf32>
    %c0_12 = arith.constant 0 : index
    %c3 = arith.constant 3 : index
    %c0_13 = arith.constant 0 : index
    %29 = vector.load %arg1[%c0_12, %c3, %c0_13] : memref<2x8x128xf32, #tpu.memory_space<vmem>>, vector<1x1x128xf32>
    %30 = vector.shape_cast %29 : vector<1x1x128xf32> to vector<1x128xf32>
    %31 = vector.broadcast %30 : vector<1x128xf32> to vector<32x128xf32>
    %32 = arith.mulf %0, %31 : vector<32x128xf32>
    %c64_i32_14 = arith.constant 64 : i32
    %33 = tpu.dynamic_rotate %32 by %c64_i32_14 dim 1 : vector<32x128xf32>, i32 -> vector<32x128xf32>
    %34 = arith.addf %32, %33 : vector<32x128xf32>
    %c32_i32_15 = arith.constant 32 : i32
    %35 = tpu.dynamic_rotate %34 by %c32_i32_15 dim 1 : vector<32x128xf32>, i32 -> vector<32x128xf32>
    %36 = arith.addf %34, %35 : vector<32x128xf32>
    %37 = vector.extract_strided_slice %36 {offsets = [0, 0], sizes = [32, 32], strides = [1, 1]} : vector<32x128xf32> to vector<32x32xf32>
    %cst_16 = arith.constant dense<0.000000e+00> : vector<32x32xf32>
    %38 = tpu.matmul %28, %37, %cst_16 {dimension_numbers = #tpu.dot_dimension_numbers<[1], [0], [0], [1], [0, 0, 1, 1], [], []>, precision = #tpu.contract_precision<fp32>} : vector<32x32xf32>, vector<32x32xf32>, vector<32x32xf32> -> vector<32x32xf32>
    %c0_17 = arith.constant 0 : index
    %c4 = arith.constant 4 : index
    %c0_18 = arith.constant 0 : index
    %39 = vector.load %arg1[%c0_17, %c4, %c0_18] : memref<2x8x128xf32, #tpu.memory_space<vmem>>, vector<1x1x128xf32>
    %40 = vector.shape_cast %39 : vector<1x1x128xf32> to vector<1x128xf32>
    %41 = vector.broadcast %40 : vector<1x128xf32> to vector<32x128xf32>
    %42 = arith.mulf %0, %41 : vector<32x128xf32>
    %c64_i32_19 = arith.constant 64 : i32
    %43 = tpu.dynamic_rotate %42 by %c64_i32_19 dim 1 : vector<32x128xf32>, i32 -> vector<32x128xf32>
    %44 = arith.addf %42, %43 : vector<32x128xf32>
    %c32_i32_20 = arith.constant 32 : i32
    %45 = tpu.dynamic_rotate %44 by %c32_i32_20 dim 1 : vector<32x128xf32>, i32 -> vector<32x128xf32>
    %46 = arith.addf %44, %45 : vector<32x128xf32>
    %47 = vector.extract_strided_slice %46 {offsets = [0, 0], sizes = [32, 32], strides = [1, 1]} : vector<32x128xf32> to vector<32x32xf32>
    %c0_21 = arith.constant 0 : index
    %c5 = arith.constant 5 : index
    %c0_22 = arith.constant 0 : index
    %48 = vector.load %arg1[%c0_21, %c5, %c0_22] : memref<2x8x128xf32, #tpu.memory_space<vmem>>, vector<1x1x128xf32>
    %49 = vector.shape_cast %48 : vector<1x1x128xf32> to vector<1x128xf32>
    %50 = vector.broadcast %49 : vector<1x128xf32> to vector<32x128xf32>
    %51 = arith.mulf %0, %50 : vector<32x128xf32>
    %c64_i32_23 = arith.constant 64 : i32
    %52 = tpu.dynamic_rotate %51 by %c64_i32_23 dim 1 : vector<32x128xf32>, i32 -> vector<32x128xf32>
    %53 = arith.addf %51, %52 : vector<32x128xf32>
    %c32_i32_24 = arith.constant 32 : i32
    %54 = tpu.dynamic_rotate %53 by %c32_i32_24 dim 1 : vector<32x128xf32>, i32 -> vector<32x128xf32>
    %55 = arith.addf %53, %54 : vector<32x128xf32>
    %56 = vector.extract_strided_slice %55 {offsets = [0, 0], sizes = [32, 32], strides = [1, 1]} : vector<32x128xf32> to vector<32x32xf32>
    %cst_25 = arith.constant dense<0.000000e+00> : vector<32x32xf32>
    %57 = tpu.matmul %47, %56, %cst_25 {dimension_numbers = #tpu.dot_dimension_numbers<[1], [0], [0], [1], [0, 0, 1, 1], [], []>, precision = #tpu.contract_precision<fp32>} : vector<32x32xf32>, vector<32x32xf32>, vector<32x32xf32> -> vector<32x32xf32>
    %c0_26 = arith.constant 0 : index
    %c6 = arith.constant 6 : index
    %c0_27 = arith.constant 0 : index
    %58 = vector.load %arg1[%c0_26, %c6, %c0_27] : memref<2x8x128xf32, #tpu.memory_space<vmem>>, vector<1x1x128xf32>
    %59 = vector.shape_cast %58 : vector<1x1x128xf32> to vector<1x128xf32>
    %60 = vector.broadcast %59 : vector<1x128xf32> to vector<32x128xf32>
    %61 = arith.mulf %0, %60 : vector<32x128xf32>
    %c64_i32_28 = arith.constant 64 : i32
    %62 = tpu.dynamic_rotate %61 by %c64_i32_28 dim 1 : vector<32x128xf32>, i32 -> vector<32x128xf32>
    %63 = arith.addf %61, %62 : vector<32x128xf32>
    %c32_i32_29 = arith.constant 32 : i32
    %64 = tpu.dynamic_rotate %63 by %c32_i32_29 dim 1 : vector<32x128xf32>, i32 -> vector<32x128xf32>
    %65 = arith.addf %63, %64 : vector<32x128xf32>
    %66 = vector.extract_strided_slice %65 {offsets = [0, 0], sizes = [32, 32], strides = [1, 1]} : vector<32x128xf32> to vector<32x32xf32>
    %c0_30 = arith.constant 0 : index
    %c7 = arith.constant 7 : index
    %c0_31 = arith.constant 0 : index
    %67 = vector.load %arg1[%c0_30, %c7, %c0_31] : memref<2x8x128xf32, #tpu.memory_space<vmem>>, vector<1x1x128xf32>
    %68 = vector.shape_cast %67 : vector<1x1x128xf32> to vector<1x128xf32>
    %69 = vector.broadcast %68 : vector<1x128xf32> to vector<32x128xf32>
    %70 = arith.mulf %0, %69 : vector<32x128xf32>
    %c64_i32_32 = arith.constant 64 : i32
    %71 = tpu.dynamic_rotate %70 by %c64_i32_32 dim 1 : vector<32x128xf32>, i32 -> vector<32x128xf32>
    %72 = arith.addf %70, %71 : vector<32x128xf32>
    %c32_i32_33 = arith.constant 32 : i32
    %73 = tpu.dynamic_rotate %72 by %c32_i32_33 dim 1 : vector<32x128xf32>, i32 -> vector<32x128xf32>
    %74 = arith.addf %72, %73 : vector<32x128xf32>
    %75 = vector.extract_strided_slice %74 {offsets = [0, 0], sizes = [32, 32], strides = [1, 1]} : vector<32x128xf32> to vector<32x32xf32>
    %cst_34 = arith.constant dense<0.000000e+00> : vector<32x32xf32>
    %76 = tpu.matmul %66, %75, %cst_34 {dimension_numbers = #tpu.dot_dimension_numbers<[1], [0], [0], [1], [0, 0, 1, 1], [], []>, precision = #tpu.contract_precision<fp32>} : vector<32x32xf32>, vector<32x32xf32>, vector<32x32xf32> -> vector<32x32xf32>
    %cst_35 = arith.constant dense<0.000000e+00> : vector<32x32xf32>
    %77 = tpu.matmul %19, %38, %cst_35 {dimension_numbers = #tpu.dot_dimension_numbers<[1], [0], [0], [1], [0, 0, 1, 1], [], []>, precision = #tpu.contract_precision<fp32>} : vector<32x32xf32>, vector<32x32xf32>, vector<32x32xf32> -> vector<32x32xf32>
    %cst_36 = arith.constant dense<0.000000e+00> : vector<32x32xf32>
    %78 = tpu.matmul %57, %76, %cst_36 {dimension_numbers = #tpu.dot_dimension_numbers<[1], [0], [0], [1], [0, 0, 1, 1], [], []>, precision = #tpu.contract_precision<fp32>} : vector<32x32xf32>, vector<32x32xf32>, vector<32x32xf32> -> vector<32x32xf32>
    %cst_37 = arith.constant dense<0.000000e+00> : vector<32x32xf32>
    %79 = tpu.matmul %77, %78, %cst_37 {dimension_numbers = #tpu.dot_dimension_numbers<[1], [0], [0], [1], [0, 0, 1, 1], [], []>, precision = #tpu.contract_precision<fp32>} : vector<32x32xf32>, vector<32x32xf32>, vector<32x32xf32> -> vector<32x32xf32>
    %c0_38 = arith.constant 0 : index
    %c0_39 = arith.constant 0 : index
    %c0_40 = arith.constant 0 : index
    %80 = vector.load %arg3[%c0_38, %c0_39, %c0_40] : memref<2x32x32xf32, #tpu.memory_space<vmem>>, vector<1x32x32xf32>
    %81 = vector.shape_cast %80 : vector<1x32x32xf32> to vector<32x32xf32>
    %82 = vector.shape_cast %79 : vector<32x32xf32> to vector<1x32x32xf32>
    tpu.vector_store %arg3[%c0_38, %c0_39, %c0_40], %82 {strides = array<i32>} : memref<2x32x32xf32, #tpu.memory_space<vmem>>, vector<1x32x32xf32>,
    %c1_41 = arith.constant 1 : index
    %c0_42 = arith.constant 0 : index
    %c0_43 = arith.constant 0 : index
    %83 = vector.load %arg1[%c1_41, %c0_42, %c0_43] : memref<2x8x128xf32, #tpu.memory_space<vmem>>, vector<1x1x128xf32>
    %84 = vector.shape_cast %83 : vector<1x1x128xf32> to vector<1x128xf32>
    %85 = vector.broadcast %84 : vector<1x128xf32> to vector<32x128xf32>
    %86 = arith.mulf %0, %85 : vector<32x128xf32>
    %c64_i32_44 = arith.constant 64 : i32
    %87 = tpu.dynamic_rotate %86 by %c64_i32_44 dim 1 : vector<32x128xf32>, i32 -> vector<32x128xf32>
    %88 = arith.addf %86, %87 : vector<32x128xf32>
    %c32_i32_45 = arith.constant 32 : i32
    %89 = tpu.dynamic_rotate %88 by %c32_i32_45 dim 1 : vector<32x128xf32>, i32 -> vector<32x128xf32>
    %90 = arith.addf %88, %89 : vector<32x128xf32>
    %91 = vector.extract_strided_slice %90 {offsets = [0, 0], sizes = [32, 32], strides = [1, 1]} : vector<32x128xf32> to vector<32x32xf32>
    %c1_46 = arith.constant 1 : index
    %c1_47 = arith.constant 1 : index
    %c0_48 = arith.constant 0 : index
    %92 = vector.load %arg1[%c1_46, %c1_47, %c0_48] : memref<2x8x128xf32, #tpu.memory_space<vmem>>, vector<1x1x128xf32>
    %93 = vector.shape_cast %92 : vector<1x1x128xf32> to vector<1x128xf32>
    %94 = vector.broadcast %93 : vector<1x128xf32> to vector<32x128xf32>
    %95 = arith.mulf %0, %94 : vector<32x128xf32>
    %c64_i32_49 = arith.constant 64 : i32
    %96 = tpu.dynamic_rotate %95 by %c64_i32_49 dim 1 : vector<32x128xf32>, i32 -> vector<32x128xf32>
    %97 = arith.addf %95, %96 : vector<32x128xf32>
    %c32_i32_50 = arith.constant 32 : i32
    %98 = tpu.dynamic_rotate %97 by %c32_i32_50 dim 1 : vector<32x128xf32>, i32 -> vector<32x128xf32>
    %99 = arith.addf %97, %98 : vector<32x128xf32>
    %100 = vector.extract_strided_slice %99 {offsets = [0, 0], sizes = [32, 32], strides = [1, 1]} : vector<32x128xf32> to vector<32x32xf32>
    %cst_51 = arith.constant dense<0.000000e+00> : vector<32x32xf32>
    %101 = tpu.matmul %91, %100, %cst_51 {dimension_numbers = #tpu.dot_dimension_numbers<[1], [0], [0], [1], [0, 0, 1, 1], [], []>, precision = #tpu.contract_precision<fp32>} : vector<32x32xf32>, vector<32x32xf32>, vector<32x32xf32> -> vector<32x32xf32>
    %c1_52 = arith.constant 1 : index
    %c2_53 = arith.constant 2 : index
    %c0_54 = arith.constant 0 : index
    %102 = vector.load %arg1[%c1_52, %c2_53, %c0_54] : memref<2x8x128xf32, #tpu.memory_space<vmem>>, vector<1x1x128xf32>
    %103 = vector.shape_cast %102 : vector<1x1x128xf32> to vector<1x128xf32>
    %104 = vector.broadcast %103 : vector<1x128xf32> to vector<32x128xf32>
    %105 = arith.mulf %0, %104 : vector<32x128xf32>
    %c64_i32_55 = arith.constant 64 : i32
    %106 = tpu.dynamic_rotate %105 by %c64_i32_55 dim 1 : vector<32x128xf32>, i32 -> vector<32x128xf32>
    %107 = arith.addf %105, %106 : vector<32x128xf32>
    %c32_i32_56 = arith.constant 32 : i32
    %108 = tpu.dynamic_rotate %107 by %c32_i32_56 dim 1 : vector<32x128xf32>, i32 -> vector<32x128xf32>
    %109 = arith.addf %107, %108 : vector<32x128xf32>
    %110 = vector.extract_strided_slice %109 {offsets = [0, 0], sizes = [32, 32], strides = [1, 1]} : vector<32x128xf32> to vector<32x32xf32>
    %c1_57 = arith.constant 1 : index
    %c3_58 = arith.constant 3 : index
    %c0_59 = arith.constant 0 : index
    %111 = vector.load %arg1[%c1_57, %c3_58, %c0_59] : memref<2x8x128xf32, #tpu.memory_space<vmem>>, vector<1x1x128xf32>
    %112 = vector.shape_cast %111 : vector<1x1x128xf32> to vector<1x128xf32>
    %113 = vector.broadcast %112 : vector<1x128xf32> to vector<32x128xf32>
    %114 = arith.mulf %0, %113 : vector<32x128xf32>
    %c64_i32_60 = arith.constant 64 : i32
    %115 = tpu.dynamic_rotate %114 by %c64_i32_60 dim 1 : vector<32x128xf32>, i32 -> vector<32x128xf32>
    %116 = arith.addf %114, %115 : vector<32x128xf32>
    %c32_i32_61 = arith.constant 32 : i32
    %117 = tpu.dynamic_rotate %116 by %c32_i32_61 dim 1 : vector<32x128xf32>, i32 -> vector<32x128xf32>
    %118 = arith.addf %116, %117 : vector<32x128xf32>
    %119 = vector.extract_strided_slice %118 {offsets = [0, 0], sizes = [32, 32], strides = [1, 1]} : vector<32x128xf32> to vector<32x32xf32>
    %cst_62 = arith.constant dense<0.000000e+00> : vector<32x32xf32>
    %120 = tpu.matmul %110, %119, %cst_62 {dimension_numbers = #tpu.dot_dimension_numbers<[1], [0], [0], [1], [0, 0, 1, 1], [], []>, precision = #tpu.contract_precision<fp32>} : vector<32x32xf32>, vector<32x32xf32>, vector<32x32xf32> -> vector<32x32xf32>
    %c1_63 = arith.constant 1 : index
    %c4_64 = arith.constant 4 : index
    %c0_65 = arith.constant 0 : index
    %121 = vector.load %arg1[%c1_63, %c4_64, %c0_65] : memref<2x8x128xf32, #tpu.memory_space<vmem>>, vector<1x1x128xf32>
    %122 = vector.shape_cast %121 : vector<1x1x128xf32> to vector<1x128xf32>
    %123 = vector.broadcast %122 : vector<1x128xf32> to vector<32x128xf32>
    %124 = arith.mulf %0, %123 : vector<32x128xf32>
    %c64_i32_66 = arith.constant 64 : i32
    %125 = tpu.dynamic_rotate %124 by %c64_i32_66 dim 1 : vector<32x128xf32>, i32 -> vector<32x128xf32>
    %126 = arith.addf %124, %125 : vector<32x128xf32>
    %c32_i32_67 = arith.constant 32 : i32
    %127 = tpu.dynamic_rotate %126 by %c32_i32_67 dim 1 : vector<32x128xf32>, i32 -> vector<32x128xf32>
    %128 = arith.addf %126, %127 : vector<32x128xf32>
    %129 = vector.extract_strided_slice %128 {offsets = [0, 0], sizes = [32, 32], strides = [1, 1]} : vector<32x128xf32> to vector<32x32xf32>
    %c1_68 = arith.constant 1 : index
    %c5_69 = arith.constant 5 : index
    %c0_70 = arith.constant 0 : index
    %130 = vector.load %arg1[%c1_68, %c5_69, %c0_70] : memref<2x8x128xf32, #tpu.memory_space<vmem>>, vector<1x1x128xf32>
    %131 = vector.shape_cast %130 : vector<1x1x128xf32> to vector<1x128xf32>
    %132 = vector.broadcast %131 : vector<1x128xf32> to vector<32x128xf32>
    %133 = arith.mulf %0, %132 : vector<32x128xf32>
    %c64_i32_71 = arith.constant 64 : i32
    %134 = tpu.dynamic_rotate %133 by %c64_i32_71 dim 1 : vector<32x128xf32>, i32 -> vector<32x128xf32>
    %135 = arith.addf %133, %134 : vector<32x128xf32>
    %c32_i32_72 = arith.constant 32 : i32
    %136 = tpu.dynamic_rotate %135 by %c32_i32_72 dim 1 : vector<32x128xf32>, i32 -> vector<32x128xf32>
    %137 = arith.addf %135, %136 : vector<32x128xf32>
    %138 = vector.extract_strided_slice %137 {offsets = [0, 0], sizes = [32, 32], strides = [1, 1]} : vector<32x128xf32> to vector<32x32xf32>
    %cst_73 = arith.constant dense<0.000000e+00> : vector<32x32xf32>
    %139 = tpu.matmul %129, %138, %cst_73 {dimension_numbers = #tpu.dot_dimension_numbers<[1], [0], [0], [1], [0, 0, 1, 1], [], []>, precision = #tpu.contract_precision<fp32>} : vector<32x32xf32>, vector<32x32xf32>, vector<32x32xf32> -> vector<32x32xf32>
    %c1_74 = arith.constant 1 : index
    %c6_75 = arith.constant 6 : index
    %c0_76 = arith.constant 0 : index
    %140 = vector.load %arg1[%c1_74, %c6_75, %c0_76] : memref<2x8x128xf32, #tpu.memory_space<vmem>>, vector<1x1x128xf32>
    %141 = vector.shape_cast %140 : vector<1x1x128xf32> to vector<1x128xf32>
    %142 = vector.broadcast %141 : vector<1x128xf32> to vector<32x128xf32>
    %143 = arith.mulf %0, %142 : vector<32x128xf32>
    %c64_i32_77 = arith.constant 64 : i32
    %144 = tpu.dynamic_rotate %143 by %c64_i32_77 dim 1 : vector<32x128xf32>, i32 -> vector<32x128xf32>
    %145 = arith.addf %143, %144 : vector<32x128xf32>
    %c32_i32_78 = arith.constant 32 : i32
    %146 = tpu.dynamic_rotate %145 by %c32_i32_78 dim 1 : vector<32x128xf32>, i32 -> vector<32x128xf32>
    %147 = arith.addf %145, %146 : vector<32x128xf32>
    %148 = vector.extract_strided_slice %147 {offsets = [0, 0], sizes = [32, 32], strides = [1, 1]} : vector<32x128xf32> to vector<32x32xf32>
    %c1_79 = arith.constant 1 : index
    %c7_80 = arith.constant 7 : index
    %c0_81 = arith.constant 0 : index
    %149 = vector.load %arg1[%c1_79, %c7_80, %c0_81] : memref<2x8x128xf32, #tpu.memory_space<vmem>>, vector<1x1x128xf32>
    %150 = vector.shape_cast %149 : vector<1x1x128xf32> to vector<1x128xf32>
    %151 = vector.broadcast %150 : vector<1x128xf32> to vector<32x128xf32>
    %152 = arith.mulf %0, %151 : vector<32x128xf32>
    %c64_i32_82 = arith.constant 64 : i32
    %153 = tpu.dynamic_rotate %152 by %c64_i32_82 dim 1 : vector<32x128xf32>, i32 -> vector<32x128xf32>
    %154 = arith.addf %152, %153 : vector<32x128xf32>
    %c32_i32_83 = arith.constant 32 : i32
    %155 = tpu.dynamic_rotate %154 by %c32_i32_83 dim 1 : vector<32x128xf32>, i32 -> vector<32x128xf32>
    %156 = arith.addf %154, %155 : vector<32x128xf32>
    %157 = vector.extract_strided_slice %156 {offsets = [0, 0], sizes = [32, 32], strides = [1, 1]} : vector<32x128xf32> to vector<32x32xf32>
    %cst_84 = arith.constant dense<0.000000e+00> : vector<32x32xf32>
    %158 = tpu.matmul %148, %157, %cst_84 {dimension_numbers = #tpu.dot_dimension_numbers<[1], [0], [0], [1], [0, 0, 1, 1], [], []>, precision = #tpu.contract_precision<fp32>} : vector<32x32xf32>, vector<32x32xf32>, vector<32x32xf32> -> vector<32x32xf32>
    %cst_85 = arith.constant dense<0.000000e+00> : vector<32x32xf32>
    %159 = tpu.matmul %101, %120, %cst_85 {dimension_numbers = #tpu.dot_dimension_numbers<[1], [0], [0], [1], [0, 0, 1, 1], [], []>, precision = #tpu.contract_precision<fp32>} : vector<32x32xf32>, vector<32x32xf32>, vector<32x32xf32> -> vector<32x32xf32>
    %cst_86 = arith.constant dense<0.000000e+00> : vector<32x32xf32>
    %160 = tpu.matmul %139, %158, %cst_86 {dimension_numbers = #tpu.dot_dimension_numbers<[1], [0], [0], [1], [0, 0, 1, 1], [], []>, precision = #tpu.contract_precision<fp32>} : vector<32x32xf32>, vector<32x32xf32>, vector<32x32xf32> -> vector<32x32xf32>
    %cst_87 = arith.constant dense<0.000000e+00> : vector<32x32xf32>
    %161 = tpu.matmul %159, %160, %cst_87 {dimension_numbers = #tpu.dot_dimension_numbers<[1], [0], [0], [1], [0, 0, 1, 1], [], []>, precision = #tpu.contract_precision<fp32>} : vector<32x32xf32>, vector<32x32xf32>, vector<32x32xf32> -> vector<32x32xf32>
    %c1_88 = arith.constant 1 : index
    %c0_89 = arith.constant 0 : index
    %c0_90 = arith.constant 0 : index
    %162 = vector.load %arg3[%c1_88, %c0_89, %c0_90] : memref<2x32x32xf32, #tpu.memory_space<vmem>>, vector<1x32x32xf32>
    %163 = vector.shape_cast %162 : vector<1x32x32xf32> to vector<32x32xf32>
    %164 = vector.shape_cast %161 : vector<32x32xf32> to vector<1x32x32xf32>
    tpu.vector_store %arg3[%c1_88, %c0_89, %c0_90], %164 {strides = array<i32>} : memref<2x32x32xf32, #tpu.memory_space<vmem>>, vector<1x32x32xf32>,
    return
  }
  func.func @transform_0(%arg0: i32) -> (i32, i32, i32) {
    %c0_i32 = arith.constant 0 : i32
    %c0_i32_0 = arith.constant 0 : i32
    %c0_i32_1 = arith.constant 0 : i32
    return %arg0, %c0_i32, %c0_i32_0 : i32, i32, i32
  }
  func.func @transform_1(%arg0: i32) -> (i32, i32) {
    %c0_i32 = arith.constant 0 : i32
    %c0_i32_0 = arith.constant 0 : i32
    %c0_i32_1 = arith.constant 0 : i32
    return %c0_i32, %c0_i32_0 : i32, i32
  }
  func.func @transform_2(%arg0: i32) -> (i32, i32, i32) {
    %c0_i32 = arith.constant 0 : i32
    %c0_i32_0 = arith.constant 0 : i32
    %c0_i32_1 = arith.constant 0 : i32
    return %arg0, %c0_i32, %c0_i32_0 : i32, i32, i32
  }
}

</mosaic_0001>

<llo_original>
// kernel: execution_unit_forward.1
$region0: #{execution_unit_forward.1}
  #allocation0 [shape = 'u32[]', space=smem, size = 0x4, offset = 0x4, fixed_abs, tag = 'smem constant byte address 0x4 - core index']
  #allocation1 [shape = 'u32[72,128]{1,0:T(1,128)}', space=vmem, size = 0x9000, scoped, tag = 'internal scratch']
  %s0 = inlined_call_operand.vmem [shape: f32[2,8,128], index: 0, kind: input, shape index: {}]
  %s1 = inlined_call_operand.vmem [shape: f32[32,128], index: 1, kind: input, shape index: {}]
  %s2 = inlined_call_operand.hbm [shape: f32[2,32,32], index: 2, kind: output, shape index: {}]
  %s3 = sld [smem:[#allocation0]]
  $region18: #{execution_unit_forward.1} parent=0
    _
  %s5 = ssub.s32 1, %s3
  %s6 = scalar_select 0, %s5, %s3
  $region1: #{execution_unit_forward.1} parent=0
    #allocation2 [shape = 'u8[32768]{0}', space=vmem, size = 0x8000, scoped, tag = 'output window, operand 0, single buffered']
    #allocation3 [shape = 's32[1]{0}', space=sflag, size = 0x4, scoped, tag = 'scoped memory for execution_unit_forward.1']
    %7 = vsyncpa [#allocation3], 0
    // Predicated region
    $region2: #{execution_unit_forward.1} parent=1 // pred_check
      _
    $region3: #{execution_unit_forward.1} parent=1 // pred_check_branch
      %9 = sbr.rel (0) target = $region5
    $region4: #{execution_unit_forward.1} parent=1 // pred_region
      _
    $region5: #{execution_unit_forward.1} parent=1 // pred_fallthru
      _
    // Predicated region
    $region6: #{execution_unit_forward.1} parent=1 // pred_check
      _
    $region7: #{execution_unit_forward.1} parent=1 // pred_check_branch
      %11 = sbr.rel (0) target = $region9
    $region8: #{execution_unit_forward.1} parent=1 // pred_region
      _
    $region9: #{execution_unit_forward.1} parent=1 // pred_fallthru
      _
    %v12 = vld [vmem:[%s1] sm:$0xff]
    %v13 = vld [vmem:[%s1 + $0x8] sm:$0xff]
    %v14 = vld [vmem:[%s1 + $0x10] sm:$0xff]
    %v15 = vld [vmem:[%s1 + $0x18] sm:$0xff]
    %v16 = vld [vmem:[%s0] sm:$0x1]
    %v17 = vperm.slane %v16, 0
    %v18 = vmul.f32 %v12, %v17
    %v19 = vmul.f32 %v13, %v17
    %v20 = vmul.f32 %v14, %v17
    %v21 = vmul.f32 %v15, %v17
    %22 = vrot.lane.b32.xlu0 %v18, 64
    %v23 = vpop.permute.xlu0 %22
    %24 = vrot.lane.b32.xlu0 %v19, 64
    %v25 = vpop.permute.xlu0 %24
    %26 = vrot.lane.b32.xlu0 %v20, 64
    %v27 = vpop.permute.xlu0 %26
    %28 = vrot.lane.b32.xlu0 %v21, 64
    %v29 = vpop.permute.xlu0 %28
    %v30 = vadd.f32 %v18, %v23
    %v31 = vadd.f32 %v19, %v25
    %v32 = vadd.f32 %v20, %v27
    %v33 = vadd.f32 %v21, %v29
    %34 = vrot.lane.b32.xlu0 %v30, 32
    %v35 = vpop.permute.xlu0 %34
    %36 = vrot.lane.b32.xlu0 %v31, 32
    %v37 = vpop.permute.xlu0 %36
    %38 = vrot.lane.b32.xlu0 %v32, 32
    %v39 = vpop.permute.xlu0 %38
    %40 = vrot.lane.b32.xlu0 %v33, 32
    %v41 = vpop.permute.xlu0 %40
    %v42 = vadd.f32 %v30, %v35
    %v43 = vadd.f32 %v31, %v37
    %v44 = vadd.f32 %v32, %v39
    %v45 = vadd.f32 %v33, %v41
    %v46 = vld [vmem:[%s0 + $0x1] sm:$0x1]
    %v47 = vperm.slane %v46, 0
    %v48 = vmul.f32 %v12, %v47
    %v49 = vmul.f32 %v13, %v47
    %v50 = vmul.f32 %v14, %v47
    %v51 = vmul.f32 %v15, %v47
    %52 = vrot.lane.b32.xlu0 %v48, 64
    %v53 = vpop.permute.xlu0 %52
    %54 = vrot.lane.b32.xlu0 %v49, 64
    %v55 = vpop.permute.xlu0 %54
    %56 = vrot.lane.b32.xlu0 %v50, 64
    %v57 = vpop.permute.xlu0 %56
    %58 = vrot.lane.b32.xlu0 %v51, 64
    %v59 = vpop.permute.xlu0 %58
    %v60 = vadd.f32 %v48, %v53
    %v61 = vadd.f32 %v49, %v55
    %v62 = vadd.f32 %v50, %v57
    %v63 = vadd.f32 %v51, %v59
    %64 = vrot.lane.b32.xlu0 %v60, 32
    %v65 = vpop.permute.xlu0 %64
    %66 = vrot.lane.b32.xlu0 %v61, 32
    %v67 = vpop.permute.xlu0 %66
    %68 = vrot.lane.b32.xlu0 %v62, 32
    %v69 = vpop.permute.xlu0 %68
    %70 = vrot.lane.b32.xlu0 %v63, 32
    %v71 = vpop.permute.xlu0 %70
    %v72 = vadd.f32 %v60, %v65
    %v73 = vadd.f32 %v61, %v67
    %v74 = vadd.f32 %v62, %v69
    %v75 = vadd.f32 %v63, %v71
    %vm76 = vcmask 261120
    %v78 = vsel %vm76, %v42, 0
    %v81 = vsel %vm76, %v43, 0
    %v84 = vsel %vm76, %v44, 0
    %v87 = vsel %vm76, %v45, 0
    %89 = vmatpush.msra.mxu0 0.0
    %90 = vmatpush.msra.mxu0 0.0
    %91 = vmatpush.msra.mxu0 0.0
    %92 = vmatpush.msra.mxu0 0.0
    %93 = vmatpush.msra.mxu0 0.0
    %94 = vmatpush.msra.mxu0 0.0
    %95 = vmatpush.msra.mxu0 0.0
    %96 = vmatpush.msra.mxu0 0.0
    %97 = vmatpush.msra.mxu0 0.0
    %98 = vmatpush.msra.mxu0 0.0
    %99 = vmatpush.msra.mxu0 0.0
    %100 = vmatpush.msra.mxu0 0.0
    %v101 = vand.u32 %v75, 4294901760
    %102 = vmatpush.msra.mxu0 %v101
    %v103 = vand.u32 %v74, 4294901760
    %104 = vmatpush.msra.mxu0 %v103
    %v105 = vand.u32 %v73, 4294901760
    %106 = vmatpush.msra.mxu0 %v105
    %v107 = vand.u32 %v72, 4294901760
    %108 = vmatpush.msra.mxu0 %v107
    %v109 = vand.u32 %v78, 4294901760
    %v110 = vsub.f32 %v78, %v109
    %v111 = vand.u32 %v110, 4294901760
    %v112 = vsub.f32 %v110, %v111
    %v113 = vand.u32 %v112, 4294901760
    %114 = vmatmul.f32.gmra.mxu0 %v113
    %v115 = vpop.f32.mrf.mxu0
    %v116 = vadd.f32 0.0, %v115
    %v117 = vand.u32 %v81, 4294901760
    %v118 = vsub.f32 %v81, %v117
    %v119 = vand.u32 %v118, 4294901760
    %v120 = vsub.f32 %v118, %v119
    %v121 = vand.u32 %v120, 4294901760
    %122 = vmatmul.f32.gmra.mxu0 %v121
    %v123 = vpop.f32.mrf.mxu0
    %v124 = vadd.f32 0.0, %v123
    %v125 = vand.u32 %v84, 4294901760
    %v126 = vsub.f32 %v84, %v125
    %v127 = vand.u32 %v126, 4294901760
    %v128 = vsub.f32 %v126, %v127
    %v129 = vand.u32 %v128, 4294901760
    %130 = vmatmul.f32.gmra.mxu0 %v129
    %v131 = vpop.f32.mrf.mxu0
    %v132 = vadd.f32 0.0, %v131
    %v133 = vand.u32 %v87, 4294901760
    %v134 = vsub.f32 %v87, %v133
    %v135 = vand.u32 %v134, 4294901760
    %v136 = vsub.f32 %v134, %v135
    %v137 = vand.u32 %v136, 4294901760
    %138 = vmatmul.f32.gmra.mxu0 %v137
    %v139 = vpop.f32.mrf.mxu0
    %v140 = vadd.f32 0.0, %v139
    %141 = vdwg.mxu0
    %142 = vmatpush.msra.mxu0 0.0
    %143 = vmatpush.msra.mxu0 0.0
    %144 = vmatpush.msra.mxu0 0.0
    %145 = vmatpush.msra.mxu0 0.0
    %146 = vmatpush.msra.mxu0 0.0
    %147 = vmatpush.msra.mxu0 0.0
    %148 = vmatpush.msra.mxu0 0.0
    %149 = vmatpush.msra.mxu0 0.0
    %150 = vmatpush.msra.mxu0 0.0
    %151 = vmatpush.msra.mxu0 0.0
    %152 = vmatpush.msra.mxu0 0.0
    %153 = vmatpush.msra.mxu0 0.0
    %v154 = vand.u32 %v75, 4294901760
    %v155 = vsub.f32 %v75, %v154
    %v156 = vand.u32 %v155, 4294901760
    %v157 = vsub.f32 %v155, %v156
    %v158 = vand.u32 %v157, 4294901760
    %159 = vmatpush.msra.mxu0 %v158
    %v160 = vand.u32 %v74, 4294901760
    %v161 = vsub.f32 %v74, %v160
    %v162 = vand.u32 %v161, 4294901760
    %v163 = vsub.f32 %v161, %v162
    %v164 = vand.u32 %v163, 4294901760
    %165 = vmatpush.msra.mxu0 %v164
    %v166 = vand.u32 %v73, 4294901760
    %v167 = vsub.f32 %v73, %v166
    %v168 = vand.u32 %v167, 4294901760
    %v169 = vsub.f32 %v167, %v168
    %v170 = vand.u32 %v169, 4294901760
    %171 = vmatpush.msra.mxu0 %v170
    %v172 = vand.u32 %v72, 4294901760
    %v173 = vsub.f32 %v72, %v172
    %v174 = vand.u32 %v173, 4294901760
    %v175 = vsub.f32 %v173, %v174
    %v176 = vand.u32 %v175, 4294901760
    %177 = vmatpush.msra.mxu0 %v176
    %v178 = vand.u32 %v78, 4294901760
    %179 = vmatmul.f32.gmra.mxu0 %v178
    %v180 = vpop.f32.mrf.mxu0
    %v181 = vadd.f32 %v116, %v180
    %v182 = vand.u32 %v81, 4294901760
    %183 = vmatmul.f32.gmra.mxu0 %v182
    %v184 = vpop.f32.mrf.mxu0
    %v185 = vadd.f32 %v124, %v184
    %v186 = vand.u32 %v84, 4294901760
    %187 = vmatmul.f32.gmra.mxu0 %v186
    %v188 = vpop.f32.mrf.mxu0
    %v189 = vadd.f32 %v132, %v188
    %v190 = vand.u32 %v87, 4294901760
    %191 = vmatmul.f32.gmra.mxu0 %v190
    %v192 = vpop.f32.mrf.mxu0
    %v193 = vadd.f32 %v140, %v192
    %194 = vdwg.mxu0
    %195 = vmatpush.msra.mxu0 0.0
    %196 = vmatpush.msra.mxu0 0.0
    %197 = vmatpush.msra.mxu0 0.0
    %198 = vmatpush.msra.mxu0 0.0
    %199 = vmatpush.msra.mxu0 0.0
    %200 = vmatpush.msra.mxu0 0.0
    %201 = vmatpush.msra.mxu0 0.0
    %202 = vmatpush.msra.mxu0 0.0
    %203 = vmatpush.msra.mxu0 0.0
    %204 = vmatpush.msra.mxu0 0.0
    %205 = vmatpush.msra.mxu0 0.0
    %206 = vmatpush.msra.mxu0 0.0
    %v207 = vand.u32 %v75, 4294901760
    %v208 = vsub.f32 %v75, %v207
    %209 = vmatpush.msra.mxu0 %v208
    %v210 = vand.u32 %v74, 4294901760
    %v211 = vsub.f32 %v74, %v210
    %212 = vmatpush.msra.mxu0 %v211
    %v213 = vand.u32 %v73, 4294901760
    %v214 = vsub.f32 %v73, %v213
    %215 = vmatpush.msra.mxu0 %v214
    %v216 = vand.u32 %v72, 4294901760
    %v217 = vsub.f32 %v72, %v216
    %218 = vmatpush.msra.mxu0 %v217
    %v219 = vand.u32 %v78, 4294901760
    %v220 = vsub.f32 %v78, %v219
    %221 = vmatmul.f32.gmra.mxu0 %v220
    %v222 = vpop.f32.mrf.mxu0
    %v223 = vadd.f32 %v181, %v222
    %v224 = vand.u32 %v81, 4294901760
    %v225 = vsub.f32 %v81, %v224
    %226 = vmatmul.f32.gmra.mxu0 %v225
    %v227 = vpop.f32.mrf.mxu0
    %v228 = vadd.f32 %v185, %v227
    %v229 = vand.u32 %v84, 4294901760
    %v230 = vsub.f32 %v84, %v229
    %231 = vmatmul.f32.gmra.mxu0 %v230
    %v232 = vpop.f32.mrf.mxu0
    %v233 = vadd.f32 %v189, %v232
    %v234 = vand.u32 %v87, 4294901760
    %v235 = vsub.f32 %v87, %v234
    %236 = vmatmul.f32.gmra.mxu0 %v235
    %v237 = vpop.f32.mrf.mxu0
    %v238 = vadd.f32 %v193, %v237
    %239 = vdwg.mxu0
    %240 = vmatpush.msra.mxu0 0.0
    %241 = vmatpush.msra.mxu0 0.0
    %242 = vmatpush.msra.mxu0 0.0
    %243 = vmatpush.msra.mxu0 0.0
    %244 = vmatpush.msra.mxu0 0.0
    %245 = vmatpush.msra.mxu0 0.0
    %246 = vmatpush.msra.mxu0 0.0
    %247 = vmatpush.msra.mxu0 0.0
    %248 = vmatpush.msra.mxu0 0.0
    %249 = vmatpush.msra.mxu0 0.0
    %250 = vmatpush.msra.mxu0 0.0
    %251 = vmatpush.msra.mxu0 0.0
    %v252 = vand.u32 %v75, 4294901760
    %253 = vmatpush.msra.mxu0 %v252
    %v254 = vand.u32 %v74, 4294901760
    %255 = vmatpush.msra.mxu0 %v254
    %v256 = vand.u32 %v73, 4294901760
    %257 = vmatpush.msra.mxu0 %v256
    %v258 = vand.u32 %v72, 4294901760
    %259 = vmatpush.msra.mxu0 %v258
    %v260 = vand.u32 %v78, 4294901760
    %v261 = vsub.f32 %v78, %v260
    %v262 = vand.u32 %v261, 4294901760
    %263 = vmatmul.f32.gmra.mxu0 %v262
    %v264 = vpop.f32.mrf.mxu0
    %v265 = vadd.f32 %v223, %v264
    %v266 = vand.u32 %v81, 4294901760
    %v267 = vsub.f32 %v81, %v266
    %v268 = vand.u32 %v267, 4294901760
    %269 = vmatmul.f32.gmra.mxu0 %v268
    %v270 = vpop.f32.mrf.mxu0
    %v271 = vadd.f32 %v228, %v270
    %v272 = vand.u32 %v84, 4294901760
    %v273 = vsub.f32 %v84, %v272
    %v274 = vand.u32 %v273, 4294901760
    %275 = vmatmul.f32.gmra.mxu0 %v274
    %v276 = vpop.f32.mrf.mxu0
    %v277 = vadd.f32 %v233, %v276
    %v278 = vand.u32 %v87, 4294901760
    %v279 = vsub.f32 %v87, %v278
    %v280 = vand.u32 %v279, 4294901760
    %281 = vmatmul.f32.gmra.mxu0 %v280
    %v282 = vpop.f32.mrf.mxu0
    %v283 = vadd.f32 %v238, %v282
    %284 = vdwg.mxu0
    %285 = vmatpush.msra.mxu0 0.0
    %286 = vmatpush.msra.mxu0 0.0
    %287 = vmatpush.msra.mxu0 0.0
    %288 = vmatpush.msra.mxu0 0.0
    %289 = vmatpush.msra.mxu0 0.0
    %290 = vmatpush.msra.mxu0 0.0
    %291 = vmatpush.msra.mxu0 0.0
    %292 = vmatpush.msra.mxu0 0.0
    %293 = vmatpush.msra.mxu0 0.0
    %294 = vmatpush.msra.mxu0 0.0
    %295 = vmatpush.msra.mxu0 0.0
    %296 = vmatpush.msra.mxu0 0.0
    %v297 = vand.u32 %v75, 4294901760
    %v298 = vsub.f32 %v75, %v297
    %v299 = vand.u32 %v298, 4294901760
    %300 = vmatpush.msra.mxu0 %v299
    %v301 = vand.u32 %v74, 4294901760
    %v302 = vsub.f32 %v74, %v301
    %v303 = vand.u32 %v302, 4294901760
    %304 = vmatpush.msra.mxu0 %v303
    %v305 = vand.u32 %v73, 4294901760
    %v306 = vsub.f32 %v73, %v305
    %v307 = vand.u32 %v306, 4294901760
    %308 = vmatpush.msra.mxu0 %v307
    %v309 = vand.u32 %v72, 4294901760
    %v310 = vsub.f32 %v72, %v309
    %v311 = vand.u32 %v310, 4294901760
    %312 = vmatpush.msra.mxu0 %v311
    %v313 = vand.u32 %v78, 4294901760
    %314 = vmatmul.f32.gmra.mxu0 %v313
    %v315 = vpop.f32.mrf.mxu0
    %v316 = vadd.f32 %v265, %v315
    %v317 = vand.u32 %v81, 4294901760
    %318 = vmatmul.f32.gmra.mxu0 %v317
    %v319 = vpop.f32.mrf.mxu0
    %v320 = vadd.f32 %v271, %v319
    %v321 = vand.u32 %v84, 4294901760
    %322 = vmatmul.f32.gmra.mxu0 %v321
    %v323 = vpop.f32.mrf.mxu0
    %v324 = vadd.f32 %v277, %v323
    %v325 = vand.u32 %v87, 4294901760
    %326 = vmatmul.f32.gmra.mxu0 %v325
    %v327 = vpop.f32.mrf.mxu0
    %v328 = vadd.f32 %v283, %v327
    %329 = vdwg.mxu0
    %330 = vmatpush.msra.mxu0 0.0
    %331 = vmatpush.msra.mxu0 0.0
    %332 = vmatpush.msra.mxu0 0.0
    %333 = vmatpush.msra.mxu0 0.0
    %334 = vmatpush.msra.mxu0 0.0
    %335 = vmatpush.msra.mxu0 0.0
    %336 = vmatpush.msra.mxu0 0.0
    %337 = vmatpush.msra.mxu0 0.0
    %338 = vmatpush.msra.mxu0 0.0
    %339 = vmatpush.msra.mxu0 0.0
    %340 = vmatpush.msra.mxu0 0.0
    %341 = vmatpush.msra.mxu0 0.0
    %v342 = vand.u32 %v75, 4294901760
    %343 = vmatpush.msra.mxu0 %v342
    %v344 = vand.u32 %v74, 4294901760
    %345 = vmatpush.msra.mxu0 %v344
    %v346 = vand.u32 %v73, 4294901760
    %347 = vmatpush.msra.mxu0 %v346
    %v348 = vand.u32 %v72, 4294901760
    %349 = vmatpush.msra.mxu0 %v348
    %v350 = vand.u32 %v78, 4294901760
    %351 = vmatmul.f32.gmra.mxu0 %v350
    %v352 = vpop.f32.mrf.mxu0
    %v353 = vadd.f32 %v316, %v352
    %v354 = vand.u32 %v81, 4294901760
    %355 = vmatmul.f32.gmra.mxu0 %v354
    %v356 = vpop.f32.mrf.mxu0
    %v357 = vadd.f32 %v320, %v356
    %v358 = vand.u32 %v84, 4294901760
    %359 = vmatmul.f32.gmra.mxu0 %v358
    %v360 = vpop.f32.mrf.mxu0
    %v361 = vadd.f32 %v324, %v360
    %v362 = vand.u32 %v87, 4294901760
    %363 = vmatmul.f32.gmra.mxu0 %v362
    %v364 = vpop.f32.mrf.mxu0
    %v365 = vadd.f32 %v328, %v364
    %366 = vdwg.mxu0
    %v367 = vld [vmem:[%s0 + $0x2] sm:$0x1]
    %v368 = vperm.slane %v367, 0
    %v369 = vmul.f32 %v12, %v368
    %v370 = vmul.f32 %v13, %v368
    %v371 = vmul.f32 %v14, %v368
    %v372 = vmul.f32 %v15, %v368
    %373 = vrot.lane.b32.xlu0 %v369, 64
    %v374 = vpop.permute.xlu0 %373
    %375 = vrot.lane.b32.xlu0 %v370, 64
    %v376 = vpop.permute.xlu0 %375
    %377 = vrot.lane.b32.xlu0 %v371, 64
    %v378 = vpop.permute.xlu0 %377
    %379 = vrot.lane.b32.xlu0 %v372, 64
    %v380 = vpop.permute.xlu0 %379
    %v381 = vadd.f32 %v369, %v374
    %v382 = vadd.f32 %v370, %v376
    %v383 = vadd.f32 %v371, %v378
    %v384 = vadd.f32 %v372, %v380
    %385 = vrot.lane.b32.xlu0 %v381, 32
    %v386 = vpop.permute.xlu0 %385
    %387 = vrot.lane.b32.xlu0 %v382, 32
    %v388 = vpop.permute.xlu0 %387
    %389 = vrot.lane.b32.xlu0 %v383, 32
    %v390 = vpop.permute.xlu0 %389
    %391 = vrot.lane.b32.xlu0 %v384, 32
    %v392 = vpop.permute.xlu0 %391
    %v393 = vadd.f32 %v381, %v386
    %v394 = vadd.f32 %v382, %v388
    %v395 = vadd.f32 %v383, %v390
    %v396 = vadd.f32 %v384, %v392
    %v397 = vld [vmem:[%s0 + $0x3] sm:$0x1]
    %v398 = vperm.slane %v397, 0
    %v399 = vmul.f32 %v12, %v398
    %v400 = vmul.f32 %v13, %v398
    %v401 = vmul.f32 %v14, %v398
    %v402 = vmul.f32 %v15, %v398
    %403 = vrot.lane.b32.xlu0 %v399, 64
    %v404 = vpop.permute.xlu0 %403
    %405 = vrot.lane.b32.xlu0 %v400, 64
    %v406 = vpop.permute.xlu0 %405
    %407 = vrot.lane.b32.xlu0 %v401, 64
    %v408 = vpop.permute.xlu0 %407
    %409 = vrot.lane.b32.xlu0 %v402, 64
    %v410 = vpop.permute.xlu0 %409
    %v411 = vadd.f32 %v399, %v404
    %v412 = vadd.f32 %v400, %v406
    %v413 = vadd.f32 %v401, %v408
    %v414 = vadd.f32 %v402, %v410
    %415 = vrot.lane.b32.xlu0 %v411, 32
    %v416 = vpop.permute.xlu0 %415
    %417 = vrot.lane.b32.xlu0 %v412, 32
    %v418 = vpop.permute.xlu0 %417
    %419 = vrot.lane.b32.xlu0 %v413, 32
    %v420 = vpop.permute.xlu0 %419
    %421 = vrot.lane.b32.xlu0 %v414, 32
    %v422 = vpop.permute.xlu0 %421
    %v423 = vadd.f32 %v411, %v416
    %v424 = vadd.f32 %v412, %v418
    %v425 = vadd.f32 %v413, %v420
    %v426 = vadd.f32 %v414, %v422
    %v428 = vsel %vm76, %v393, 0
    %v431 = vsel %vm76, %v394, 0
    %v434 = vsel %vm76, %v395, 0
    %v437 = vsel %vm76, %v396, 0
    %439 = vmatpush.msra.mxu0 0.0
    %440 = vmatpush.msra.mxu0 0.0
    %441 = vmatpush.msra.mxu0 0.0
    %442 = vmatpush.msra.mxu0 0.0
    %443 = vmatpush.msra.mxu0 0.0
    %444 = vmatpush.msra.mxu0 0.0
    %445 = vmatpush.msra.mxu0 0.0
    %446 = vmatpush.msra.mxu0 0.0
    %447 = vmatpush.msra.mxu0 0.0
    %448 = vmatpush.msra.mxu0 0.0
    %449 = vmatpush.msra.mxu0 0.0
    %450 = vmatpush.msra.mxu0 0.0
    %v451 = vand.u32 %v426, 4294901760
    %452 = vmatpush.msra.mxu0 %v451
    %v453 = vand.u32 %v425, 4294901760
    %454 = vmatpush.msra.mxu0 %v453
    %v455 = vand.u32 %v424, 4294901760
    %456 = vmatpush.msra.mxu0 %v455
    %v457 = vand.u32 %v423, 4294901760
    %458 = vmatpush.msra.mxu0 %v457
    %v459 = vand.u32 %v428, 4294901760
    %v460 = vsub.f32 %v428, %v459
    %v461 = vand.u32 %v460, 4294901760
    %v462 = vsub.f32 %v460, %v461
    %v463 = vand.u32 %v462, 4294901760
    %464 = vmatmul.f32.gmra.mxu0 %v463
    %v465 = vpop.f32.mrf.mxu0
    %v466 = vadd.f32 0.0, %v465
    %v467 = vand.u32 %v431, 4294901760
    %v468 = vsub.f32 %v431, %v467
    %v469 = vand.u32 %v468, 4294901760
    %v470 = vsub.f32 %v468, %v469
    %v471 = vand.u32 %v470, 4294901760
    %472 = vmatmul.f32.gmra.mxu0 %v471
    %v473 = vpop.f32.mrf.mxu0
    %v474 = vadd.f32 0.0, %v473
    %v475 = vand.u32 %v434, 4294901760
    %v476 = vsub.f32 %v434, %v475
    %v477 = vand.u32 %v476, 4294901760
    %v478 = vsub.f32 %v476, %v477
    %v479 = vand.u32 %v478, 4294901760
    %480 = vmatmul.f32.gmra.mxu0 %v479
    %v481 = vpop.f32.mrf.mxu0
    %v482 = vadd.f32 0.0, %v481
    %v483 = vand.u32 %v437, 4294901760
    %v484 = vsub.f32 %v437, %v483
    %v485 = vand.u32 %v484, 4294901760
    %v486 = vsub.f32 %v484, %v485
    %v487 = vand.u32 %v486, 4294901760
    %488 = vmatmul.f32.gmra.mxu0 %v487
    %v489 = vpop.f32.mrf.mxu0
    %v490 = vadd.f32 0.0, %v489
    %491 = vdwg.mxu0
    %492 = vmatpush.msra.mxu0 0.0
    %493 = vmatpush.msra.mxu0 0.0
    %494 = vmatpush.msra.mxu0 0.0
    %495 = vmatpush.msra.mxu0 0.0
    %496 = vmatpush.msra.mxu0 0.0
    %497 = vmatpush.msra.mxu0 0.0
    %498 = vmatpush.msra.mxu0 0.0
    %499 = vmatpush.msra.mxu0 0.0
    %500 = vmatpush.msra.mxu0 0.0
    %501 = vmatpush.msra.mxu0 0.0
    %502 = vmatpush.msra.mxu0 0.0
    %503 = vmatpush.msra.mxu0 0.0
    %v504 = vand.u32 %v426, 4294901760
    %v505 = vsub.f32 %v426, %v504
    %v506 = vand.u32 %v505, 4294901760
    %v507 = vsub.f32 %v505, %v506
    %v508 = vand.u32 %v507, 4294901760
    %509 = vmatpush.msra.mxu0 %v508
    %v510 = vand.u32 %v425, 4294901760
    %v511 = vsub.f32 %v425, %v510
    %v512 = vand.u32 %v511, 4294901760
    %v513 = vsub.f32 %v511, %v512
    %v514 = vand.u32 %v513, 4294901760
    %515 = vmatpush.msra.mxu0 %v514
    %v516 = vand.u32 %v424, 4294901760
    %v517 = vsub.f32 %v424, %v516
    %v518 = vand.u32 %v517, 4294901760
    %v519 = vsub.f32 %v517, %v518
    %v520 = vand.u32 %v519, 4294901760
    %521 = vmatpush.msra.mxu0 %v520
    %v522 = vand.u32 %v423, 4294901760
    %v523 = vsub.f32 %v423, %v522
    %v524 = vand.u32 %v523, 4294901760
    %v525 = vsub.f32 %v523, %v524
    %v526 = vand.u32 %v525, 4294901760
    %527 = vmatpush.msra.mxu0 %v526
    %v528 = vand.u32 %v428, 4294901760
    %529 = vmatmul.f32.gmra.mxu0 %v528
    %v530 = vpop.f32.mrf.mxu0
    %v531 = vadd.f32 %v466, %v530
    %v532 = vand.u32 %v431, 4294901760
    %533 = vmatmul.f32.gmra.mxu0 %v532
    %v534 = vpop.f32.mrf.mxu0
    %v535 = vadd.f32 %v474, %v534
    %v536 = vand.u32 %v434, 4294901760
    %537 = vmatmul.f32.gmra.mxu0 %v536
    %v538 = vpop.f32.mrf.mxu0
    %v539 = vadd.f32 %v482, %v538
    %v540 = vand.u32 %v437, 4294901760
    %541 = vmatmul.f32.gmra.mxu0 %v540
    %v542 = vpop.f32.mrf.mxu0
    %v543 = vadd.f32 %v490, %v542
    %544 = vdwg.mxu0
    %545 = vmatpush.msra.mxu0 0.0
    %546 = vmatpush.msra.mxu0 0.0
    %547 = vmatpush.msra.mxu0 0.0
    %548 = vmatpush.msra.mxu0 0.0
    %549 = vmatpush.msra.mxu0 0.0
    %550 = vmatpush.msra.mxu0 0.0
    %551 = vmatpush.msra.mxu0 0.0
    %552 = vmatpush.msra.mxu0 0.0
    %553 = vmatpush.msra.mxu0 0.0
    %554 = vmatpush.msra.mxu0 0.0
    %555 = vmatpush.msra.mxu0 0.0
    %556 = vmatpush.msra.mxu0 0.0
    %v557 = vand.u32 %v426, 4294901760
    %v558 = vsub.f32 %v426, %v557
    %559 = vmatpush.msra.mxu0 %v558
    %v560 = vand.u32 %v425, 4294901760
    %v561 = vsub.f32 %v425, %v560
    %562 = vmatpush.msra.mxu0 %v561
    %v563 = vand.u32 %v424, 4294901760
    %v564 = vsub.f32 %v424, %v563
    %565 = vmatpush.msra.mxu0 %v564
    %v566 = vand.u32 %v423, 4294901760
    %v567 = vsub.f32 %v423, %v566
    %568 = vmatpush.msra.mxu0 %v567
    %v569 = vand.u32 %v428, 4294901760
    %v570 = vsub.f32 %v428, %v569
    %571 = vmatmul.f32.gmra.mxu0 %v570
    %v572 = vpop.f32.mrf.mxu0
    %v573 = vadd.f32 %v531, %v572
    %v574 = vand.u32 %v431, 4294901760
    %v575 = vsub.f32 %v431, %v574
    %576 = vmatmul.f32.gmra.mxu0 %v575
    %v577 = vpop.f32.mrf.mxu0
    %v578 = vadd.f32 %v535, %v577
    %v579 = vand.u32 %v434, 4294901760
    %v580 = vsub.f32 %v434, %v579
    %581 = vmatmul.f32.gmra.mxu0 %v580
    %v582 = vpop.f32.mrf.mxu0
    %v583 = vadd.f32 %v539, %v582
    %v584 = vand.u32 %v437, 4294901760
    %v585 = vsub.f32 %v437, %v584
    %586 = vmatmul.f32.gmra.mxu0 %v585
    %v587 = vpop.f32.mrf.mxu0
    %v588 = vadd.f32 %v543, %v587
    %589 = vdwg.mxu0
    %590 = vmatpush.msra.mxu0 0.0
    %591 = vmatpush.msra.mxu0 0.0
    %592 = vmatpush.msra.mxu0 0.0
    %593 = vmatpush.msra.mxu0 0.0
    %594 = vmatpush.msra.mxu0 0.0
    %595 = vmatpush.msra.mxu0 0.0
    %596 = vmatpush.msra.mxu0 0.0
    %597 = vmatpush.msra.mxu0 0.0
    %598 = vmatpush.msra.mxu0 0.0
    %599 = vmatpush.msra.mxu0 0.0
    %600 = vmatpush.msra.mxu0 0.0
    %601 = vmatpush.msra.mxu0 0.0
    %v602 = vand.u32 %v426, 4294901760
    %603 = vmatpush.msra.mxu0 %v602
    %v604 = vand.u32 %v425, 4294901760
    %605 = vmatpush.msra.mxu0 %v604
    %v606 = vand.u32 %v424, 4294901760
    %607 = vmatpush.msra.mxu0 %v606
    %v608 = vand.u32 %v423, 4294901760
    %609 = vmatpush.msra.mxu0 %v608
    %v610 = vand.u32 %v428, 4294901760
    %v611 = vsub.f32 %v428, %v610
    %v612 = vand.u32 %v611, 4294901760
    %613 = vmatmul.f32.gmra.mxu0 %v612
    %v614 = vpop.f32.mrf.mxu0
    %v615 = vadd.f32 %v573, %v614
    %v616 = vand.u32 %v431, 4294901760
    %v617 = vsub.f32 %v431, %v616
    %v618 = vand.u32 %v617, 4294901760
    %619 = vmatmul.f32.gmra.mxu0 %v618
    %v620 = vpop.f32.mrf.mxu0
    %v621 = vadd.f32 %v578, %v620
    %v622 = vand.u32 %v434, 4294901760
    %v623 = vsub.f32 %v434, %v622
    %v624 = vand.u32 %v623, 4294901760
    %625 = vmatmul.f32.gmra.mxu0 %v624
    %v626 = vpop.f32.mrf.mxu0
    %v627 = vadd.f32 %v583, %v626
    %v628 = vand.u32 %v437, 4294901760
    %v629 = vsub.f32 %v437, %v628
    %v630 = vand.u32 %v629, 4294901760
    %631 = vmatmul.f32.gmra.mxu0 %v630
    %v632 = vpop.f32.mrf.mxu0
    %v633 = vadd.f32 %v588, %v632
    %634 = vdwg.mxu0
    %635 = vmatpush.msra.mxu0 0.0
    %636 = vmatpush.msra.mxu0 0.0
    %637 = vmatpush.msra.mxu0 0.0
    %638 = vmatpush.msra.mxu0 0.0
    %639 = vmatpush.msra.mxu0 0.0
    %640 = vmatpush.msra.mxu0 0.0
    %641 = vmatpush.msra.mxu0 0.0
    %642 = vmatpush.msra.mxu0 0.0
    %643 = vmatpush.msra.mxu0 0.0
    %644 = vmatpush.msra.mxu0 0.0
    %645 = vmatpush.msra.mxu0 0.0
    %646 = vmatpush.msra.mxu0 0.0
    %v647 = vand.u32 %v426, 4294901760
    %v648 = vsub.f32 %v426, %v647
    %v649 = vand.u32 %v648, 4294901760
    %650 = vmatpush.msra.mxu0 %v649
    %v651 = vand.u32 %v425, 4294901760
    %v652 = vsub.f32 %v425, %v651
    %v653 = vand.u32 %v652, 4294901760
    %654 = vmatpush.msra.mxu0 %v653
    %v655 = vand.u32 %v424, 4294901760
    %v656 = vsub.f32 %v424, %v655
    %v657 = vand.u32 %v656, 4294901760
    %658 = vmatpush.msra.mxu0 %v657
    %v659 = vand.u32 %v423, 4294901760
    %v660 = vsub.f32 %v423, %v659
    %v661 = vand.u32 %v660, 4294901760
    %662 = vmatpush.msra.mxu0 %v661
    %v663 = vand.u32 %v428, 4294901760
    %664 = vmatmul.f32.gmra.mxu0 %v663
    %v665 = vpop.f32.mrf.mxu0
    %v666 = vadd.f32 %v615, %v665
    %v667 = vand.u32 %v431, 4294901760
    %668 = vmatmul.f32.gmra.mxu0 %v667
    %v669 = vpop.f32.mrf.mxu0
    %v670 = vadd.f32 %v621, %v669
    %v671 = vand.u32 %v434, 4294901760
    %672 = vmatmul.f32.gmra.mxu0 %v671
    %v673 = vpop.f32.mrf.mxu0
    %v674 = vadd.f32 %v627, %v673
    %v675 = vand.u32 %v437, 4294901760
    %676 = vmatmul.f32.gmra.mxu0 %v675
    %v677 = vpop.f32.mrf.mxu0
    %v678 = vadd.f32 %v633, %v677
    %679 = vdwg.mxu0
    %680 = vmatpush.msra.mxu0 0.0
    %681 = vmatpush.msra.mxu0 0.0
    %682 = vmatpush.msra.mxu0 0.0
    %683 = vmatpush.msra.mxu0 0.0
    %684 = vmatpush.msra.mxu0 0.0
    %685 = vmatpush.msra.mxu0 0.0
    %686 = vmatpush.msra.mxu0 0.0
    %687 = vmatpush.msra.mxu0 0.0
    %688 = vmatpush.msra.mxu0 0.0
    %689 = vmatpush.msra.mxu0 0.0
    %690 = vmatpush.msra.mxu0 0.0
    %691 = vmatpush.msra.mxu0 0.0
    %v692 = vand.u32 %v426, 4294901760
    %693 = vmatpush.msra.mxu0 %v692
    %v694 = vand.u32 %v425, 4294901760
    %695 = vmatpush.msra.mxu0 %v694
    %v696 = vand.u32 %v424, 4294901760
    %697 = vmatpush.msra.mxu0 %v696
    %v698 = vand.u32 %v423, 4294901760
    %699 = vmatpush.msra.mxu0 %v698
    %v700 = vand.u32 %v428, 4294901760
    %701 = vmatmul.f32.gmra.mxu0 %v700
    %v702 = vpop.f32.mrf.mxu0
    %v703 = vadd.f32 %v666, %v702
    %v704 = vand.u32 %v431, 4294901760
    %705 = vmatmul.f32.gmra.mxu0 %v704
    %v706 = vpop.f32.mrf.mxu0
    %v707 = vadd.f32 %v670, %v706
    %v708 = vand.u32 %v434, 4294901760
    %709 = vmatmul.f32.gmra.mxu0 %v708
    %v710 = vpop.f32.mrf.mxu0
    %v711 = vadd.f32 %v674, %v710
    %v712 = vand.u32 %v437, 4294901760
    %713 = vmatmul.f32.gmra.mxu0 %v712
    %v714 = vpop.f32.mrf.mxu0
    %v715 = vadd.f32 %v678, %v714
    %716 = vdwg.mxu0
    %v717 = vld [vmem:[%s0 + $0x4] sm:$0x1]
    %v718 = vperm.slane %v717, 0
    %v719 = vmul.f32 %v12, %v718
    %v720 = vmul.f32 %v13, %v718
    %v721 = vmul.f32 %v14, %v718
    %v722 = vmul.f32 %v15, %v718
    %723 = vrot.lane.b32.xlu0 %v719, 64
    %v724 = vpop.permute.xlu0 %723
    %725 = vrot.lane.b32.xlu0 %v720, 64
    %v726 = vpop.permute.xlu0 %725
    %727 = vrot.lane.b32.xlu0 %v721, 64
    %v728 = vpop.permute.xlu0 %727
    %729 = vrot.lane.b32.xlu0 %v722, 64
    %v730 = vpop.permute.xlu0 %729
    %v731 = vadd.f32 %v719, %v724
    %v732 = vadd.f32 %v720, %v726
    %v733 = vadd.f32 %v721, %v728
    %v734 = vadd.f32 %v722, %v730
    %735 = vrot.lane.b32.xlu0 %v731, 32
    %v736 = vpop.permute.xlu0 %735
    %737 = vrot.lane.b32.xlu0 %v732, 32
    %v738 = vpop.permute.xlu0 %737
    %739 = vrot.lane.b32.xlu0 %v733, 32
    %v740 = vpop.permute.xlu0 %739
    %741 = vrot.lane.b32.xlu0 %v734, 32
    %v742 = vpop.permute.xlu0 %741
    %v743 = vadd.f32 %v731, %v736
    %v744 = vadd.f32 %v732, %v738
    %v745 = vadd.f32 %v733, %v740
    %v746 = vadd.f32 %v734, %v742
    %v747 = vld [vmem:[%s0 + $0x5] sm:$0x1]
    %v748 = vperm.slane %v747, 0
    %v749 = vmul.f32 %v12, %v748
    %v750 = vmul.f32 %v13, %v748
    %v751 = vmul.f32 %v14, %v748
    %v752 = vmul.f32 %v15, %v748
    %753 = vrot.lane.b32.xlu0 %v749, 64
    %v754 = vpop.permute.xlu0 %753
    %755 = vrot.lane.b32.xlu0 %v750, 64
    %v756 = vpop.permute.xlu0 %755
    %757 = vrot.lane.b32.xlu0 %v751, 64
    %v758 = vpop.permute.xlu0 %757
    %759 = vrot.lane.b32.xlu0 %v752, 64
    %v760 = vpop.permute.xlu0 %759
    %v761 = vadd.f32 %v749, %v754
    %v762 = vadd.f32 %v750, %v756
    %v763 = vadd.f32 %v751, %v758
    %v764 = vadd.f32 %v752, %v760
    %765 = vrot.lane.b32.xlu0 %v761, 32
    %v766 = vpop.permute.xlu0 %765
    %767 = vrot.lane.b32.xlu0 %v762, 32
    %v768 = vpop.permute.xlu0 %767
    %769 = vrot.lane.b32.xlu0 %v763, 32
    %v770 = vpop.permute.xlu0 %769
    %771 = vrot.lane.b32.xlu0 %v764, 32
    %v772 = vpop.permute.xlu0 %771
    %v773 = vadd.f32 %v761, %v766
    %v774 = vadd.f32 %v762, %v768
    %v775 = vadd.f32 %v763, %v770
    %v776 = vadd.f32 %v764, %v772
    %v778 = vsel %vm76, %v743, 0
    %v781 = vsel %vm76, %v744, 0
    %v784 = vsel %vm76, %v745, 0
    %v787 = vsel %vm76, %v746, 0
    %789 = vmatpush.msra.mxu0 0.0
    %790 = vmatpush.msra.mxu0 0.0
    %791 = vmatpush.msra.mxu0 0.0
    %792 = vmatpush.msra.mxu0 0.0
    %793 = vmatpush.msra.mxu0 0.0
    %794 = vmatpush.msra.mxu0 0.0
    %795 = vmatpush.msra.mxu0 0.0
    %796 = vmatpush.msra.mxu0 0.0
    %797 = vmatpush.msra.mxu0 0.0
    %798 = vmatpush.msra.mxu0 0.0
    %799 = vmatpush.msra.mxu0 0.0
    %800 = vmatpush.msra.mxu0 0.0
    %v801 = vand.u32 %v776, 4294901760
    %802 = vmatpush.msra.mxu0 %v801
    %v803 = vand.u32 %v775, 4294901760
    %804 = vmatpush.msra.mxu0 %v803
    %v805 = vand.u32 %v774, 4294901760
    %806 = vmatpush.msra.mxu0 %v805
    %v807 = vand.u32 %v773, 4294901760
    %808 = vmatpush.msra.mxu0 %v807
    %v809 = vand.u32 %v778, 4294901760
    %v810 = vsub.f32 %v778, %v809
    %v811 = vand.u32 %v810, 4294901760
    %v812 = vsub.f32 %v810, %v811
    %v813 = vand.u32 %v812, 4294901760
    %814 = vmatmul.f32.gmra.mxu0 %v813
    %v815 = vpop.f32.mrf.mxu0
    %v816 = vadd.f32 0.0, %v815
    %v817 = vand.u32 %v781, 4294901760
    %v818 = vsub.f32 %v781, %v817
    %v819 = vand.u32 %v818, 4294901760
    %v820 = vsub.f32 %v818, %v819
    %v821 = vand.u32 %v820, 4294901760
    %822 = vmatmul.f32.gmra.mxu0 %v821
    %v823 = vpop.f32.mrf.mxu0
    %v824 = vadd.f32 0.0, %v823
    %v825 = vand.u32 %v784, 4294901760
    %v826 = vsub.f32 %v784, %v825
    %v827 = vand.u32 %v826, 4294901760
    %v828 = vsub.f32 %v826, %v827
    %v829 = vand.u32 %v828, 4294901760
    %830 = vmatmul.f32.gmra.mxu0 %v829
    %v831 = vpop.f32.mrf.mxu0
    %v832 = vadd.f32 0.0, %v831
    %v833 = vand.u32 %v787, 4294901760
    %v834 = vsub.f32 %v787, %v833
    %v835 = vand.u32 %v834, 4294901760
    %v836 = vsub.f32 %v834, %v835
    %v837 = vand.u32 %v836, 4294901760
    %838 = vmatmul.f32.gmra.mxu0 %v837
    %v839 = vpop.f32.mrf.mxu0
    %v840 = vadd.f32 0.0, %v839
    %841 = vdwg.mxu0
    %842 = vmatpush.msra.mxu0 0.0
    %843 = vmatpush.msra.mxu0 0.0
    %844 = vmatpush.msra.mxu0 0.0
    %845 = vmatpush.msra.mxu0 0.0
    %846 = vmatpush.msra.mxu0 0.0
    %847 = vmatpush.msra.mxu0 0.0
    %848 = vmatpush.msra.mxu0 0.0
    %849 = vmatpush.msra.mxu0 0.0
    %850 = vmatpush.msra.mxu0 0.0
    %851 = vmatpush.msra.mxu0 0.0
    %852 = vmatpush.msra.mxu0 0.0
    %853 = vmatpush.msra.mxu0 0.0
    %v854 = vand.u32 %v776, 4294901760
    %v855 = vsub.f32 %v776, %v854
    %v856 = vand.u32 %v855, 4294901760
    %v857 = vsub.f32 %v855, %v856
    %v858 = vand.u32 %v857, 4294901760
    %859 = vmatpush.msra.mxu0 %v858
    %v860 = vand.u32 %v775, 4294901760
    %v861 = vsub.f32 %v775, %v860
    %v862 = vand.u32 %v861, 4294901760
    %v863 = vsub.f32 %v861, %v862
    %v864 = vand.u32 %v863, 4294901760
    %865 = vmatpush.msra.mxu0 %v864
    %v866 = vand.u32 %v774, 4294901760
    %v867 = vsub.f32 %v774, %v866
    %v868 = vand.u32 %v867, 4294901760
    %v869 = vsub.f32 %v867, %v868
    %v870 = vand.u32 %v869, 4294901760
    %871 = vmatpush.msra.mxu0 %v870
    %v872 = vand.u32 %v773, 4294901760
    %v873 = vsub.f32 %v773, %v872
    %v874 = vand.u32 %v873, 4294901760
    %v875 = vsub.f32 %v873, %v874
    %v876 = vand.u32 %v875, 4294901760
    %877 = vmatpush.msra.mxu0 %v876
    %v878 = vand.u32 %v778, 4294901760
    %879 = vmatmul.f32.gmra.mxu0 %v878
    %v880 = vpop.f32.mrf.mxu0
    %v881 = vadd.f32 %v816, %v880
    %v882 = vand.u32 %v781, 4294901760
    %883 = vmatmul.f32.gmra.mxu0 %v882
    %v884 = vpop.f32.mrf.mxu0
    %v885 = vadd.f32 %v824, %v884
    %v886 = vand.u32 %v784, 4294901760
    %887 = vmatmul.f32.gmra.mxu0 %v886
    %v888 = vpop.f32.mrf.mxu0
    %v889 = vadd.f32 %v832, %v888
    %v890 = vand.u32 %v787, 4294901760
    %891 = vmatmul.f32.gmra.mxu0 %v890
    %v892 = vpop.f32.mrf.mxu0
    %v893 = vadd.f32 %v840, %v892
    %894 = vdwg.mxu0
    %895 = vmatpush.msra.mxu0 0.0
    %896 = vmatpush.msra.mxu0 0.0
    %897 = vmatpush.msra.mxu0 0.0
    %898 = vmatpush.msra.mxu0 0.0
    %899 = vmatpush.msra.mxu0 0.0
    %900 = vmatpush.msra.mxu0 0.0
    %901 = vmatpush.msra.mxu0 0.0
    %902 = vmatpush.msra.mxu0 0.0
    %903 = vmatpush.msra.mxu0 0.0
    %904 = vmatpush.msra.mxu0 0.0
    %905 = vmatpush.msra.mxu0 0.0
    %906 = vmatpush.msra.mxu0 0.0
    %v907 = vand.u32 %v776, 4294901760
    %v908 = vsub.f32 %v776, %v907
    %909 = vmatpush.msra.mxu0 %v908
    %v910 = vand.u32 %v775, 4294901760
    %v911 = vsub.f32 %v775, %v910
    %912 = vmatpush.msra.mxu0 %v911
    %v913 = vand.u32 %v774, 4294901760
    %v914 = vsub.f32 %v774, %v913
    %915 = vmatpush.msra.mxu0 %v914
    %v916 = vand.u32 %v773, 4294901760
    %v917 = vsub.f32 %v773, %v916
    %918 = vmatpush.msra.mxu0 %v917
    %v919 = vand.u32 %v778, 4294901760
    %v920 = vsub.f32 %v778, %v919
    %921 = vmatmul.f32.gmra.mxu0 %v920
    %v922 = vpop.f32.mrf.mxu0
    %v923 = vadd.f32 %v881, %v922
    %v924 = vand.u32 %v781, 4294901760
    %v925 = vsub.f32 %v781, %v924
    %926 = vmatmul.f32.gmra.mxu0 %v925
    %v927 = vpop.f32.mrf.mxu0
    %v928 = vadd.f32 %v885, %v927
    %v929 = vand.u32 %v784, 4294901760
    %v930 = vsub.f32 %v784, %v929
    %931 = vmatmul.f32.gmra.mxu0 %v930
    %v932 = vpop.f32.mrf.mxu0
    %v933 = vadd.f32 %v889, %v932
    %v934 = vand.u32 %v787, 4294901760
    %v935 = vsub.f32 %v787, %v934
    %936 = vmatmul.f32.gmra.mxu0 %v935
    %v937 = vpop.f32.mrf.mxu0
    %v938 = vadd.f32 %v893, %v937
    %939 = vdwg.mxu0
    %940 = vmatpush.msra.mxu0 0.0
    %941 = vmatpush.msra.mxu0 0.0
    %942 = vmatpush.msra.mxu0 0.0
    %943 = vmatpush.msra.mxu0 0.0
    %944 = vmatpush.msra.mxu0 0.0
    %945 = vmatpush.msra.mxu0 0.0
    %946 = vmatpush.msra.mxu0 0.0
    %947 = vmatpush.msra.mxu0 0.0
    %948 = vmatpush.msra.mxu0 0.0
    %949 = vmatpush.msra.mxu0 0.0
    %950 = vmatpush.msra.mxu0 0.0
    %951 = vmatpush.msra.mxu0 0.0
    %v952 = vand.u32 %v776, 4294901760
    %953 = vmatpush.msra.mxu0 %v952
    %v954 = vand.u32 %v775, 4294901760
    %955 = vmatpush.msra.mxu0 %v954
    %v956 = vand.u32 %v774, 4294901760
    %957 = vmatpush.msra.mxu0 %v956
    %v958 = vand.u32 %v773, 4294901760
    %959 = vmatpush.msra.mxu0 %v958
    %v960 = vand.u32 %v778, 4294901760
    %v961 = vsub.f32 %v778, %v960
    %v962 = vand.u32 %v961, 4294901760
    %963 = vmatmul.f32.gmra.mxu0 %v962
    %v964 = vpop.f32.mrf.mxu0
    %v965 = vadd.f32 %v923, %v964
    %v966 = vand.u32 %v781, 4294901760
    %v967 = vsub.f32 %v781, %v966
    %v968 = vand.u32 %v967, 4294901760
    %969 = vmatmul.f32.gmra.mxu0 %v968
    %v970 = vpop.f32.mrf.mxu0
    %v971 = vadd.f32 %v928, %v970
    %v972 = vand.u32 %v784, 4294901760
    %v973 = vsub.f32 %v784, %v972
    %v974 = vand.u32 %v973, 4294901760
    %975 = vmatmul.f32.gmra.mxu0 %v974
    %v976 = vpop.f32.mrf.mxu0
    %v977 = vadd.f32 %v933, %v976
    %v978 = vand.u32 %v787, 4294901760
    %v979 = vsub.f32 %v787, %v978
    %v980 = vand.u32 %v979, 4294901760
    %981 = vmatmul.f32.gmra.mxu0 %v980
    %v982 = vpop.f32.mrf.mxu0
    %v983 = vadd.f32 %v938, %v982
    %984 = vdwg.mxu0
    %985 = vmatpush.msra.mxu0 0.0
    %986 = vmatpush.msra.mxu0 0.0
    %987 = vmatpush.msra.mxu0 0.0
    %988 = vmatpush.msra.mxu0 0.0
    %989 = vmatpush.msra.mxu0 0.0
    %990 = vmatpush.msra.mxu0 0.0
    %991 = vmatpush.msra.mxu0 0.0
    %992 = vmatpush.msra.mxu0 0.0
    %993 = vmatpush.msra.mxu0 0.0
    %994 = vmatpush.msra.mxu0 0.0
    %995 = vmatpush.msra.mxu0 0.0
    %996 = vmatpush.msra.mxu0 0.0
    %v997 = vand.u32 %v776, 4294901760
    %v998 = vsub.f32 %v776, %v997
    %v999 = vand.u32 %v998, 4294901760
    %1000 = vmatpush.msra.mxu0 %v999
    %v1001 = vand.u32 %v775, 4294901760
    %v1002 = vsub.f32 %v775, %v1001
    %v1003 = vand.u32 %v1002, 4294901760
    %1004 = vmatpush.msra.mxu0 %v1003
    %v1005 = vand.u32 %v774, 4294901760
    %v1006 = vsub.f32 %v774, %v1005
    %v1007 = vand.u32 %v1006, 4294901760
    %1008 = vmatpush.msra.mxu0 %v1007
    %v1009 = vand.u32 %v773, 4294901760
    %v1010 = vsub.f32 %v773, %v1009
    %v1011 = vand.u32 %v1010, 4294901760
    %1012 = vmatpush.msra.mxu0 %v1011
    %v1013 = vand.u32 %v778, 4294901760
    %1014 = vmatmul.f32.gmra.mxu0 %v1013
    %v1015 = vpop.f32.mrf.mxu0
    %v1016 = vadd.f32 %v965, %v1015
    %v1017 = vand.u32 %v781, 4294901760
    %1018 = vmatmul.f32.gmra.mxu0 %v1017
    %v1019 = vpop.f32.mrf.mxu0
    %v1020 = vadd.f32 %v971, %v1019
    %v1021 = vand.u32 %v784, 4294901760
    %1022 = vmatmul.f32.gmra.mxu0 %v1021
    %v1023 = vpop.f32.mrf.mxu0
    %v1024 = vadd.f32 %v977, %v1023
    %v1025 = vand.u32 %v787, 4294901760
    %1026 = vmatmul.f32.gmra.mxu0 %v1025
    %v1027 = vpop.f32.mrf.mxu0
    %v1028 = vadd.f32 %v983, %v1027
    %1029 = vdwg.mxu0
    %1030 = vmatpush.msra.mxu0 0.0
    %1031 = vmatpush.msra.mxu0 0.0
    %1032 = vmatpush.msra.mxu0 0.0
    %1033 = vmatpush.msra.mxu0 0.0
    %1034 = vmatpush.msra.mxu0 0.0
    %1035 = vmatpush.msra.mxu0 0.0
    %1036 = vmatpush.msra.mxu0 0.0
    %1037 = vmatpush.msra.mxu0 0.0
    %1038 = vmatpush.msra.mxu0 0.0
    %1039 = vmatpush.msra.mxu0 0.0
    %1040 = vmatpush.msra.mxu0 0.0
    %1041 = vmatpush.msra.mxu0 0.0
    %v1042 = vand.u32 %v776, 4294901760
    %1043 = vmatpush.msra.mxu0 %v1042
    %v1044 = vand.u32 %v775, 4294901760
    %1045 = vmatpush.msra.mxu0 %v1044
    %v1046 = vand.u32 %v774, 4294901760
    %1047 = vmatpush.msra.mxu0 %v1046
    %v1048 = vand.u32 %v773, 4294901760
    %1049 = vmatpush.msra.mxu0 %v1048
    %v1050 = vand.u32 %v778, 4294901760
    %1051 = vmatmul.f32.gmra.mxu0 %v1050
    %v1052 = vpop.f32.mrf.mxu0
    %v1053 = vadd.f32 %v1016, %v1052
    %v1054 = vand.u32 %v781, 4294901760
    %1055 = vmatmul.f32.gmra.mxu0 %v1054
    %v1056 = vpop.f32.mrf.mxu0
    %v1057 = vadd.f32 %v1020, %v1056
    %v1058 = vand.u32 %v784, 4294901760
    %1059 = vmatmul.f32.gmra.mxu0 %v1058
    %v1060 = vpop.f32.mrf.mxu0
    %v1061 = vadd.f32 %v1024, %v1060
    %v1062 = vand.u32 %v787, 4294901760
    %1063 = vmatmul.f32.gmra.mxu0 %v1062
    %v1064 = vpop.f32.mrf.mxu0
    %v1065 = vadd.f32 %v1028, %v1064
    %1066 = vdwg.mxu0
    %v1067 = vld [vmem:[%s0 + $0x6] sm:$0x1]
    %v1068 = vperm.slane %v1067, 0
    %v1069 = vmul.f32 %v12, %v1068
    %v1070 = vmul.f32 %v13, %v1068
    %v1071 = vmul.f32 %v14, %v1068
    %v1072 = vmul.f32 %v15, %v1068
    %1073 = vrot.lane.b32.xlu0 %v1069, 64
    %v1074 = vpop.permute.xlu0 %1073
    %1075 = vrot.lane.b32.xlu0 %v1070, 64
    %v1076 = vpop.permute.xlu0 %1075
    %1077 = vrot.lane.b32.xlu0 %v1071, 64
    %v1078 = vpop.permute.xlu0 %1077
    %1079 = vrot.lane.b32.xlu0 %v1072, 64
    %v1080 = vpop.permute.xlu0 %1079
    %v1081 = vadd.f32 %v1069, %v1074
    %v1082 = vadd.f32 %v1070, %v1076
    %v1083 = vadd.f32 %v1071, %v1078
    %v1084 = vadd.f32 %v1072, %v1080
    %1085 = vrot.lane.b32.xlu0 %v1081, 32
    %v1086 = vpop.permute.xlu0 %1085
    %1087 = vrot.lane.b32.xlu0 %v1082, 32
    %v1088 = vpop.permute.xlu0 %1087
    %1089 = vrot.lane.b32.xlu0 %v1083, 32
    %v1090 = vpop.permute.xlu0 %1089
    %1091 = vrot.lane.b32.xlu0 %v1084, 32
    %v1092 = vpop.permute.xlu0 %1091
    %v1093 = vadd.f32 %v1081, %v1086
    %v1094 = vadd.f32 %v1082, %v1088
    %v1095 = vadd.f32 %v1083, %v1090
    %v1096 = vadd.f32 %v1084, %v1092
    %v1097 = vld [vmem:[%s0 + $0x7] sm:$0x1]
    %v1098 = vperm.slane %v1097, 0
    %v1099 = vmul.f32 %v12, %v1098
    %v1100 = vmul.f32 %v13, %v1098
    %v1101 = vmul.f32 %v14, %v1098
    %v1102 = vmul.f32 %v15, %v1098
    %1103 = vrot.lane.b32.xlu0 %v1099, 64
    %v1104 = vpop.permute.xlu0 %1103
    %1105 = vrot.lane.b32.xlu0 %v1100, 64
    %v1106 = vpop.permute.xlu0 %1105
    %1107 = vrot.lane.b32.xlu0 %v1101, 64
    %v1108 = vpop.permute.xlu0 %1107
    %1109 = vrot.lane.b32.xlu0 %v1102, 64
    %v1110 = vpop.permute.xlu0 %1109
    %v1111 = vadd.f32 %v1099, %v1104
    %v1112 = vadd.f32 %v1100, %v1106
    %v1113 = vadd.f32 %v1101, %v1108
    %v1114 = vadd.f32 %v1102, %v1110
    %1115 = vrot.lane.b32.xlu0 %v1111, 32
    %v1116 = vpop.permute.xlu0 %1115
    %1117 = vrot.lane.b32.xlu0 %v1112, 32
    %v1118 = vpop.permute.xlu0 %1117
    %1119 = vrot.lane.b32.xlu0 %v1113, 32
    %v1120 = vpop.permute.xlu0 %1119
    %1121 = vrot.lane.b32.xlu0 %v1114, 32
    %v1122 = vpop.permute.xlu0 %1121
    %v1123 = vadd.f32 %v1111, %v1116
    %v1124 = vadd.f32 %v1112, %v1118
    %v1125 = vadd.f32 %v1113, %v1120
    %v1126 = vadd.f32 %v1114, %v1122
    %v1128 = vsel %vm76, %v1093, 0
    %v1131 = vsel %vm76, %v1094, 0
    %v1134 = vsel %vm76, %v1095, 0
    %v1137 = vsel %vm76, %v1096, 0
    %1139 = vmatpush.msra.mxu0 0.0
    %1140 = vmatpush.msra.mxu0 0.0
    %1141 = vmatpush.msra.mxu0 0.0
    %1142 = vmatpush.msra.mxu0 0.0
    %1143 = vmatpush.msra.mxu0 0.0
    %1144 = vmatpush.msra.mxu0 0.0
    %1145 = vmatpush.msra.mxu0 0.0
    %1146 = vmatpush.msra.mxu0 0.0
    %1147 = vmatpush.msra.mxu0 0.0
    %1148 = vmatpush.msra.mxu0 0.0
    %1149 = vmatpush.msra.mxu0 0.0
    %1150 = vmatpush.msra.mxu0 0.0
    %v1151 = vand.u32 %v1126, 4294901760
    %1152 = vmatpush.msra.mxu0 %v1151
    %v1153 = vand.u32 %v1125, 4294901760
    %1154 = vmatpush.msra.mxu0 %v1153
    %v1155 = vand.u32 %v1124, 4294901760
    %1156 = vmatpush.msra.mxu0 %v1155
    %v1157 = vand.u32 %v1123, 4294901760
    %1158 = vmatpush.msra.mxu0 %v1157
    %v1159 = vand.u32 %v1128, 4294901760
    %v1160 = vsub.f32 %v1128, %v1159
    %v1161 = vand.u32 %v1160, 4294901760
    %v1162 = vsub.f32 %v1160, %v1161
    %v1163 = vand.u32 %v1162, 4294901760
    %1164 = vmatmul.f32.gmra.mxu0 %v1163
    %v1165 = vpop.f32.mrf.mxu0
    %v1166 = vadd.f32 0.0, %v1165
    %v1167 = vand.u32 %v1131, 4294901760
    %v1168 = vsub.f32 %v1131, %v1167
    %v1169 = vand.u32 %v1168, 4294901760
    %v1170 = vsub.f32 %v1168, %v1169
    %v1171 = vand.u32 %v1170, 4294901760
    %1172 = vmatmul.f32.gmra.mxu0 %v1171
    %v1173 = vpop.f32.mrf.mxu0
    %v1174 = vadd.f32 0.0, %v1173
    %v1175 = vand.u32 %v1134, 4294901760
    %v1176 = vsub.f32 %v1134, %v1175
    %v1177 = vand.u32 %v1176, 4294901760
    %v1178 = vsub.f32 %v1176, %v1177
    %v1179 = vand.u32 %v1178, 4294901760
    %1180 = vmatmul.f32.gmra.mxu0 %v1179
    %v1181 = vpop.f32.mrf.mxu0
    %v1182 = vadd.f32 0.0, %v1181
    %v1183 = vand.u32 %v1137, 4294901760
    %v1184 = vsub.f32 %v1137, %v1183
    %v1185 = vand.u32 %v1184, 4294901760
    %v1186 = vsub.f32 %v1184, %v1185
    %v1187 = vand.u32 %v1186, 4294901760
    %1188 = vmatmul.f32.gmra.mxu0 %v1187
    %v1189 = vpop.f32.mrf.mxu0
    %v1190 = vadd.f32 0.0, %v1189
    %1191 = vdwg.mxu0
    %1192 = vmatpush.msra.mxu0 0.0
    %1193 = vmatpush.msra.mxu0 0.0
    %1194 = vmatpush.msra.mxu0 0.0
    %1195 = vmatpush.msra.mxu0 0.0
    %1196 = vmatpush.msra.mxu0 0.0
    %1197 = vmatpush.msra.mxu0 0.0
    %1198 = vmatpush.msra.mxu0 0.0
    %1199 = vmatpush.msra.mxu0 0.0
    %1200 = vmatpush.msra.mxu0 0.0
    %1201 = vmatpush.msra.mxu0 0.0
    %1202 = vmatpush.msra.mxu0 0.0
    %1203 = vmatpush.msra.mxu0 0.0
    %v1204 = vand.u32 %v1126, 4294901760
    %v1205 = vsub.f32 %v1126, %v1204
    %v1206 = vand.u32 %v1205, 4294901760
    %v1207 = vsub.f32 %v1205, %v1206
    %v1208 = vand.u32 %v1207, 4294901760
    %1209 = vmatpush.msra.mxu0 %v1208
    %v1210 = vand.u32 %v1125, 4294901760
    %v1211 = vsub.f32 %v1125, %v1210
    %v1212 = vand.u32 %v1211, 4294901760
    %v1213 = vsub.f32 %v1211, %v1212
    %v1214 = vand.u32 %v1213, 4294901760
    %1215 = vmatpush.msra.mxu0 %v1214
    %v1216 = vand.u32 %v1124, 4294901760
    %v1217 = vsub.f32 %v1124, %v1216
    %v1218 = vand.u32 %v1217, 4294901760
    %v1219 = vsub.f32 %v1217, %v1218
    %v1220 = vand.u32 %v1219, 4294901760
    %1221 = vmatpush.msra.mxu0 %v1220
    %v1222 = vand.u32 %v1123, 4294901760
    %v1223 = vsub.f32 %v1123, %v1222
    %v1224 = vand.u32 %v1223, 4294901760
    %v1225 = vsub.f32 %v1223, %v1224
    %v1226 = vand.u32 %v1225, 4294901760
    %1227 = vmatpush.msra.mxu0 %v1226
    %v1228 = vand.u32 %v1128, 4294901760
    %1229 = vmatmul.f32.gmra.mxu0 %v1228
    %v1230 = vpop.f32.mrf.mxu0
    %v1231 = vadd.f32 %v1166, %v1230
    %v1232 = vand.u32 %v1131, 4294901760
    %1233 = vmatmul.f32.gmra.mxu0 %v1232
    %v1234 = vpop.f32.mrf.mxu0
    %v1235 = vadd.f32 %v1174, %v1234
    %v1236 = vand.u32 %v1134, 4294901760
    %1237 = vmatmul.f32.gmra.mxu0 %v1236
    %v1238 = vpop.f32.mrf.mxu0
    %v1239 = vadd.f32 %v1182, %v1238
    %v1240 = vand.u32 %v1137, 4294901760
    %1241 = vmatmul.f32.gmra.mxu0 %v1240
    %v1242 = vpop.f32.mrf.mxu0
    %v1243 = vadd.f32 %v1190, %v1242
    %1244 = vdwg.mxu0
    %1245 = vmatpush.msra.mxu0 0.0
    %1246 = vmatpush.msra.mxu0 0.0
    %1247 = vmatpush.msra.mxu0 0.0
    %1248 = vmatpush.msra.mxu0 0.0
    %1249 = vmatpush.msra.mxu0 0.0
    %1250 = vmatpush.msra.mxu0 0.0
    %1251 = vmatpush.msra.mxu0 0.0
    %1252 = vmatpush.msra.mxu0 0.0
    %1253 = vmatpush.msra.mxu0 0.0
    %1254 = vmatpush.msra.mxu0 0.0
    %1255 = vmatpush.msra.mxu0 0.0
    %1256 = vmatpush.msra.mxu0 0.0
    %v1257 = vand.u32 %v1126, 4294901760
    %v1258 = vsub.f32 %v1126, %v1257
    %1259 = vmatpush.msra.mxu0 %v1258
    %v1260 = vand.u32 %v1125, 4294901760
    %v1261 = vsub.f32 %v1125, %v1260
    %1262 = vmatpush.msra.mxu0 %v1261
    %v1263 = vand.u32 %v1124, 4294901760
    %v1264 = vsub.f32 %v1124, %v1263
    %1265 = vmatpush.msra.mxu0 %v1264
    %v1266 = vand.u32 %v1123, 4294901760
    %v1267 = vsub.f32 %v1123, %v1266
    %1268 = vmatpush.msra.mxu0 %v1267
    %v1269 = vand.u32 %v1128, 4294901760
    %v1270 = vsub.f32 %v1128, %v1269
    %1271 = vmatmul.f32.gmra.mxu0 %v1270
    %v1272 = vpop.f32.mrf.mxu0
    %v1273 = vadd.f32 %v1231, %v1272
    %v1274 = vand.u32 %v1131, 4294901760
    %v1275 = vsub.f32 %v1131, %v1274
    %1276 = vmatmul.f32.gmra.mxu0 %v1275
    %v1277 = vpop.f32.mrf.mxu0
    %v1278 = vadd.f32 %v1235, %v1277
    %v1279 = vand.u32 %v1134, 4294901760
    %v1280 = vsub.f32 %v1134, %v1279
    %1281 = vmatmul.f32.gmra.mxu0 %v1280
    %v1282 = vpop.f32.mrf.mxu0
    %v1283 = vadd.f32 %v1239, %v1282
    %v1284 = vand.u32 %v1137, 4294901760
    %v1285 = vsub.f32 %v1137, %v1284
    %1286 = vmatmul.f32.gmra.mxu0 %v1285
    %v1287 = vpop.f32.mrf.mxu0
    %v1288 = vadd.f32 %v1243, %v1287
    %1289 = vdwg.mxu0
    %1290 = vmatpush.msra.mxu0 0.0
    %1291 = vmatpush.msra.mxu0 0.0
    %1292 = vmatpush.msra.mxu0 0.0
    %1293 = vmatpush.msra.mxu0 0.0
    %1294 = vmatpush.msra.mxu0 0.0
    %1295 = vmatpush.msra.mxu0 0.0
    %1296 = vmatpush.msra.mxu0 0.0
    %1297 = vmatpush.msra.mxu0 0.0
    %1298 = vmatpush.msra.mxu0 0.0
    %1299 = vmatpush.msra.mxu0 0.0
    %1300 = vmatpush.msra.mxu0 0.0
    %1301 = vmatpush.msra.mxu0 0.0
    %v1302 = vand.u32 %v1126, 4294901760
    %1303 = vmatpush.msra.mxu0 %v1302
    %v1304 = vand.u32 %v1125, 4294901760
    %1305 = vmatpush.msra.mxu0 %v1304
    %v1306 = vand.u32 %v1124, 4294901760
    %1307 = vmatpush.msra.mxu0 %v1306
    %v1308 = vand.u32 %v1123, 4294901760
    %1309 = vmatpush.msra.mxu0 %v1308
    %v1310 = vand.u32 %v1128, 4294901760
    %v1311 = vsub.f32 %v1128, %v1310
    %v1312 = vand.u32 %v1311, 4294901760
    %1313 = vmatmul.f32.gmra.mxu0 %v1312
    %v1314 = vpop.f32.mrf.mxu0
    %v1315 = vadd.f32 %v1273, %v1314
    %v1316 = vand.u32 %v1131, 4294901760
    %v1317 = vsub.f32 %v1131, %v1316
    %v1318 = vand.u32 %v1317, 4294901760
    %1319 = vmatmul.f32.gmra.mxu0 %v1318
    %v1320 = vpop.f32.mrf.mxu0
    %v1321 = vadd.f32 %v1278, %v1320
    %v1322 = vand.u32 %v1134, 4294901760
    %v1323 = vsub.f32 %v1134, %v1322
    %v1324 = vand.u32 %v1323, 4294901760
    %1325 = vmatmul.f32.gmra.mxu0 %v1324
    %v1326 = vpop.f32.mrf.mxu0
    %v1327 = vadd.f32 %v1283, %v1326
    %v1328 = vand.u32 %v1137, 4294901760
    %v1329 = vsub.f32 %v1137, %v1328
    %v1330 = vand.u32 %v1329, 4294901760
    %1331 = vmatmul.f32.gmra.mxu0 %v1330
    %v1332 = vpop.f32.mrf.mxu0
    %v1333 = vadd.f32 %v1288, %v1332
    %1334 = vdwg.mxu0
    %1335 = vmatpush.msra.mxu0 0.0
    %1336 = vmatpush.msra.mxu0 0.0
    %1337 = vmatpush.msra.mxu0 0.0
    %1338 = vmatpush.msra.mxu0 0.0
    %1339 = vmatpush.msra.mxu0 0.0
    %1340 = vmatpush.msra.mxu0 0.0
    %1341 = vmatpush.msra.mxu0 0.0
    %1342 = vmatpush.msra.mxu0 0.0
    %1343 = vmatpush.msra.mxu0 0.0
    %1344 = vmatpush.msra.mxu0 0.0
    %1345 = vmatpush.msra.mxu0 0.0
    %1346 = vmatpush.msra.mxu0 0.0
    %v1347 = vand.u32 %v1126, 4294901760
    %v1348 = vsub.f32 %v1126, %v1347
    %v1349 = vand.u32 %v1348, 4294901760
    %1350 = vmatpush.msra.mxu0 %v1349
    %v1351 = vand.u32 %v1125, 4294901760
    %v1352 = vsub.f32 %v1125, %v1351
    %v1353 = vand.u32 %v1352, 4294901760
    %1354 = vmatpush.msra.mxu0 %v1353
    %v1355 = vand.u32 %v1124, 4294901760
    %v1356 = vsub.f32 %v1124, %v1355
    %v1357 = vand.u32 %v1356, 4294901760
    %1358 = vmatpush.msra.mxu0 %v1357
    %v1359 = vand.u32 %v1123, 4294901760
    %v1360 = vsub.f32 %v1123, %v1359
    %v1361 = vand.u32 %v1360, 4294901760
    %1362 = vmatpush.msra.mxu0 %v1361
    %v1363 = vand.u32 %v1128, 4294901760
    %1364 = vmatmul.f32.gmra.mxu0 %v1363
    %v1365 = vpop.f32.mrf.mxu0
    %v1366 = vadd.f32 %v1315, %v1365
    %v1367 = vand.u32 %v1131, 4294901760
    %1368 = vmatmul.f32.gmra.mxu0 %v1367
    %v1369 = vpop.f32.mrf.mxu0
    %v1370 = vadd.f32 %v1321, %v1369
    %v1371 = vand.u32 %v1134, 4294901760
    %1372 = vmatmul.f32.gmra.mxu0 %v1371
    %v1373 = vpop.f32.mrf.mxu0
    %v1374 = vadd.f32 %v1327, %v1373
    %v1375 = vand.u32 %v1137, 4294901760
    %1376 = vmatmul.f32.gmra.mxu0 %v1375
    %v1377 = vpop.f32.mrf.mxu0
    %v1378 = vadd.f32 %v1333, %v1377
    %1379 = vdwg.mxu0
    %1380 = vmatpush.msra.mxu0 0.0
    %1381 = vmatpush.msra.mxu0 0.0
    %1382 = vmatpush.msra.mxu0 0.0
    %1383 = vmatpush.msra.mxu0 0.0
    %1384 = vmatpush.msra.mxu0 0.0
    %1385 = vmatpush.msra.mxu0 0.0
    %1386 = vmatpush.msra.mxu0 0.0
    %1387 = vmatpush.msra.mxu0 0.0
    %1388 = vmatpush.msra.mxu0 0.0
    %1389 = vmatpush.msra.mxu0 0.0
    %1390 = vmatpush.msra.mxu0 0.0
    %1391 = vmatpush.msra.mxu0 0.0
    %v1392 = vand.u32 %v1126, 4294901760
    %1393 = vmatpush.msra.mxu0 %v1392
    %v1394 = vand.u32 %v1125, 4294901760
    %1395 = vmatpush.msra.mxu0 %v1394
    %v1396 = vand.u32 %v1124, 4294901760
    %1397 = vmatpush.msra.mxu0 %v1396
    %v1398 = vand.u32 %v1123, 4294901760
    %1399 = vmatpush.msra.mxu0 %v1398
    %v1400 = vand.u32 %v1128, 4294901760
    %1401 = vmatmul.f32.gmra.mxu0 %v1400
    %v1402 = vpop.f32.mrf.mxu0
    %v1403 = vadd.f32 %v1366, %v1402
    %v1404 = vand.u32 %v1131, 4294901760
    %1405 = vmatmul.f32.gmra.mxu0 %v1404
    %v1406 = vpop.f32.mrf.mxu0
    %v1407 = vadd.f32 %v1370, %v1406
    %v1408 = vand.u32 %v1134, 4294901760
    %1409 = vmatmul.f32.gmra.mxu0 %v1408
    %v1410 = vpop.f32.mrf.mxu0
    %v1411 = vadd.f32 %v1374, %v1410
    %v1412 = vand.u32 %v1137, 4294901760
    %1413 = vmatmul.f32.gmra.mxu0 %v1412
    %v1414 = vpop.f32.mrf.mxu0
    %v1415 = vadd.f32 %v1378, %v1414
    %1416 = vdwg.mxu0
    %v1418 = vsel %vm76, %v353, 0
    %v1421 = vsel %vm76, %v357, 0
    %v1424 = vsel %vm76, %v361, 0
    %v1427 = vsel %vm76, %v365, 0
    %1429 = vmatpush.msra.mxu0 0.0
    %1430 = vmatpush.msra.mxu0 0.0
    %1431 = vmatpush.msra.mxu0 0.0
    %1432 = vmatpush.msra.mxu0 0.0
    %1433 = vmatpush.msra.mxu0 0.0
    %1434 = vmatpush.msra.mxu0 0.0
    %1435 = vmatpush.msra.mxu0 0.0
    %1436 = vmatpush.msra.mxu0 0.0
    %1437 = vmatpush.msra.mxu0 0.0
    %1438 = vmatpush.msra.mxu0 0.0
    %1439 = vmatpush.msra.mxu0 0.0
    %1440 = vmatpush.msra.mxu0 0.0
    %v1441 = vand.u32 %v715, 4294901760
    %1442 = vmatpush.msra.mxu0 %v1441
    %v1443 = vand.u32 %v711, 4294901760
    %1444 = vmatpush.msra.mxu0 %v1443
    %v1445 = vand.u32 %v707, 4294901760
    %1446 = vmatpush.msra.mxu0 %v1445
    %v1447 = vand.u32 %v703, 4294901760
    %1448 = vmatpush.msra.mxu0 %v1447
    %v1449 = vand.u32 %v1418, 4294901760
    %v1450 = vsub.f32 %v1418, %v1449
    %v1451 = vand.u32 %v1450, 4294901760
    %v1452 = vsub.f32 %v1450, %v1451
    %v1453 = vand.u32 %v1452, 4294901760
    %1454 = vmatmul.f32.gmra.mxu0 %v1453
    %v1455 = vpop.f32.mrf.mxu0
    %v1456 = vadd.f32 0.0, %v1455
    %v1457 = vand.u32 %v1421, 4294901760
    %v1458 = vsub.f32 %v1421, %v1457
    %v1459 = vand.u32 %v1458, 4294901760
    %v1460 = vsub.f32 %v1458, %v1459
    %v1461 = vand.u32 %v1460, 4294901760
    %1462 = vmatmul.f32.gmra.mxu0 %v1461
    %v1463 = vpop.f32.mrf.mxu0
    %v1464 = vadd.f32 0.0, %v1463
    %v1465 = vand.u32 %v1424, 4294901760
    %v1466 = vsub.f32 %v1424, %v1465
    %v1467 = vand.u32 %v1466, 4294901760
    %v1468 = vsub.f32 %v1466, %v1467
    %v1469 = vand.u32 %v1468, 4294901760
    %1470 = vmatmul.f32.gmra.mxu0 %v1469
    %v1471 = vpop.f32.mrf.mxu0
    %v1472 = vadd.f32 0.0, %v1471
    %v1473 = vand.u32 %v1427, 4294901760
    %v1474 = vsub.f32 %v1427, %v1473
    %v1475 = vand.u32 %v1474, 4294901760
    %v1476 = vsub.f32 %v1474, %v1475
    %v1477 = vand.u32 %v1476, 4294901760
    %1478 = vmatmul.f32.gmra.mxu0 %v1477
    %v1479 = vpop.f32.mrf.mxu0
    %v1480 = vadd.f32 0.0, %v1479
    %1481 = vdwg.mxu0
    %1482 = vmatpush.msra.mxu0 0.0
    %1483 = vmatpush.msra.mxu0 0.0
    %1484 = vmatpush.msra.mxu0 0.0
    %1485 = vmatpush.msra.mxu0 0.0
    %1486 = vmatpush.msra.mxu0 0.0
    %1487 = vmatpush.msra.mxu0 0.0
    %1488 = vmatpush.msra.mxu0 0.0
    %1489 = vmatpush.msra.mxu0 0.0
    %1490 = vmatpush.msra.mxu0 0.0
    %1491 = vmatpush.msra.mxu0 0.0
    %1492 = vmatpush.msra.mxu0 0.0
    %1493 = vmatpush.msra.mxu0 0.0
    %v1494 = vand.u32 %v715, 4294901760
    %v1495 = vsub.f32 %v715, %v1494
    %v1496 = vand.u32 %v1495, 4294901760
    %v1497 = vsub.f32 %v1495, %v1496
    %v1498 = vand.u32 %v1497, 4294901760
    %1499 = vmatpush.msra.mxu0 %v1498
    %v1500 = vand.u32 %v711, 4294901760
    %v1501 = vsub.f32 %v711, %v1500
    %v1502 = vand.u32 %v1501, 4294901760
    %v1503 = vsub.f32 %v1501, %v1502
    %v1504 = vand.u32 %v1503, 4294901760
    %1505 = vmatpush.msra.mxu0 %v1504
    %v1506 = vand.u32 %v707, 4294901760
    %v1507 = vsub.f32 %v707, %v1506
    %v1508 = vand.u32 %v1507, 4294901760
    %v1509 = vsub.f32 %v1507, %v1508
    %v1510 = vand.u32 %v1509, 4294901760
    %1511 = vmatpush.msra.mxu0 %v1510
    %v1512 = vand.u32 %v703, 4294901760
    %v1513 = vsub.f32 %v703, %v1512
    %v1514 = vand.u32 %v1513, 4294901760
    %v1515 = vsub.f32 %v1513, %v1514
    %v1516 = vand.u32 %v1515, 4294901760
    %1517 = vmatpush.msra.mxu0 %v1516
    %v1518 = vand.u32 %v1418, 4294901760
    %1519 = vmatmul.f32.gmra.mxu0 %v1518
    %v1520 = vpop.f32.mrf.mxu0
    %v1521 = vadd.f32 %v1456, %v1520
    %v1522 = vand.u32 %v1421, 4294901760
    %1523 = vmatmul.f32.gmra.mxu0 %v1522
    %v1524 = vpop.f32.mrf.mxu0
    %v1525 = vadd.f32 %v1464, %v1524
    %v1526 = vand.u32 %v1424, 4294901760
    %1527 = vmatmul.f32.gmra.mxu0 %v1526
    %v1528 = vpop.f32.mrf.mxu0
    %v1529 = vadd.f32 %v1472, %v1528
    %v1530 = vand.u32 %v1427, 4294901760
    %1531 = vmatmul.f32.gmra.mxu0 %v1530
    %v1532 = vpop.f32.mrf.mxu0
    %v1533 = vadd.f32 %v1480, %v1532
    %1534 = vdwg.mxu0
    %1535 = vmatpush.msra.mxu0 0.0
    %1536 = vmatpush.msra.mxu0 0.0
    %1537 = vmatpush.msra.mxu0 0.0
    %1538 = vmatpush.msra.mxu0 0.0
    %1539 = vmatpush.msra.mxu0 0.0
    %1540 = vmatpush.msra.mxu0 0.0
    %1541 = vmatpush.msra.mxu0 0.0
    %1542 = vmatpush.msra.mxu0 0.0
    %1543 = vmatpush.msra.mxu0 0.0
    %1544 = vmatpush.msra.mxu0 0.0
    %1545 = vmatpush.msra.mxu0 0.0
    %1546 = vmatpush.msra.mxu0 0.0
    %v1547 = vand.u32 %v715, 4294901760
    %v1548 = vsub.f32 %v715, %v1547
    %1549 = vmatpush.msra.mxu0 %v1548
    %v1550 = vand.u32 %v711, 4294901760
    %v1551 = vsub.f32 %v711, %v1550
    %1552 = vmatpush.msra.mxu0 %v1551
    %v1553 = vand.u32 %v707, 4294901760
    %v1554 = vsub.f32 %v707, %v1553
    %1555 = vmatpush.msra.mxu0 %v1554
    %v1556 = vand.u32 %v703, 4294901760
    %v1557 = vsub.f32 %v703, %v1556
    %1558 = vmatpush.msra.mxu0 %v1557
    %v1559 = vand.u32 %v1418, 4294901760
    %v1560 = vsub.f32 %v1418, %v1559
    %1561 = vmatmul.f32.gmra.mxu0 %v1560
    %v1562 = vpop.f32.mrf.mxu0
    %v1563 = vadd.f32 %v1521, %v1562
    %v1564 = vand.u32 %v1421, 4294901760
    %v1565 = vsub.f32 %v1421, %v1564
    %1566 = vmatmul.f32.gmra.mxu0 %v1565
    %v1567 = vpop.f32.mrf.mxu0
    %v1568 = vadd.f32 %v1525, %v1567
    %v1569 = vand.u32 %v1424, 4294901760
    %v1570 = vsub.f32 %v1424, %v1569
    %1571 = vmatmul.f32.gmra.mxu0 %v1570
    %v1572 = vpop.f32.mrf.mxu0
    %v1573 = vadd.f32 %v1529, %v1572
    %v1574 = vand.u32 %v1427, 4294901760
    %v1575 = vsub.f32 %v1427, %v1574
    %1576 = vmatmul.f32.gmra.mxu0 %v1575
    %v1577 = vpop.f32.mrf.mxu0
    %v1578 = vadd.f32 %v1533, %v1577
    %1579 = vdwg.mxu0
    %1580 = vmatpush.msra.mxu0 0.0
    %1581 = vmatpush.msra.mxu0 0.0
    %1582 = vmatpush.msra.mxu0 0.0
    %1583 = vmatpush.msra.mxu0 0.0
    %1584 = vmatpush.msra.mxu0 0.0
    %1585 = vmatpush.msra.mxu0 0.0
    %1586 = vmatpush.msra.mxu0 0.0
    %1587 = vmatpush.msra.mxu0 0.0
    %1588 = vmatpush.msra.mxu0 0.0
    %1589 = vmatpush.msra.mxu0 0.0
    %1590 = vmatpush.msra.mxu0 0.0
    %1591 = vmatpush.msra.mxu0 0.0
    %v1592 = vand.u32 %v715, 4294901760
    %1593 = vmatpush.msra.mxu0 %v1592
    %v1594 = vand.u32 %v711, 4294901760
    %1595 = vmatpush.msra.mxu0 %v1594
    %v1596 = vand.u32 %v707, 4294901760
    %1597 = vmatpush.msra.mxu0 %v1596
    %v1598 = vand.u32 %v703, 4294901760
    %1599 = vmatpush.msra.mxu0 %v1598
    %v1600 = vand.u32 %v1418, 4294901760
    %v1601 = vsub.f32 %v1418, %v1600
    %v1602 = vand.u32 %v1601, 4294901760
    %1603 = vmatmul.f32.gmra.mxu0 %v1602
    %v1604 = vpop.f32.mrf.mxu0
    %v1605 = vadd.f32 %v1563, %v1604
    %v1606 = vand.u32 %v1421, 4294901760
    %v1607 = vsub.f32 %v1421, %v1606
    %v1608 = vand.u32 %v1607, 4294901760
    %1609 = vmatmul.f32.gmra.mxu0 %v1608
    %v1610 = vpop.f32.mrf.mxu0
    %v1611 = vadd.f32 %v1568, %v1610
    %v1612 = vand.u32 %v1424, 4294901760
    %v1613 = vsub.f32 %v1424, %v1612
    %v1614 = vand.u32 %v1613, 4294901760
    %1615 = vmatmul.f32.gmra.mxu0 %v1614
    %v1616 = vpop.f32.mrf.mxu0
    %v1617 = vadd.f32 %v1573, %v1616
    %v1618 = vand.u32 %v1427, 4294901760
    %v1619 = vsub.f32 %v1427, %v1618
    %v1620 = vand.u32 %v1619, 4294901760
    %1621 = vmatmul.f32.gmra.mxu0 %v1620
    %v1622 = vpop.f32.mrf.mxu0
    %v1623 = vadd.f32 %v1578, %v1622
    %1624 = vdwg.mxu0
    %1625 = vmatpush.msra.mxu0 0.0
    %1626 = vmatpush.msra.mxu0 0.0
    %1627 = vmatpush.msra.mxu0 0.0
    %1628 = vmatpush.msra.mxu0 0.0
    %1629 = vmatpush.msra.mxu0 0.0
    %1630 = vmatpush.msra.mxu0 0.0
    %1631 = vmatpush.msra.mxu0 0.0
    %1632 = vmatpush.msra.mxu0 0.0
    %1633 = vmatpush.msra.mxu0 0.0
    %1634 = vmatpush.msra.mxu0 0.0
    %1635 = vmatpush.msra.mxu0 0.0
    %1636 = vmatpush.msra.mxu0 0.0
    %v1637 = vand.u32 %v715, 4294901760
    %v1638 = vsub.f32 %v715, %v1637
    %v1639 = vand.u32 %v1638, 4294901760
    %1640 = vmatpush.msra.mxu0 %v1639
    %v1641 = vand.u32 %v711, 4294901760
    %v1642 = vsub.f32 %v711, %v1641
    %v1643 = vand.u32 %v1642, 4294901760
    %1644 = vmatpush.msra.mxu0 %v1643
    %v1645 = vand.u32 %v707, 4294901760
    %v1646 = vsub.f32 %v707, %v1645
    %v1647 = vand.u32 %v1646, 4294901760
    %1648 = vmatpush.msra.mxu0 %v1647
    %v1649 = vand.u32 %v703, 4294901760
    %v1650 = vsub.f32 %v703, %v1649
    %v1651 = vand.u32 %v1650, 4294901760
    %1652 = vmatpush.msra.mxu0 %v1651
    %v1653 = vand.u32 %v1418, 4294901760
    %1654 = vmatmul.f32.gmra.mxu0 %v1653
    %v1655 = vpop.f32.mrf.mxu0
    %v1656 = vadd.f32 %v1605, %v1655
    %v1657 = vand.u32 %v1421, 4294901760
    %1658 = vmatmul.f32.gmra.mxu0 %v1657
    %v1659 = vpop.f32.mrf.mxu0
    %v1660 = vadd.f32 %v1611, %v1659
    %v1661 = vand.u32 %v1424, 4294901760
    %1662 = vmatmul.f32.gmra.mxu0 %v1661
    %v1663 = vpop.f32.mrf.mxu0
    %v1664 = vadd.f32 %v1617, %v1663
    %v1665 = vand.u32 %v1427, 4294901760
    %1666 = vmatmul.f32.gmra.mxu0 %v1665
    %v1667 = vpop.f32.mrf.mxu0
    %v1668 = vadd.f32 %v1623, %v1667
    %1669 = vdwg.mxu0
    %1670 = vmatpush.msra.mxu0 0.0
    %1671 = vmatpush.msra.mxu0 0.0
    %1672 = vmatpush.msra.mxu0 0.0
    %1673 = vmatpush.msra.mxu0 0.0
    %1674 = vmatpush.msra.mxu0 0.0
    %1675 = vmatpush.msra.mxu0 0.0
    %1676 = vmatpush.msra.mxu0 0.0
    %1677 = vmatpush.msra.mxu0 0.0
    %1678 = vmatpush.msra.mxu0 0.0
    %1679 = vmatpush.msra.mxu0 0.0
    %1680 = vmatpush.msra.mxu0 0.0
    %1681 = vmatpush.msra.mxu0 0.0
    %v1682 = vand.u32 %v715, 4294901760
    %1683 = vmatpush.msra.mxu0 %v1682
    %v1684 = vand.u32 %v711, 4294901760
    %1685 = vmatpush.msra.mxu0 %v1684
    %v1686 = vand.u32 %v707, 4294901760
    %1687 = vmatpush.msra.mxu0 %v1686
    %v1688 = vand.u32 %v703, 4294901760
    %1689 = vmatpush.msra.mxu0 %v1688
    %v1690 = vand.u32 %v1418, 4294901760
    %1691 = vmatmul.f32.gmra.mxu0 %v1690
    %v1692 = vpop.f32.mrf.mxu0
    %v1693 = vadd.f32 %v1656, %v1692
    %v1694 = vand.u32 %v1421, 4294901760
    %1695 = vmatmul.f32.gmra.mxu0 %v1694
    %v1696 = vpop.f32.mrf.mxu0
    %v1697 = vadd.f32 %v1660, %v1696
    %v1698 = vand.u32 %v1424, 4294901760
    %1699 = vmatmul.f32.gmra.mxu0 %v1698
    %v1700 = vpop.f32.mrf.mxu0
    %v1701 = vadd.f32 %v1664, %v1700
    %v1702 = vand.u32 %v1427, 4294901760
    %1703 = vmatmul.f32.gmra.mxu0 %v1702
    %v1704 = vpop.f32.mrf.mxu0
    %v1705 = vadd.f32 %v1668, %v1704
    %1706 = vdwg.mxu0
    %v1708 = vsel %vm76, %v1053, 0
    %v1711 = vsel %vm76, %v1057, 0
    %v1714 = vsel %vm76, %v1061, 0
    %v1717 = vsel %vm76, %v1065, 0
    %1719 = vmatpush.msra.mxu0 0.0
    %1720 = vmatpush.msra.mxu0 0.0
    %1721 = vmatpush.msra.mxu0 0.0
    %1722 = vmatpush.msra.mxu0 0.0
    %1723 = vmatpush.msra.mxu0 0.0
    %1724 = vmatpush.msra.mxu0 0.0
    %1725 = vmatpush.msra.mxu0 0.0
    %1726 = vmatpush.msra.mxu0 0.0
    %1727 = vmatpush.msra.mxu0 0.0
    %1728 = vmatpush.msra.mxu0 0.0
    %1729 = vmatpush.msra.mxu0 0.0
    %1730 = vmatpush.msra.mxu0 0.0
    %v1731 = vand.u32 %v1415, 4294901760
    %1732 = vmatpush.msra.mxu0 %v1731
    %v1733 = vand.u32 %v1411, 4294901760
    %1734 = vmatpush.msra.mxu0 %v1733
    %v1735 = vand.u32 %v1407, 4294901760
    %1736 = vmatpush.msra.mxu0 %v1735
    %v1737 = vand.u32 %v1403, 4294901760
    %1738 = vmatpush.msra.mxu0 %v1737
    %v1739 = vand.u32 %v1708, 4294901760
    %v1740 = vsub.f32 %v1708, %v1739
    %v1741 = vand.u32 %v1740, 4294901760
    %v1742 = vsub.f32 %v1740, %v1741
    %v1743 = vand.u32 %v1742, 4294901760
    %1744 = vmatmul.f32.gmra.mxu0 %v1743
    %v1745 = vpop.f32.mrf.mxu0
    %v1746 = vadd.f32 0.0, %v1745
    %v1747 = vand.u32 %v1711, 4294901760
    %v1748 = vsub.f32 %v1711, %v1747
    %v1749 = vand.u32 %v1748, 4294901760
    %v1750 = vsub.f32 %v1748, %v1749
    %v1751 = vand.u32 %v1750, 4294901760
    %1752 = vmatmul.f32.gmra.mxu0 %v1751
    %v1753 = vpop.f32.mrf.mxu0
    %v1754 = vadd.f32 0.0, %v1753
    %v1755 = vand.u32 %v1714, 4294901760
    %v1756 = vsub.f32 %v1714, %v1755
    %v1757 = vand.u32 %v1756, 4294901760
    %v1758 = vsub.f32 %v1756, %v1757
    %v1759 = vand.u32 %v1758, 4294901760
    %1760 = vmatmul.f32.gmra.mxu0 %v1759
    %v1761 = vpop.f32.mrf.mxu0
    %v1762 = vadd.f32 0.0, %v1761
    %v1763 = vand.u32 %v1717, 4294901760
    %v1764 = vsub.f32 %v1717, %v1763
    %v1765 = vand.u32 %v1764, 4294901760
    %v1766 = vsub.f32 %v1764, %v1765
    %v1767 = vand.u32 %v1766, 4294901760
    %1768 = vmatmul.f32.gmra.mxu0 %v1767
    %v1769 = vpop.f32.mrf.mxu0
    %v1770 = vadd.f32 0.0, %v1769
    %1771 = vdwg.mxu0
    %1772 = vmatpush.msra.mxu0 0.0
    %1773 = vmatpush.msra.mxu0 0.0
    %1774 = vmatpush.msra.mxu0 0.0
    %1775 = vmatpush.msra.mxu0 0.0
    %1776 = vmatpush.msra.mxu0 0.0
    %1777 = vmatpush.msra.mxu0 0.0
    %1778 = vmatpush.msra.mxu0 0.0
    %1779 = vmatpush.msra.mxu0 0.0
    %1780 = vmatpush.msra.mxu0 0.0
    %1781 = vmatpush.msra.mxu0 0.0
    %1782 = vmatpush.msra.mxu0 0.0
    %1783 = vmatpush.msra.mxu0 0.0
    %v1784 = vand.u32 %v1415, 4294901760
    %v1785 = vsub.f32 %v1415, %v1784
    %v1786 = vand.u32 %v1785, 4294901760
    %v1787 = vsub.f32 %v1785, %v1786
    %v1788 = vand.u32 %v1787, 4294901760
    %1789 = vmatpush.msra.mxu0 %v1788
    %v1790 = vand.u32 %v1411, 4294901760
    %v1791 = vsub.f32 %v1411, %v1790
    %v1792 = vand.u32 %v1791, 4294901760
    %v1793 = vsub.f32 %v1791, %v1792
    %v1794 = vand.u32 %v1793, 4294901760
    %1795 = vmatpush.msra.mxu0 %v1794
    %v1796 = vand.u32 %v1407, 4294901760
    %v1797 = vsub.f32 %v1407, %v1796
    %v1798 = vand.u32 %v1797, 4294901760
    %v1799 = vsub.f32 %v1797, %v1798
    %v1800 = vand.u32 %v1799, 4294901760
    %1801 = vmatpush.msra.mxu0 %v1800
    %v1802 = vand.u32 %v1403, 4294901760
    %v1803 = vsub.f32 %v1403, %v1802
    %v1804 = vand.u32 %v1803, 4294901760
    %v1805 = vsub.f32 %v1803, %v1804
    %v1806 = vand.u32 %v1805, 4294901760
    %1807 = vmatpush.msra.mxu0 %v1806
    %v1808 = vand.u32 %v1708, 4294901760
    %1809 = vmatmul.f32.gmra.mxu0 %v1808
    %v1810 = vpop.f32.mrf.mxu0
    %v1811 = vadd.f32 %v1746, %v1810
    %v1812 = vand.u32 %v1711, 4294901760
    %1813 = vmatmul.f32.gmra.mxu0 %v1812
    %v1814 = vpop.f32.mrf.mxu0
    %v1815 = vadd.f32 %v1754, %v1814
    %v1816 = vand.u32 %v1714, 4294901760
    %1817 = vmatmul.f32.gmra.mxu0 %v1816
    %v1818 = vpop.f32.mrf.mxu0
    %v1819 = vadd.f32 %v1762, %v1818
    %v1820 = vand.u32 %v1717, 4294901760
    %1821 = vmatmul.f32.gmra.mxu0 %v1820
    %v1822 = vpop.f32.mrf.mxu0
    %v1823 = vadd.f32 %v1770, %v1822
    %1824 = vdwg.mxu0
    %1825 = vmatpush.msra.mxu0 0.0
    %1826 = vmatpush.msra.mxu0 0.0
    %1827 = vmatpush.msra.mxu0 0.0
    %1828 = vmatpush.msra.mxu0 0.0
    %1829 = vmatpush.msra.mxu0 0.0
    %1830 = vmatpush.msra.mxu0 0.0
    %1831 = vmatpush.msra.mxu0 0.0
    %1832 = vmatpush.msra.mxu0 0.0
    %1833 = vmatpush.msra.mxu0 0.0
    %1834 = vmatpush.msra.mxu0 0.0
    %1835 = vmatpush.msra.mxu0 0.0
    %1836 = vmatpush.msra.mxu0 0.0
    %v1837 = vand.u32 %v1415, 4294901760
    %v1838 = vsub.f32 %v1415, %v1837
    %1839 = vmatpush.msra.mxu0 %v1838
    %v1840 = vand.u32 %v1411, 4294901760
    %v1841 = vsub.f32 %v1411, %v1840
    %1842 = vmatpush.msra.mxu0 %v1841
    %v1843 = vand.u32 %v1407, 4294901760
    %v1844 = vsub.f32 %v1407, %v1843
    %1845 = vmatpush.msra.mxu0 %v1844
    %v1846 = vand.u32 %v1403, 4294901760
    %v1847 = vsub.f32 %v1403, %v1846
    %1848 = vmatpush.msra.mxu0 %v1847
    %v1849 = vand.u32 %v1708, 4294901760
    %v1850 = vsub.f32 %v1708, %v1849
    %1851 = vmatmul.f32.gmra.mxu0 %v1850
    %v1852 = vpop.f32.mrf.mxu0
    %v1853 = vadd.f32 %v1811, %v1852
    %v1854 = vand.u32 %v1711, 4294901760
    %v1855 = vsub.f32 %v1711, %v1854
    %1856 = vmatmul.f32.gmra.mxu0 %v1855
    %v1857 = vpop.f32.mrf.mxu0
    %v1858 = vadd.f32 %v1815, %v1857
    %v1859 = vand.u32 %v1714, 4294901760
    %v1860 = vsub.f32 %v1714, %v1859
    %1861 = vmatmul.f32.gmra.mxu0 %v1860
    %v1862 = vpop.f32.mrf.mxu0
    %v1863 = vadd.f32 %v1819, %v1862
    %v1864 = vand.u32 %v1717, 4294901760
    %v1865 = vsub.f32 %v1717, %v1864
    %1866 = vmatmul.f32.gmra.mxu0 %v1865
    %v1867 = vpop.f32.mrf.mxu0
    %v1868 = vadd.f32 %v1823, %v1867
    %1869 = vdwg.mxu0
    %1870 = vmatpush.msra.mxu0 0.0
    %1871 = vmatpush.msra.mxu0 0.0
    %1872 = vmatpush.msra.mxu0 0.0
    %1873 = vmatpush.msra.mxu0 0.0
    %1874 = vmatpush.msra.mxu0 0.0
    %1875 = vmatpush.msra.mxu0 0.0
    %1876 = vmatpush.msra.mxu0 0.0
    %1877 = vmatpush.msra.mxu0 0.0
    %1878 = vmatpush.msra.mxu0 0.0
    %1879 = vmatpush.msra.mxu0 0.0
    %1880 = vmatpush.msra.mxu0 0.0
    %1881 = vmatpush.msra.mxu0 0.0
    %v1882 = vand.u32 %v1415, 4294901760
    %1883 = vmatpush.msra.mxu0 %v1882
    %v1884 = vand.u32 %v1411, 4294901760
    %1885 = vmatpush.msra.mxu0 %v1884
    %v1886 = vand.u32 %v1407, 4294901760
    %1887 = vmatpush.msra.mxu0 %v1886
    %v1888 = vand.u32 %v1403, 4294901760
    %1889 = vmatpush.msra.mxu0 %v1888
    %v1890 = vand.u32 %v1708, 4294901760
    %v1891 = vsub.f32 %v1708, %v1890
    %v1892 = vand.u32 %v1891, 4294901760
    %1893 = vmatmul.f32.gmra.mxu0 %v1892
    %v1894 = vpop.f32.mrf.mxu0
    %v1895 = vadd.f32 %v1853, %v1894
    %v1896 = vand.u32 %v1711, 4294901760
    %v1897 = vsub.f32 %v1711, %v1896
    %v1898 = vand.u32 %v1897, 4294901760
    %1899 = vmatmul.f32.gmra.mxu0 %v1898
    %v1900 = vpop.f32.mrf.mxu0
    %v1901 = vadd.f32 %v1858, %v1900
    %v1902 = vand.u32 %v1714, 4294901760
    %v1903 = vsub.f32 %v1714, %v1902
    %v1904 = vand.u32 %v1903, 4294901760
    %1905 = vmatmul.f32.gmra.mxu0 %v1904
    %v1906 = vpop.f32.mrf.mxu0
    %v1907 = vadd.f32 %v1863, %v1906
    %v1908 = vand.u32 %v1717, 4294901760
    %v1909 = vsub.f32 %v1717, %v1908
    %v1910 = vand.u32 %v1909, 4294901760
    %1911 = vmatmul.f32.gmra.mxu0 %v1910
    %v1912 = vpop.f32.mrf.mxu0
    %v1913 = vadd.f32 %v1868, %v1912
    %1914 = vdwg.mxu0
    %1915 = vmatpush.msra.mxu0 0.0
    %1916 = vmatpush.msra.mxu0 0.0
    %1917 = vmatpush.msra.mxu0 0.0
    %1918 = vmatpush.msra.mxu0 0.0
    %1919 = vmatpush.msra.mxu0 0.0
    %1920 = vmatpush.msra.mxu0 0.0
    %1921 = vmatpush.msra.mxu0 0.0
    %1922 = vmatpush.msra.mxu0 0.0
    %1923 = vmatpush.msra.mxu0 0.0
    %1924 = vmatpush.msra.mxu0 0.0
    %1925 = vmatpush.msra.mxu0 0.0
    %1926 = vmatpush.msra.mxu0 0.0
    %v1927 = vand.u32 %v1415, 4294901760
    %v1928 = vsub.f32 %v1415, %v1927
    %v1929 = vand.u32 %v1928, 4294901760
    %1930 = vmatpush.msra.mxu0 %v1929
    %v1931 = vand.u32 %v1411, 4294901760
    %v1932 = vsub.f32 %v1411, %v1931
    %v1933 = vand.u32 %v1932, 4294901760
    %1934 = vmatpush.msra.mxu0 %v1933
    %v1935 = vand.u32 %v1407, 4294901760
    %v1936 = vsub.f32 %v1407, %v1935
    %v1937 = vand.u32 %v1936, 4294901760
    %1938 = vmatpush.msra.mxu0 %v1937
    %v1939 = vand.u32 %v1403, 4294901760
    %v1940 = vsub.f32 %v1403, %v1939
    %v1941 = vand.u32 %v1940, 4294901760
    %1942 = vmatpush.msra.mxu0 %v1941
    %v1943 = vand.u32 %v1708, 4294901760
    %1944 = vmatmul.f32.gmra.mxu0 %v1943
    %v1945 = vpop.f32.mrf.mxu0
    %v1946 = vadd.f32 %v1895, %v1945
    %v1947 = vand.u32 %v1711, 4294901760
    %1948 = vmatmul.f32.gmra.mxu0 %v1947
    %v1949 = vpop.f32.mrf.mxu0
    %v1950 = vadd.f32 %v1901, %v1949
    %v1951 = vand.u32 %v1714, 4294901760
    %1952 = vmatmul.f32.gmra.mxu0 %v1951
    %v1953 = vpop.f32.mrf.mxu0
    %v1954 = vadd.f32 %v1907, %v1953
    %v1955 = vand.u32 %v1717, 4294901760
    %1956 = vmatmul.f32.gmra.mxu0 %v1955
    %v1957 = vpop.f32.mrf.mxu0
    %v1958 = vadd.f32 %v1913, %v1957
    %1959 = vdwg.mxu0
    %1960 = vmatpush.msra.mxu0 0.0
    %1961 = vmatpush.msra.mxu0 0.0
    %1962 = vmatpush.msra.mxu0 0.0
    %1963 = vmatpush.msra.mxu0 0.0
    %1964 = vmatpush.msra.mxu0 0.0
    %1965 = vmatpush.msra.mxu0 0.0
    %1966 = vmatpush.msra.mxu0 0.0
    %1967 = vmatpush.msra.mxu0 0.0
    %1968 = vmatpush.msra.mxu0 0.0
    %1969 = vmatpush.msra.mxu0 0.0
    %1970 = vmatpush.msra.mxu0 0.0
    %1971 = vmatpush.msra.mxu0 0.0
    %v1972 = vand.u32 %v1415, 4294901760
    %1973 = vmatpush.msra.mxu0 %v1972
    %v1974 = vand.u32 %v1411, 4294901760
    %1975 = vmatpush.msra.mxu0 %v1974
    %v1976 = vand.u32 %v1407, 4294901760
    %1977 = vmatpush.msra.mxu0 %v1976
    %v1978 = vand.u32 %v1403, 4294901760
    %1979 = vmatpush.msra.mxu0 %v1978
    %v1980 = vand.u32 %v1708, 4294901760
    %1981 = vmatmul.f32.gmra.mxu0 %v1980
    %v1982 = vpop.f32.mrf.mxu0
    %v1983 = vadd.f32 %v1946, %v1982
    %v1984 = vand.u32 %v1711, 4294901760
    %1985 = vmatmul.f32.gmra.mxu0 %v1984
    %v1986 = vpop.f32.mrf.mxu0
    %v1987 = vadd.f32 %v1950, %v1986
    %v1988 = vand.u32 %v1714, 4294901760
    %1989 = vmatmul.f32.gmra.mxu0 %v1988
    %v1990 = vpop.f32.mrf.mxu0
    %v1991 = vadd.f32 %v1954, %v1990
    %v1992 = vand.u32 %v1717, 4294901760
    %1993 = vmatmul.f32.gmra.mxu0 %v1992
    %v1994 = vpop.f32.mrf.mxu0
    %v1995 = vadd.f32 %v1958, %v1994
    %1996 = vdwg.mxu0
    %v1998 = vsel %vm76, %v1693, 0
    %v2001 = vsel %vm76, %v1697, 0
    %v2004 = vsel %vm76, %v1701, 0
    %v2007 = vsel %vm76, %v1705, 0
    %2009 = vmatpush.msra.mxu0 0.0
    %2010 = vmatpush.msra.mxu0 0.0
    %2011 = vmatpush.msra.mxu0 0.0
    %2012 = vmatpush.msra.mxu0 0.0
    %2013 = vmatpush.msra.mxu0 0.0
    %2014 = vmatpush.msra.mxu0 0.0
    %2015 = vmatpush.msra.mxu0 0.0
    %2016 = vmatpush.msra.mxu0 0.0
    %2017 = vmatpush.msra.mxu0 0.0
    %2018 = vmatpush.msra.mxu0 0.0
    %2019 = vmatpush.msra.mxu0 0.0
    %2020 = vmatpush.msra.mxu0 0.0
    %v2021 = vand.u32 %v1995, 4294901760
    %2022 = vmatpush.msra.mxu0 %v2021
    %v2023 = vand.u32 %v1991, 4294901760
    %2024 = vmatpush.msra.mxu0 %v2023
    %v2025 = vand.u32 %v1987, 4294901760
    %2026 = vmatpush.msra.mxu0 %v2025
    %v2027 = vand.u32 %v1983, 4294901760
    %2028 = vmatpush.msra.mxu0 %v2027
    %v2029 = vand.u32 %v1998, 4294901760
    %v2030 = vsub.f32 %v1998, %v2029
    %v2031 = vand.u32 %v2030, 4294901760
    %v2032 = vsub.f32 %v2030, %v2031
    %v2033 = vand.u32 %v2032, 4294901760
    %2034 = vmatmul.f32.gmra.mxu0 %v2033
    %v2035 = vpop.f32.mrf.mxu0
    %v2036 = vadd.f32 0.0, %v2035
    %v2037 = vand.u32 %v2001, 4294901760
    %v2038 = vsub.f32 %v2001, %v2037
    %v2039 = vand.u32 %v2038, 4294901760
    %v2040 = vsub.f32 %v2038, %v2039
    %v2041 = vand.u32 %v2040, 4294901760
    %2042 = vmatmul.f32.gmra.mxu0 %v2041
    %v2043 = vpop.f32.mrf.mxu0
    %v2044 = vadd.f32 0.0, %v2043
    %v2045 = vand.u32 %v2004, 4294901760
    %v2046 = vsub.f32 %v2004, %v2045
    %v2047 = vand.u32 %v2046, 4294901760
    %v2048 = vsub.f32 %v2046, %v2047
    %v2049 = vand.u32 %v2048, 4294901760
    %2050 = vmatmul.f32.gmra.mxu0 %v2049
    %v2051 = vpop.f32.mrf.mxu0
    %v2052 = vadd.f32 0.0, %v2051
    %v2053 = vand.u32 %v2007, 4294901760
    %v2054 = vsub.f32 %v2007, %v2053
    %v2055 = vand.u32 %v2054, 4294901760
    %v2056 = vsub.f32 %v2054, %v2055
    %v2057 = vand.u32 %v2056, 4294901760
    %2058 = vmatmul.f32.gmra.mxu0 %v2057
    %v2059 = vpop.f32.mrf.mxu0
    %v2060 = vadd.f32 0.0, %v2059
    %2061 = vdwg.mxu0
    %2062 = vmatpush.msra.mxu0 0.0
    %2063 = vmatpush.msra.mxu0 0.0
    %2064 = vmatpush.msra.mxu0 0.0
    %2065 = vmatpush.msra.mxu0 0.0
    %2066 = vmatpush.msra.mxu0 0.0
    %2067 = vmatpush.msra.mxu0 0.0
    %2068 = vmatpush.msra.mxu0 0.0
    %2069 = vmatpush.msra.mxu0 0.0
    %2070 = vmatpush.msra.mxu0 0.0
    %2071 = vmatpush.msra.mxu0 0.0
    %2072 = vmatpush.msra.mxu0 0.0
    %2073 = vmatpush.msra.mxu0 0.0
    %v2074 = vand.u32 %v1995, 4294901760
    %v2075 = vsub.f32 %v1995, %v2074
    %v2076 = vand.u32 %v2075, 4294901760
    %v2077 = vsub.f32 %v2075, %v2076
    %v2078 = vand.u32 %v2077, 4294901760
    %2079 = vmatpush.msra.mxu0 %v2078
    %v2080 = vand.u32 %v1991, 4294901760
    %v2081 = vsub.f32 %v1991, %v2080
    %v2082 = vand.u32 %v2081, 4294901760
    %v2083 = vsub.f32 %v2081, %v2082
    %v2084 = vand.u32 %v2083, 4294901760
    %2085 = vmatpush.msra.mxu0 %v2084
    %v2086 = vand.u32 %v1987, 4294901760
    %v2087 = vsub.f32 %v1987, %v2086
    %v2088 = vand.u32 %v2087, 4294901760
    %v2089 = vsub.f32 %v2087, %v2088
    %v2090 = vand.u32 %v2089, 4294901760
    %2091 = vmatpush.msra.mxu0 %v2090
    %v2092 = vand.u32 %v1983, 4294901760
    %v2093 = vsub.f32 %v1983, %v2092
    %v2094 = vand.u32 %v2093, 4294901760
    %v2095 = vsub.f32 %v2093, %v2094
    %v2096 = vand.u32 %v2095, 4294901760
    %2097 = vmatpush.msra.mxu0 %v2096
    %v2098 = vand.u32 %v1998, 4294901760
    %2099 = vmatmul.f32.gmra.mxu0 %v2098
    %v2100 = vpop.f32.mrf.mxu0
    %v2101 = vadd.f32 %v2036, %v2100
    %v2102 = vand.u32 %v2001, 4294901760
    %2103 = vmatmul.f32.gmra.mxu0 %v2102
    %v2104 = vpop.f32.mrf.mxu0
    %v2105 = vadd.f32 %v2044, %v2104
    %v2106 = vand.u32 %v2004, 4294901760
    %2107 = vmatmul.f32.gmra.mxu0 %v2106
    %v2108 = vpop.f32.mrf.mxu0
    %v2109 = vadd.f32 %v2052, %v2108
    %v2110 = vand.u32 %v2007, 4294901760
    %2111 = vmatmul.f32.gmra.mxu0 %v2110
    %v2112 = vpop.f32.mrf.mxu0
    %v2113 = vadd.f32 %v2060, %v2112
    %2114 = vdwg.mxu0
    %2115 = vmatpush.msra.mxu0 0.0
    %2116 = vmatpush.msra.mxu0 0.0
    %2117 = vmatpush.msra.mxu0 0.0
    %2118 = vmatpush.msra.mxu0 0.0
    %2119 = vmatpush.msra.mxu0 0.0
    %2120 = vmatpush.msra.mxu0 0.0
    %2121 = vmatpush.msra.mxu0 0.0
    %2122 = vmatpush.msra.mxu0 0.0
    %2123 = vmatpush.msra.mxu0 0.0
    %2124 = vmatpush.msra.mxu0 0.0
    %2125 = vmatpush.msra.mxu0 0.0
    %2126 = vmatpush.msra.mxu0 0.0
    %v2127 = vand.u32 %v1995, 4294901760
    %v2128 = vsub.f32 %v1995, %v2127
    %2129 = vmatpush.msra.mxu0 %v2128
    %v2130 = vand.u32 %v1991, 4294901760
    %v2131 = vsub.f32 %v1991, %v2130
    %2132 = vmatpush.msra.mxu0 %v2131
    %v2133 = vand.u32 %v1987, 4294901760
    %v2134 = vsub.f32 %v1987, %v2133
    %2135 = vmatpush.msra.mxu0 %v2134
    %v2136 = vand.u32 %v1983, 4294901760
    %v2137 = vsub.f32 %v1983, %v2136
    %2138 = vmatpush.msra.mxu0 %v2137
    %v2139 = vand.u32 %v1998, 4294901760
    %v2140 = vsub.f32 %v1998, %v2139
    %2141 = vmatmul.f32.gmra.mxu0 %v2140
    %v2142 = vpop.f32.mrf.mxu0
    %v2143 = vadd.f32 %v2101, %v2142
    %v2144 = vand.u32 %v2001, 4294901760
    %v2145 = vsub.f32 %v2001, %v2144
    %2146 = vmatmul.f32.gmra.mxu0 %v2145
    %v2147 = vpop.f32.mrf.mxu0
    %v2148 = vadd.f32 %v2105, %v2147
    %v2149 = vand.u32 %v2004, 4294901760
    %v2150 = vsub.f32 %v2004, %v2149
    %2151 = vmatmul.f32.gmra.mxu0 %v2150
    %v2152 = vpop.f32.mrf.mxu0
    %v2153 = vadd.f32 %v2109, %v2152
    %v2154 = vand.u32 %v2007, 4294901760
    %v2155 = vsub.f32 %v2007, %v2154
    %2156 = vmatmul.f32.gmra.mxu0 %v2155
    %v2157 = vpop.f32.mrf.mxu0
    %v2158 = vadd.f32 %v2113, %v2157
    %2159 = vdwg.mxu0
    %2160 = vmatpush.msra.mxu0 0.0
    %2161 = vmatpush.msra.mxu0 0.0
    %2162 = vmatpush.msra.mxu0 0.0
    %2163 = vmatpush.msra.mxu0 0.0
    %2164 = vmatpush.msra.mxu0 0.0
    %2165 = vmatpush.msra.mxu0 0.0
    %2166 = vmatpush.msra.mxu0 0.0
    %2167 = vmatpush.msra.mxu0 0.0
    %2168 = vmatpush.msra.mxu0 0.0
    %2169 = vmatpush.msra.mxu0 0.0
    %2170 = vmatpush.msra.mxu0 0.0
    %2171 = vmatpush.msra.mxu0 0.0
    %v2172 = vand.u32 %v1995, 4294901760
    %2173 = vmatpush.msra.mxu0 %v2172
    %v2174 = vand.u32 %v1991, 4294901760
    %2175 = vmatpush.msra.mxu0 %v2174
    %v2176 = vand.u32 %v1987, 4294901760
    %2177 = vmatpush.msra.mxu0 %v2176
    %v2178 = vand.u32 %v1983, 4294901760
    %2179 = vmatpush.msra.mxu0 %v2178
    %v2180 = vand.u32 %v1998, 4294901760
    %v2181 = vsub.f32 %v1998, %v2180
    %v2182 = vand.u32 %v2181, 4294901760
    %2183 = vmatmul.f32.gmra.mxu0 %v2182
    %v2184 = vpop.f32.mrf.mxu0
    %v2185 = vadd.f32 %v2143, %v2184
    %v2186 = vand.u32 %v2001, 4294901760
    %v2187 = vsub.f32 %v2001, %v2186
    %v2188 = vand.u32 %v2187, 4294901760
    %2189 = vmatmul.f32.gmra.mxu0 %v2188
    %v2190 = vpop.f32.mrf.mxu0
    %v2191 = vadd.f32 %v2148, %v2190
    %v2192 = vand.u32 %v2004, 4294901760
    %v2193 = vsub.f32 %v2004, %v2192
    %v2194 = vand.u32 %v2193, 4294901760
    %2195 = vmatmul.f32.gmra.mxu0 %v2194
    %v2196 = vpop.f32.mrf.mxu0
    %v2197 = vadd.f32 %v2153, %v2196
    %v2198 = vand.u32 %v2007, 4294901760
    %v2199 = vsub.f32 %v2007, %v2198
    %v2200 = vand.u32 %v2199, 4294901760
    %2201 = vmatmul.f32.gmra.mxu0 %v2200
    %v2202 = vpop.f32.mrf.mxu0
    %v2203 = vadd.f32 %v2158, %v2202
    %2204 = vdwg.mxu0
    %2205 = vmatpush.msra.mxu0 0.0
    %2206 = vmatpush.msra.mxu0 0.0
    %2207 = vmatpush.msra.mxu0 0.0
    %2208 = vmatpush.msra.mxu0 0.0
    %2209 = vmatpush.msra.mxu0 0.0
    %2210 = vmatpush.msra.mxu0 0.0
    %2211 = vmatpush.msra.mxu0 0.0
    %2212 = vmatpush.msra.mxu0 0.0
    %2213 = vmatpush.msra.mxu0 0.0
    %2214 = vmatpush.msra.mxu0 0.0
    %2215 = vmatpush.msra.mxu0 0.0
    %2216 = vmatpush.msra.mxu0 0.0
    %v2217 = vand.u32 %v1995, 4294901760
    %v2218 = vsub.f32 %v1995, %v2217
    %v2219 = vand.u32 %v2218, 4294901760
    %2220 = vmatpush.msra.mxu0 %v2219
    %v2221 = vand.u32 %v1991, 4294901760
    %v2222 = vsub.f32 %v1991, %v2221
    %v2223 = vand.u32 %v2222, 4294901760
    %2224 = vmatpush.msra.mxu0 %v2223
    %v2225 = vand.u32 %v1987, 4294901760
    %v2226 = vsub.f32 %v1987, %v2225
    %v2227 = vand.u32 %v2226, 4294901760
    %2228 = vmatpush.msra.mxu0 %v2227
    %v2229 = vand.u32 %v1983, 4294901760
    %v2230 = vsub.f32 %v1983, %v2229
    %v2231 = vand.u32 %v2230, 4294901760
    %2232 = vmatpush.msra.mxu0 %v2231
    %v2233 = vand.u32 %v1998, 4294901760
    %2234 = vmatmul.f32.gmra.mxu0 %v2233
    %v2235 = vpop.f32.mrf.mxu0
    %v2236 = vadd.f32 %v2185, %v2235
    %v2237 = vand.u32 %v2001, 4294901760
    %2238 = vmatmul.f32.gmra.mxu0 %v2237
    %v2239 = vpop.f32.mrf.mxu0
    %v2240 = vadd.f32 %v2191, %v2239
    %v2241 = vand.u32 %v2004, 4294901760
    %2242 = vmatmul.f32.gmra.mxu0 %v2241
    %v2243 = vpop.f32.mrf.mxu0
    %v2244 = vadd.f32 %v2197, %v2243
    %v2245 = vand.u32 %v2007, 4294901760
    %2246 = vmatmul.f32.gmra.mxu0 %v2245
    %v2247 = vpop.f32.mrf.mxu0
    %v2248 = vadd.f32 %v2203, %v2247
    %2249 = vdwg.mxu0
    %2250 = vmatpush.msra.mxu0 0.0
    %2251 = vmatpush.msra.mxu0 0.0
    %2252 = vmatpush.msra.mxu0 0.0
    %2253 = vmatpush.msra.mxu0 0.0
    %2254 = vmatpush.msra.mxu0 0.0
    %2255 = vmatpush.msra.mxu0 0.0
    %2256 = vmatpush.msra.mxu0 0.0
    %2257 = vmatpush.msra.mxu0 0.0
    %2258 = vmatpush.msra.mxu0 0.0
    %2259 = vmatpush.msra.mxu0 0.0
    %2260 = vmatpush.msra.mxu0 0.0
    %2261 = vmatpush.msra.mxu0 0.0
    %v2262 = vand.u32 %v1995, 4294901760
    %2263 = vmatpush.msra.mxu0 %v2262
    %v2264 = vand.u32 %v1991, 4294901760
    %2265 = vmatpush.msra.mxu0 %v2264
    %v2266 = vand.u32 %v1987, 4294901760
    %2267 = vmatpush.msra.mxu0 %v2266
    %v2268 = vand.u32 %v1983, 4294901760
    %2269 = vmatpush.msra.mxu0 %v2268
    %v2270 = vand.u32 %v1998, 4294901760
    %2271 = vmatmul.f32.gmra.mxu0 %v2270
    %v2272 = vpop.f32.mrf.mxu0
    %v2273 = vadd.f32 %v2236, %v2272
    %v2274 = vand.u32 %v2001, 4294901760
    %2275 = vmatmul.f32.gmra.mxu0 %v2274
    %v2276 = vpop.f32.mrf.mxu0
    %v2277 = vadd.f32 %v2240, %v2276
    %v2278 = vand.u32 %v2004, 4294901760
    %2279 = vmatmul.f32.gmra.mxu0 %v2278
    %v2280 = vpop.f32.mrf.mxu0
    %v2281 = vadd.f32 %v2244, %v2280
    %v2282 = vand.u32 %v2007, 4294901760
    %2283 = vmatmul.f32.gmra.mxu0 %v2282
    %v2284 = vpop.f32.mrf.mxu0
    %v2285 = vadd.f32 %v2248, %v2284
    %2286 = vdwg.mxu0
    %2287 = vst.msk [vmem:[#allocation2] sm:$0xff] %vm76, %v2273
    %2288 = vst.msk [vmem:[#allocation2 + $0x8] sm:$0xff] %vm76, %v2277
    %2289 = vst.msk [vmem:[#allocation2 + $0x10] sm:$0xff] %vm76, %v2281
    %2290 = vst.msk [vmem:[#allocation2 + $0x18] sm:$0xff] %vm76, %v2285
    %s2291 = scalar_lea.vmem %s0, 8
    %v2292 = vld [vmem:[%s2291] sm:$0x1]
    %v2293 = vperm.slane %v2292, 0
    %v2294 = vmul.f32 %v12, %v2293
    %v2295 = vmul.f32 %v13, %v2293
    %v2296 = vmul.f32 %v14, %v2293
    %v2297 = vmul.f32 %v15, %v2293
    %2298 = vrot.lane.b32.xlu0 %v2294, 64
    %v2299 = vpop.permute.xlu0 %2298
    %2300 = vrot.lane.b32.xlu0 %v2295, 64
    %v2301 = vpop.permute.xlu0 %2300
    %2302 = vrot.lane.b32.xlu0 %v2296, 64
    %v2303 = vpop.permute.xlu0 %2302
    %2304 = vrot.lane.b32.xlu0 %v2297, 64
    %v2305 = vpop.permute.xlu0 %2304
    %v2306 = vadd.f32 %v2294, %v2299
    %v2307 = vadd.f32 %v2295, %v2301
    %v2308 = vadd.f32 %v2296, %v2303
    %v2309 = vadd.f32 %v2297, %v2305
    %2310 = vrot.lane.b32.xlu0 %v2306, 32
    %v2311 = vpop.permute.xlu0 %2310
    %2312 = vrot.lane.b32.xlu0 %v2307, 32
    %v2313 = vpop.permute.xlu0 %2312
    %2314 = vrot.lane.b32.xlu0 %v2308, 32
    %v2315 = vpop.permute.xlu0 %2314
    %2316 = vrot.lane.b32.xlu0 %v2309, 32
    %v2317 = vpop.permute.xlu0 %2316
    %v2318 = vadd.f32 %v2306, %v2311
    %v2319 = vadd.f32 %v2307, %v2313
    %v2320 = vadd.f32 %v2308, %v2315
    %v2321 = vadd.f32 %v2309, %v2317
    %v2322 = vld [vmem:[%s2291 + $0x1] sm:$0x1]
    %v2323 = vperm.slane %v2322, 0
    %v2324 = vmul.f32 %v12, %v2323
    %v2325 = vmul.f32 %v13, %v2323
    %v2326 = vmul.f32 %v14, %v2323
    %v2327 = vmul.f32 %v15, %v2323
    %2328 = vrot.lane.b32.xlu0 %v2324, 64
    %v2329 = vpop.permute.xlu0 %2328
    %2330 = vrot.lane.b32.xlu0 %v2325, 64
    %v2331 = vpop.permute.xlu0 %2330
    %2332 = vrot.lane.b32.xlu0 %v2326, 64
    %v2333 = vpop.permute.xlu0 %2332
    %2334 = vrot.lane.b32.xlu0 %v2327, 64
    %v2335 = vpop.permute.xlu0 %2334
    %v2336 = vadd.f32 %v2324, %v2329
    %v2337 = vadd.f32 %v2325, %v2331
    %v2338 = vadd.f32 %v2326, %v2333
    %v2339 = vadd.f32 %v2327, %v2335
    %2340 = vrot.lane.b32.xlu0 %v2336, 32
    %v2341 = vpop.permute.xlu0 %2340
    %2342 = vrot.lane.b32.xlu0 %v2337, 32
    %v2343 = vpop.permute.xlu0 %2342
    %2344 = vrot.lane.b32.xlu0 %v2338, 32
    %v2345 = vpop.permute.xlu0 %2344
    %2346 = vrot.lane.b32.xlu0 %v2339, 32
    %v2347 = vpop.permute.xlu0 %2346
    %v2348 = vadd.f32 %v2336, %v2341
    %v2349 = vadd.f32 %v2337, %v2343
    %v2350 = vadd.f32 %v2338, %v2345
    %v2351 = vadd.f32 %v2339, %v2347
    %v2353 = vsel %vm76, %v2318, 0
    %v2356 = vsel %vm76, %v2319, 0
    %v2359 = vsel %vm76, %v2320, 0
    %v2362 = vsel %vm76, %v2321, 0
    %2364 = vmatpush.msra.mxu0 0.0
    %2365 = vmatpush.msra.mxu0 0.0
    %2366 = vmatpush.msra.mxu0 0.0
    %2367 = vmatpush.msra.mxu0 0.0
    %2368 = vmatpush.msra.mxu0 0.0
    %2369 = vmatpush.msra.mxu0 0.0
    %2370 = vmatpush.msra.mxu0 0.0
    %2371 = vmatpush.msra.mxu0 0.0
    %2372 = vmatpush.msra.mxu0 0.0
    %2373 = vmatpush.msra.mxu0 0.0
    %2374 = vmatpush.msra.mxu0 0.0
    %2375 = vmatpush.msra.mxu0 0.0
    %v2376 = vand.u32 %v2351, 4294901760
    %2377 = vmatpush.msra.mxu0 %v2376
    %v2378 = vand.u32 %v2350, 4294901760
    %2379 = vmatpush.msra.mxu0 %v2378
    %v2380 = vand.u32 %v2349, 4294901760
    %2381 = vmatpush.msra.mxu0 %v2380
    %v2382 = vand.u32 %v2348, 4294901760
    %2383 = vmatpush.msra.mxu0 %v2382
    %v2384 = vand.u32 %v2353, 4294901760
    %v2385 = vsub.f32 %v2353, %v2384
    %v2386 = vand.u32 %v2385, 4294901760
    %v2387 = vsub.f32 %v2385, %v2386
    %v2388 = vand.u32 %v2387, 4294901760
    %2389 = vmatmul.f32.gmra.mxu0 %v2388
    %v2390 = vpop.f32.mrf.mxu0
    %v2391 = vadd.f32 0.0, %v2390
    %v2392 = vand.u32 %v2356, 4294901760
    %v2393 = vsub.f32 %v2356, %v2392
    %v2394 = vand.u32 %v2393, 4294901760
    %v2395 = vsub.f32 %v2393, %v2394
    %v2396 = vand.u32 %v2395, 4294901760
    %2397 = vmatmul.f32.gmra.mxu0 %v2396
    %v2398 = vpop.f32.mrf.mxu0
    %v2399 = vadd.f32 0.0, %v2398
    %v2400 = vand.u32 %v2359, 4294901760
    %v2401 = vsub.f32 %v2359, %v2400
    %v2402 = vand.u32 %v2401, 4294901760
    %v2403 = vsub.f32 %v2401, %v2402
    %v2404 = vand.u32 %v2403, 4294901760
    %2405 = vmatmul.f32.gmra.mxu0 %v2404
    %v2406 = vpop.f32.mrf.mxu0
    %v2407 = vadd.f32 0.0, %v2406
    %v2408 = vand.u32 %v2362, 4294901760
    %v2409 = vsub.f32 %v2362, %v2408
    %v2410 = vand.u32 %v2409, 4294901760
    %v2411 = vsub.f32 %v2409, %v2410
    %v2412 = vand.u32 %v2411, 4294901760
    %2413 = vmatmul.f32.gmra.mxu0 %v2412
    %v2414 = vpop.f32.mrf.mxu0
    %v2415 = vadd.f32 0.0, %v2414
    %2416 = vdwg.mxu0
    %2417 = vmatpush.msra.mxu0 0.0
    %2418 = vmatpush.msra.mxu0 0.0
    %2419 = vmatpush.msra.mxu0 0.0
    %2420 = vmatpush.msra.mxu0 0.0
    %2421 = vmatpush.msra.mxu0 0.0
    %2422 = vmatpush.msra.mxu0 0.0
    %2423 = vmatpush.msra.mxu0 0.0
    %2424 = vmatpush.msra.mxu0 0.0
    %2425 = vmatpush.msra.mxu0 0.0
    %2426 = vmatpush.msra.mxu0 0.0
    %2427 = vmatpush.msra.mxu0 0.0
    %2428 = vmatpush.msra.mxu0 0.0
    %v2429 = vand.u32 %v2351, 4294901760
    %v2430 = vsub.f32 %v2351, %v2429
    %v2431 = vand.u32 %v2430, 4294901760
    %v2432 = vsub.f32 %v2430, %v2431
    %v2433 = vand.u32 %v2432, 4294901760
    %2434 = vmatpush.msra.mxu0 %v2433
    %v2435 = vand.u32 %v2350, 4294901760
    %v2436 = vsub.f32 %v2350, %v2435
    %v2437 = vand.u32 %v2436, 4294901760
    %v2438 = vsub.f32 %v2436, %v2437
    %v2439 = vand.u32 %v2438, 4294901760
    %2440 = vmatpush.msra.mxu0 %v2439
    %v2441 = vand.u32 %v2349, 4294901760
    %v2442 = vsub.f32 %v2349, %v2441
    %v2443 = vand.u32 %v2442, 4294901760
    %v2444 = vsub.f32 %v2442, %v2443
    %v2445 = vand.u32 %v2444, 4294901760
    %2446 = vmatpush.msra.mxu0 %v2445
    %v2447 = vand.u32 %v2348, 4294901760
    %v2448 = vsub.f32 %v2348, %v2447
    %v2449 = vand.u32 %v2448, 4294901760
    %v2450 = vsub.f32 %v2448, %v2449
    %v2451 = vand.u32 %v2450, 4294901760
    %2452 = vmatpush.msra.mxu0 %v2451
    %v2453 = vand.u32 %v2353, 4294901760
    %2454 = vmatmul.f32.gmra.mxu0 %v2453
    %v2455 = vpop.f32.mrf.mxu0
    %v2456 = vadd.f32 %v2391, %v2455
    %v2457 = vand.u32 %v2356, 4294901760
    %2458 = vmatmul.f32.gmra.mxu0 %v2457
    %v2459 = vpop.f32.mrf.mxu0
    %v2460 = vadd.f32 %v2399, %v2459
    %v2461 = vand.u32 %v2359, 4294901760
    %2462 = vmatmul.f32.gmra.mxu0 %v2461
    %v2463 = vpop.f32.mrf.mxu0
    %v2464 = vadd.f32 %v2407, %v2463
    %v2465 = vand.u32 %v2362, 4294901760
    %2466 = vmatmul.f32.gmra.mxu0 %v2465
    %v2467 = vpop.f32.mrf.mxu0
    %v2468 = vadd.f32 %v2415, %v2467
    %2469 = vdwg.mxu0
    %2470 = vmatpush.msra.mxu0 0.0
    %2471 = vmatpush.msra.mxu0 0.0
    %2472 = vmatpush.msra.mxu0 0.0
    %2473 = vmatpush.msra.mxu0 0.0
    %2474 = vmatpush.msra.mxu0 0.0
    %2475 = vmatpush.msra.mxu0 0.0
    %2476 = vmatpush.msra.mxu0 0.0
    %2477 = vmatpush.msra.mxu0 0.0
    %2478 = vmatpush.msra.mxu0 0.0
    %2479 = vmatpush.msra.mxu0 0.0
    %2480 = vmatpush.msra.mxu0 0.0
    %2481 = vmatpush.msra.mxu0 0.0
    %v2482 = vand.u32 %v2351, 4294901760
    %v2483 = vsub.f32 %v2351, %v2482
    %2484 = vmatpush.msra.mxu0 %v2483
    %v2485 = vand.u32 %v2350, 4294901760
    %v2486 = vsub.f32 %v2350, %v2485
    %2487 = vmatpush.msra.mxu0 %v2486
    %v2488 = vand.u32 %v2349, 4294901760
    %v2489 = vsub.f32 %v2349, %v2488
    %2490 = vmatpush.msra.mxu0 %v2489
    %v2491 = vand.u32 %v2348, 4294901760
    %v2492 = vsub.f32 %v2348, %v2491
    %2493 = vmatpush.msra.mxu0 %v2492
    %v2494 = vand.u32 %v2353, 4294901760
    %v2495 = vsub.f32 %v2353, %v2494
    %2496 = vmatmul.f32.gmra.mxu0 %v2495
    %v2497 = vpop.f32.mrf.mxu0
    %v2498 = vadd.f32 %v2456, %v2497
    %v2499 = vand.u32 %v2356, 4294901760
    %v2500 = vsub.f32 %v2356, %v2499
    %2501 = vmatmul.f32.gmra.mxu0 %v2500
    %v2502 = vpop.f32.mrf.mxu0
    %v2503 = vadd.f32 %v2460, %v2502
    %v2504 = vand.u32 %v2359, 4294901760
    %v2505 = vsub.f32 %v2359, %v2504
    %2506 = vmatmul.f32.gmra.mxu0 %v2505
    %v2507 = vpop.f32.mrf.mxu0
    %v2508 = vadd.f32 %v2464, %v2507
    %v2509 = vand.u32 %v2362, 4294901760
    %v2510 = vsub.f32 %v2362, %v2509
    %2511 = vmatmul.f32.gmra.mxu0 %v2510
    %v2512 = vpop.f32.mrf.mxu0
    %v2513 = vadd.f32 %v2468, %v2512
    %2514 = vdwg.mxu0
    %2515 = vmatpush.msra.mxu0 0.0
    %2516 = vmatpush.msra.mxu0 0.0
    %2517 = vmatpush.msra.mxu0 0.0
    %2518 = vmatpush.msra.mxu0 0.0
    %2519 = vmatpush.msra.mxu0 0.0
    %2520 = vmatpush.msra.mxu0 0.0
    %2521 = vmatpush.msra.mxu0 0.0
    %2522 = vmatpush.msra.mxu0 0.0
    %2523 = vmatpush.msra.mxu0 0.0
    %2524 = vmatpush.msra.mxu0 0.0
    %2525 = vmatpush.msra.mxu0 0.0
    %2526 = vmatpush.msra.mxu0 0.0
    %v2527 = vand.u32 %v2351, 4294901760
    %2528 = vmatpush.msra.mxu0 %v2527
    %v2529 = vand.u32 %v2350, 4294901760
    %2530 = vmatpush.msra.mxu0 %v2529
    %v2531 = vand.u32 %v2349, 4294901760
    %2532 = vmatpush.msra.mxu0 %v2531
    %v2533 = vand.u32 %v2348, 4294901760
    %2534 = vmatpush.msra.mxu0 %v2533
    %v2535 = vand.u32 %v2353, 4294901760
    %v2536 = vsub.f32 %v2353, %v2535
    %v2537 = vand.u32 %v2536, 4294901760
    %2538 = vmatmul.f32.gmra.mxu0 %v2537
    %v2539 = vpop.f32.mrf.mxu0
    %v2540 = vadd.f32 %v2498, %v2539
    %v2541 = vand.u32 %v2356, 4294901760
    %v2542 = vsub.f32 %v2356, %v2541
    %v2543 = vand.u32 %v2542, 4294901760
    %2544 = vmatmul.f32.gmra.mxu0 %v2543
    %v2545 = vpop.f32.mrf.mxu0
    %v2546 = vadd.f32 %v2503, %v2545
    %v2547 = vand.u32 %v2359, 4294901760
    %v2548 = vsub.f32 %v2359, %v2547
    %v2549 = vand.u32 %v2548, 4294901760
    %2550 = vmatmul.f32.gmra.mxu0 %v2549
    %v2551 = vpop.f32.mrf.mxu0
    %v2552 = vadd.f32 %v2508, %v2551
    %v2553 = vand.u32 %v2362, 4294901760
    %v2554 = vsub.f32 %v2362, %v2553
    %v2555 = vand.u32 %v2554, 4294901760
    %2556 = vmatmul.f32.gmra.mxu0 %v2555
    %v2557 = vpop.f32.mrf.mxu0
    %v2558 = vadd.f32 %v2513, %v2557
    %2559 = vdwg.mxu0
    %2560 = vmatpush.msra.mxu0 0.0
    %2561 = vmatpush.msra.mxu0 0.0
    %2562 = vmatpush.msra.mxu0 0.0
    %2563 = vmatpush.msra.mxu0 0.0
    %2564 = vmatpush.msra.mxu0 0.0
    %2565 = vmatpush.msra.mxu0 0.0
    %2566 = vmatpush.msra.mxu0 0.0
    %2567 = vmatpush.msra.mxu0 0.0
    %2568 = vmatpush.msra.mxu0 0.0
    %2569 = vmatpush.msra.mxu0 0.0
    %2570 = vmatpush.msra.mxu0 0.0
    %2571 = vmatpush.msra.mxu0 0.0
    %v2572 = vand.u32 %v2351, 4294901760
    %v2573 = vsub.f32 %v2351, %v2572
    %v2574 = vand.u32 %v2573, 4294901760
    %2575 = vmatpush.msra.mxu0 %v2574
    %v2576 = vand.u32 %v2350, 4294901760
    %v2577 = vsub.f32 %v2350, %v2576
    %v2578 = vand.u32 %v2577, 4294901760
    %2579 = vmatpush.msra.mxu0 %v2578
    %v2580 = vand.u32 %v2349, 4294901760
    %v2581 = vsub.f32 %v2349, %v2580
    %v2582 = vand.u32 %v2581, 4294901760
    %2583 = vmatpush.msra.mxu0 %v2582
    %v2584 = vand.u32 %v2348, 4294901760
    %v2585 = vsub.f32 %v2348, %v2584
    %v2586 = vand.u32 %v2585, 4294901760
    %2587 = vmatpush.msra.mxu0 %v2586
    %v2588 = vand.u32 %v2353, 4294901760
    %2589 = vmatmul.f32.gmra.mxu0 %v2588
    %v2590 = vpop.f32.mrf.mxu0
    %v2591 = vadd.f32 %v2540, %v2590
    %v2592 = vand.u32 %v2356, 4294901760
    %2593 = vmatmul.f32.gmra.mxu0 %v2592
    %v2594 = vpop.f32.mrf.mxu0
    %v2595 = vadd.f32 %v2546, %v2594
    %v2596 = vand.u32 %v2359, 4294901760
    %2597 = vmatmul.f32.gmra.mxu0 %v2596
    %v2598 = vpop.f32.mrf.mxu0
    %v2599 = vadd.f32 %v2552, %v2598
    %v2600 = vand.u32 %v2362, 4294901760
    %2601 = vmatmul.f32.gmra.mxu0 %v2600
    %v2602 = vpop.f32.mrf.mxu0
    %v2603 = vadd.f32 %v2558, %v2602
    %2604 = vdwg.mxu0
    %2605 = vmatpush.msra.mxu0 0.0
    %2606 = vmatpush.msra.mxu0 0.0
    %2607 = vmatpush.msra.mxu0 0.0
    %2608 = vmatpush.msra.mxu0 0.0
    %2609 = vmatpush.msra.mxu0 0.0
    %2610 = vmatpush.msra.mxu0 0.0
    %2611 = vmatpush.msra.mxu0 0.0
    %2612 = vmatpush.msra.mxu0 0.0
    %2613 = vmatpush.msra.mxu0 0.0
    %2614 = vmatpush.msra.mxu0 0.0
    %2615 = vmatpush.msra.mxu0 0.0
    %2616 = vmatpush.msra.mxu0 0.0
    %v2617 = vand.u32 %v2351, 4294901760
    %2618 = vmatpush.msra.mxu0 %v2617
    %v2619 = vand.u32 %v2350, 4294901760
    %2620 = vmatpush.msra.mxu0 %v2619
    %v2621 = vand.u32 %v2349, 4294901760
    %2622 = vmatpush.msra.mxu0 %v2621
    %v2623 = vand.u32 %v2348, 4294901760
    %2624 = vmatpush.msra.mxu0 %v2623
    %v2625 = vand.u32 %v2353, 4294901760
    %2626 = vmatmul.f32.gmra.mxu0 %v2625
    %v2627 = vpop.f32.mrf.mxu0
    %v2628 = vadd.f32 %v2591, %v2627
    %v2629 = vand.u32 %v2356, 4294901760
    %2630 = vmatmul.f32.gmra.mxu0 %v2629
    %v2631 = vpop.f32.mrf.mxu0
    %v2632 = vadd.f32 %v2595, %v2631
    %v2633 = vand.u32 %v2359, 4294901760
    %2634 = vmatmul.f32.gmra.mxu0 %v2633
    %v2635 = vpop.f32.mrf.mxu0
    %v2636 = vadd.f32 %v2599, %v2635
    %v2637 = vand.u32 %v2362, 4294901760
    %2638 = vmatmul.f32.gmra.mxu0 %v2637
    %v2639 = vpop.f32.mrf.mxu0
    %v2640 = vadd.f32 %v2603, %v2639
    %2641 = vdwg.mxu0
    %v2642 = vld [vmem:[%s2291 + $0x2] sm:$0x1]
    %v2643 = vperm.slane %v2642, 0
    %v2644 = vmul.f32 %v12, %v2643
    %v2645 = vmul.f32 %v13, %v2643
    %v2646 = vmul.f32 %v14, %v2643
    %v2647 = vmul.f32 %v15, %v2643
    %2648 = vrot.lane.b32.xlu0 %v2644, 64
    %v2649 = vpop.permute.xlu0 %2648
    %2650 = vrot.lane.b32.xlu0 %v2645, 64
    %v2651 = vpop.permute.xlu0 %2650
    %2652 = vrot.lane.b32.xlu0 %v2646, 64
    %v2653 = vpop.permute.xlu0 %2652
    %2654 = vrot.lane.b32.xlu0 %v2647, 64
    %v2655 = vpop.permute.xlu0 %2654
    %v2656 = vadd.f32 %v2644, %v2649
    %v2657 = vadd.f32 %v2645, %v2651
    %v2658 = vadd.f32 %v2646, %v2653
    %v2659 = vadd.f32 %v2647, %v2655
    %2660 = vrot.lane.b32.xlu0 %v2656, 32
    %v2661 = vpop.permute.xlu0 %2660
    %2662 = vrot.lane.b32.xlu0 %v2657, 32
    %v2663 = vpop.permute.xlu0 %2662
    %2664 = vrot.lane.b32.xlu0 %v2658, 32
    %v2665 = vpop.permute.xlu0 %2664
    %2666 = vrot.lane.b32.xlu0 %v2659, 32
    %v2667 = vpop.permute.xlu0 %2666
    %v2668 = vadd.f32 %v2656, %v2661
    %v2669 = vadd.f32 %v2657, %v2663
    %v2670 = vadd.f32 %v2658, %v2665
    %v2671 = vadd.f32 %v2659, %v2667
    %v2672 = vld [vmem:[%s2291 + $0x3] sm:$0x1]
    %v2673 = vperm.slane %v2672, 0
    %v2674 = vmul.f32 %v12, %v2673
    %v2675 = vmul.f32 %v13, %v2673
    %v2676 = vmul.f32 %v14, %v2673
    %v2677 = vmul.f32 %v15, %v2673
    %2678 = vrot.lane.b32.xlu0 %v2674, 64
    %v2679 = vpop.permute.xlu0 %2678
    %2680 = vrot.lane.b32.xlu0 %v2675, 64
    %v2681 = vpop.permute.xlu0 %2680
    %2682 = vrot.lane.b32.xlu0 %v2676, 64
    %v2683 = vpop.permute.xlu0 %2682
    %2684 = vrot.lane.b32.xlu0 %v2677, 64
    %v2685 = vpop.permute.xlu0 %2684
    %v2686 = vadd.f32 %v2674, %v2679
    %v2687 = vadd.f32 %v2675, %v2681
    %v2688 = vadd.f32 %v2676, %v2683
    %v2689 = vadd.f32 %v2677, %v2685
    %2690 = vrot.lane.b32.xlu0 %v2686, 32
    %v2691 = vpop.permute.xlu0 %2690
    %2692 = vrot.lane.b32.xlu0 %v2687, 32
    %v2693 = vpop.permute.xlu0 %2692
    %2694 = vrot.lane.b32.xlu0 %v2688, 32
    %v2695 = vpop.permute.xlu0 %2694
    %2696 = vrot.lane.b32.xlu0 %v2689, 32
    %v2697 = vpop.permute.xlu0 %2696
    %v2698 = vadd.f32 %v2686, %v2691
    %v2699 = vadd.f32 %v2687, %v2693
    %v2700 = vadd.f32 %v2688, %v2695
    %v2701 = vadd.f32 %v2689, %v2697
    %v2703 = vsel %vm76, %v2668, 0
    %v2706 = vsel %vm76, %v2669, 0
    %v2709 = vsel %vm76, %v2670, 0
    %v2712 = vsel %vm76, %v2671, 0
    %2714 = vmatpush.msra.mxu0 0.0
    %2715 = vmatpush.msra.mxu0 0.0
    %2716 = vmatpush.msra.mxu0 0.0
    %2717 = vmatpush.msra.mxu0 0.0
    %2718 = vmatpush.msra.mxu0 0.0
    %2719 = vmatpush.msra.mxu0 0.0
    %2720 = vmatpush.msra.mxu0 0.0
    %2721 = vmatpush.msra.mxu0 0.0
    %2722 = vmatpush.msra.mxu0 0.0
    %2723 = vmatpush.msra.mxu0 0.0
    %2724 = vmatpush.msra.mxu0 0.0
    %2725 = vmatpush.msra.mxu0 0.0
    %v2726 = vand.u32 %v2701, 4294901760
    %2727 = vmatpush.msra.mxu0 %v2726
    %v2728 = vand.u32 %v2700, 4294901760
    %2729 = vmatpush.msra.mxu0 %v2728
    %v2730 = vand.u32 %v2699, 4294901760
    %2731 = vmatpush.msra.mxu0 %v2730
    %v2732 = vand.u32 %v2698, 4294901760
    %2733 = vmatpush.msra.mxu0 %v2732
    %v2734 = vand.u32 %v2703, 4294901760
    %v2735 = vsub.f32 %v2703, %v2734
    %v2736 = vand.u32 %v2735, 4294901760
    %v2737 = vsub.f32 %v2735, %v2736
    %v2738 = vand.u32 %v2737, 4294901760
    %2739 = vmatmul.f32.gmra.mxu0 %v2738
    %v2740 = vpop.f32.mrf.mxu0
    %v2741 = vadd.f32 0.0, %v2740
    %v2742 = vand.u32 %v2706, 4294901760
    %v2743 = vsub.f32 %v2706, %v2742
    %v2744 = vand.u32 %v2743, 4294901760
    %v2745 = vsub.f32 %v2743, %v2744
    %v2746 = vand.u32 %v2745, 4294901760
    %2747 = vmatmul.f32.gmra.mxu0 %v2746
    %v2748 = vpop.f32.mrf.mxu0
    %v2749 = vadd.f32 0.0, %v2748
    %v2750 = vand.u32 %v2709, 4294901760
    %v2751 = vsub.f32 %v2709, %v2750
    %v2752 = vand.u32 %v2751, 4294901760
    %v2753 = vsub.f32 %v2751, %v2752
    %v2754 = vand.u32 %v2753, 4294901760
    %2755 = vmatmul.f32.gmra.mxu0 %v2754
    %v2756 = vpop.f32.mrf.mxu0
    %v2757 = vadd.f32 0.0, %v2756
    %v2758 = vand.u32 %v2712, 4294901760
    %v2759 = vsub.f32 %v2712, %v2758
    %v2760 = vand.u32 %v2759, 4294901760
    %v2761 = vsub.f32 %v2759, %v2760
    %v2762 = vand.u32 %v2761, 4294901760
    %2763 = vmatmul.f32.gmra.mxu0 %v2762
    %v2764 = vpop.f32.mrf.mxu0
    %v2765 = vadd.f32 0.0, %v2764
    %2766 = vdwg.mxu0
    %2767 = vmatpush.msra.mxu0 0.0
    %2768 = vmatpush.msra.mxu0 0.0
    %2769 = vmatpush.msra.mxu0 0.0
    %2770 = vmatpush.msra.mxu0 0.0
    %2771 = vmatpush.msra.mxu0 0.0
    %2772 = vmatpush.msra.mxu0 0.0
    %2773 = vmatpush.msra.mxu0 0.0
    %2774 = vmatpush.msra.mxu0 0.0
    %2775 = vmatpush.msra.mxu0 0.0
    %2776 = vmatpush.msra.mxu0 0.0
    %2777 = vmatpush.msra.mxu0 0.0
    %2778 = vmatpush.msra.mxu0 0.0
    %v2779 = vand.u32 %v2701, 4294901760
    %v2780 = vsub.f32 %v2701, %v2779
    %v2781 = vand.u32 %v2780, 4294901760
    %v2782 = vsub.f32 %v2780, %v2781
    %v2783 = vand.u32 %v2782, 4294901760
    %2784 = vmatpush.msra.mxu0 %v2783
    %v2785 = vand.u32 %v2700, 4294901760
    %v2786 = vsub.f32 %v2700, %v2785
    %v2787 = vand.u32 %v2786, 4294901760
    %v2788 = vsub.f32 %v2786, %v2787
    %v2789 = vand.u32 %v2788, 4294901760
    %2790 = vmatpush.msra.mxu0 %v2789
    %v2791 = vand.u32 %v2699, 4294901760
    %v2792 = vsub.f32 %v2699, %v2791
    %v2793 = vand.u32 %v2792, 4294901760
    %v2794 = vsub.f32 %v2792, %v2793
    %v2795 = vand.u32 %v2794, 4294901760
    %2796 = vmatpush.msra.mxu0 %v2795
    %v2797 = vand.u32 %v2698, 4294901760
    %v2798 = vsub.f32 %v2698, %v2797
    %v2799 = vand.u32 %v2798, 4294901760
    %v2800 = vsub.f32 %v2798, %v2799
    %v2801 = vand.u32 %v2800, 4294901760
    %2802 = vmatpush.msra.mxu0 %v2801
    %v2803 = vand.u32 %v2703, 4294901760
    %2804 = vmatmul.f32.gmra.mxu0 %v2803
    %v2805 = vpop.f32.mrf.mxu0
    %v2806 = vadd.f32 %v2741, %v2805
    %v2807 = vand.u32 %v2706, 4294901760
    %2808 = vmatmul.f32.gmra.mxu0 %v2807
    %v2809 = vpop.f32.mrf.mxu0
    %v2810 = vadd.f32 %v2749, %v2809
    %v2811 = vand.u32 %v2709, 4294901760
    %2812 = vmatmul.f32.gmra.mxu0 %v2811
    %v2813 = vpop.f32.mrf.mxu0
    %v2814 = vadd.f32 %v2757, %v2813
    %v2815 = vand.u32 %v2712, 4294901760
    %2816 = vmatmul.f32.gmra.mxu0 %v2815
    %v2817 = vpop.f32.mrf.mxu0
    %v2818 = vadd.f32 %v2765, %v2817
    %2819 = vdwg.mxu0
    %2820 = vmatpush.msra.mxu0 0.0
    %2821 = vmatpush.msra.mxu0 0.0
    %2822 = vmatpush.msra.mxu0 0.0
    %2823 = vmatpush.msra.mxu0 0.0
    %2824 = vmatpush.msra.mxu0 0.0
    %2825 = vmatpush.msra.mxu0 0.0
    %2826 = vmatpush.msra.mxu0 0.0
    %2827 = vmatpush.msra.mxu0 0.0
    %2828 = vmatpush.msra.mxu0 0.0
    %2829 = vmatpush.msra.mxu0 0.0
    %2830 = vmatpush.msra.mxu0 0.0
    %2831 = vmatpush.msra.mxu0 0.0
    %v2832 = vand.u32 %v2701, 4294901760
    %v2833 = vsub.f32 %v2701, %v2832
    %2834 = vmatpush.msra.mxu0 %v2833
    %v2835 = vand.u32 %v2700, 4294901760
    %v2836 = vsub.f32 %v2700, %v2835
    %2837 = vmatpush.msra.mxu0 %v2836
    %v2838 = vand.u32 %v2699, 4294901760
    %v2839 = vsub.f32 %v2699, %v2838
    %2840 = vmatpush.msra.mxu0 %v2839
    %v2841 = vand.u32 %v2698, 4294901760
    %v2842 = vsub.f32 %v2698, %v2841
    %2843 = vmatpush.msra.mxu0 %v2842
    %v2844 = vand.u32 %v2703, 4294901760
    %v2845 = vsub.f32 %v2703, %v2844
    %2846 = vmatmul.f32.gmra.mxu0 %v2845
    %v2847 = vpop.f32.mrf.mxu0
    %v2848 = vadd.f32 %v2806, %v2847
    %v2849 = vand.u32 %v2706, 4294901760
    %v2850 = vsub.f32 %v2706, %v2849
    %2851 = vmatmul.f32.gmra.mxu0 %v2850
    %v2852 = vpop.f32.mrf.mxu0
    %v2853 = vadd.f32 %v2810, %v2852
    %v2854 = vand.u32 %v2709, 4294901760
    %v2855 = vsub.f32 %v2709, %v2854
    %2856 = vmatmul.f32.gmra.mxu0 %v2855
    %v2857 = vpop.f32.mrf.mxu0
    %v2858 = vadd.f32 %v2814, %v2857
    %v2859 = vand.u32 %v2712, 4294901760
    %v2860 = vsub.f32 %v2712, %v2859
    %2861 = vmatmul.f32.gmra.mxu0 %v2860
    %v2862 = vpop.f32.mrf.mxu0
    %v2863 = vadd.f32 %v2818, %v2862
    %2864 = vdwg.mxu0
    %2865 = vmatpush.msra.mxu0 0.0
    %2866 = vmatpush.msra.mxu0 0.0
    %2867 = vmatpush.msra.mxu0 0.0
    %2868 = vmatpush.msra.mxu0 0.0
    %2869 = vmatpush.msra.mxu0 0.0
    %2870 = vmatpush.msra.mxu0 0.0
    %2871 = vmatpush.msra.mxu0 0.0
    %2872 = vmatpush.msra.mxu0 0.0
    %2873 = vmatpush.msra.mxu0 0.0
    %2874 = vmatpush.msra.mxu0 0.0
    %2875 = vmatpush.msra.mxu0 0.0
    %2876 = vmatpush.msra.mxu0 0.0
    %v2877 = vand.u32 %v2701, 4294901760
    %2878 = vmatpush.msra.mxu0 %v2877
    %v2879 = vand.u32 %v2700, 4294901760
    %2880 = vmatpush.msra.mxu0 %v2879
    %v2881 = vand.u32 %v2699, 4294901760
    %2882 = vmatpush.msra.mxu0 %v2881
    %v2883 = vand.u32 %v2698, 4294901760
    %2884 = vmatpush.msra.mxu0 %v2883
    %v2885 = vand.u32 %v2703, 4294901760
    %v2886 = vsub.f32 %v2703, %v2885
    %v2887 = vand.u32 %v2886, 4294901760
    %2888 = vmatmul.f32.gmra.mxu0 %v2887
    %v2889 = vpop.f32.mrf.mxu0
    %v2890 = vadd.f32 %v2848, %v2889
    %v2891 = vand.u32 %v2706, 4294901760
    %v2892 = vsub.f32 %v2706, %v2891
    %v2893 = vand.u32 %v2892, 4294901760
    %2894 = vmatmul.f32.gmra.mxu0 %v2893
    %v2895 = vpop.f32.mrf.mxu0
    %v2896 = vadd.f32 %v2853, %v2895
    %v2897 = vand.u32 %v2709, 4294901760
    %v2898 = vsub.f32 %v2709, %v2897
    %v2899 = vand.u32 %v2898, 4294901760
    %2900 = vmatmul.f32.gmra.mxu0 %v2899
    %v2901 = vpop.f32.mrf.mxu0
    %v2902 = vadd.f32 %v2858, %v2901
    %v2903 = vand.u32 %v2712, 4294901760
    %v2904 = vsub.f32 %v2712, %v2903
    %v2905 = vand.u32 %v2904, 4294901760
    %2906 = vmatmul.f32.gmra.mxu0 %v2905
    %v2907 = vpop.f32.mrf.mxu0
    %v2908 = vadd.f32 %v2863, %v2907
    %2909 = vdwg.mxu0
    %2910 = vmatpush.msra.mxu0 0.0
    %2911 = vmatpush.msra.mxu0 0.0
    %2912 = vmatpush.msra.mxu0 0.0
    %2913 = vmatpush.msra.mxu0 0.0
    %2914 = vmatpush.msra.mxu0 0.0
    %2915 = vmatpush.msra.mxu0 0.0
    %2916 = vmatpush.msra.mxu0 0.0
    %2917 = vmatpush.msra.mxu0 0.0
    %2918 = vmatpush.msra.mxu0 0.0
    %2919 = vmatpush.msra.mxu0 0.0
    %2920 = vmatpush.msra.mxu0 0.0
    %2921 = vmatpush.msra.mxu0 0.0
    %v2922 = vand.u32 %v2701, 4294901760
    %v2923 = vsub.f32 %v2701, %v2922
    %v2924 = vand.u32 %v2923, 4294901760
    %2925 = vmatpush.msra.mxu0 %v2924
    %v2926 = vand.u32 %v2700, 4294901760
    %v2927 = vsub.f32 %v2700, %v2926
    %v2928 = vand.u32 %v2927, 4294901760
    %2929 = vmatpush.msra.mxu0 %v2928
    %v2930 = vand.u32 %v2699, 4294901760
    %v2931 = vsub.f32 %v2699, %v2930
    %v2932 = vand.u32 %v2931, 4294901760
    %2933 = vmatpush.msra.mxu0 %v2932
    %v2934 = vand.u32 %v2698, 4294901760
    %v2935 = vsub.f32 %v2698, %v2934
    %v2936 = vand.u32 %v2935, 4294901760
    %2937 = vmatpush.msra.mxu0 %v2936
    %v2938 = vand.u32 %v2703, 4294901760
    %2939 = vmatmul.f32.gmra.mxu0 %v2938
    %v2940 = vpop.f32.mrf.mxu0
    %v2941 = vadd.f32 %v2890, %v2940
    %v2942 = vand.u32 %v2706, 4294901760
    %2943 = vmatmul.f32.gmra.mxu0 %v2942
    %v2944 = vpop.f32.mrf.mxu0
    %v2945 = vadd.f32 %v2896, %v2944
    %v2946 = vand.u32 %v2709, 4294901760
    %2947 = vmatmul.f32.gmra.mxu0 %v2946
    %v2948 = vpop.f32.mrf.mxu0
    %v2949 = vadd.f32 %v2902, %v2948
    %v2950 = vand.u32 %v2712, 4294901760
    %2951 = vmatmul.f32.gmra.mxu0 %v2950
    %v2952 = vpop.f32.mrf.mxu0
    %v2953 = vadd.f32 %v2908, %v2952
    %2954 = vdwg.mxu0
    %2955 = vmatpush.msra.mxu0 0.0
    %2956 = vmatpush.msra.mxu0 0.0
    %2957 = vmatpush.msra.mxu0 0.0
    %2958 = vmatpush.msra.mxu0 0.0
    %2959 = vmatpush.msra.mxu0 0.0
    %2960 = vmatpush.msra.mxu0 0.0
    %2961 = vmatpush.msra.mxu0 0.0
    %2962 = vmatpush.msra.mxu0 0.0
    %2963 = vmatpush.msra.mxu0 0.0
    %2964 = vmatpush.msra.mxu0 0.0
    %2965 = vmatpush.msra.mxu0 0.0
    %2966 = vmatpush.msra.mxu0 0.0
    %v2967 = vand.u32 %v2701, 4294901760
    %2968 = vmatpush.msra.mxu0 %v2967
    %v2969 = vand.u32 %v2700, 4294901760
    %2970 = vmatpush.msra.mxu0 %v2969
    %v2971 = vand.u32 %v2699, 4294901760
    %2972 = vmatpush.msra.mxu0 %v2971
    %v2973 = vand.u32 %v2698, 4294901760
    %2974 = vmatpush.msra.mxu0 %v2973
    %v2975 = vand.u32 %v2703, 4294901760
    %2976 = vmatmul.f32.gmra.mxu0 %v2975
    %v2977 = vpop.f32.mrf.mxu0
    %v2978 = vadd.f32 %v2941, %v2977
    %v2979 = vand.u32 %v2706, 4294901760
    %2980 = vmatmul.f32.gmra.mxu0 %v2979
    %v2981 = vpop.f32.mrf.mxu0
    %v2982 = vadd.f32 %v2945, %v2981
    %v2983 = vand.u32 %v2709, 4294901760
    %2984 = vmatmul.f32.gmra.mxu0 %v2983
    %v2985 = vpop.f32.mrf.mxu0
    %v2986 = vadd.f32 %v2949, %v2985
    %v2987 = vand.u32 %v2712, 4294901760
    %2988 = vmatmul.f32.gmra.mxu0 %v2987
    %v2989 = vpop.f32.mrf.mxu0
    %v2990 = vadd.f32 %v2953, %v2989
    %2991 = vdwg.mxu0
    %v2992 = vld [vmem:[%s2291 + $0x4] sm:$0x1]
    %v2993 = vperm.slane %v2992, 0
    %v2994 = vmul.f32 %v12, %v2993
    %v2995 = vmul.f32 %v13, %v2993
    %v2996 = vmul.f32 %v14, %v2993
    %v2997 = vmul.f32 %v15, %v2993
    %2998 = vrot.lane.b32.xlu0 %v2994, 64
    %v2999 = vpop.permute.xlu0 %2998
    %3000 = vrot.lane.b32.xlu0 %v2995, 64
    %v3001 = vpop.permute.xlu0 %3000
    %3002 = vrot.lane.b32.xlu0 %v2996, 64
    %v3003 = vpop.permute.xlu0 %3002
    %3004 = vrot.lane.b32.xlu0 %v2997, 64
    %v3005 = vpop.permute.xlu0 %3004
    %v3006 = vadd.f32 %v2994, %v2999
    %v3007 = vadd.f32 %v2995, %v3001
    %v3008 = vadd.f32 %v2996, %v3003
    %v3009 = vadd.f32 %v2997, %v3005
    %3010 = vrot.lane.b32.xlu0 %v3006, 32
    %v3011 = vpop.permute.xlu0 %3010
    %3012 = vrot.lane.b32.xlu0 %v3007, 32
    %v3013 = vpop.permute.xlu0 %3012
    %3014 = vrot.lane.b32.xlu0 %v3008, 32
    %v3015 = vpop.permute.xlu0 %3014
    %3016 = vrot.lane.b32.xlu0 %v3009, 32
    %v3017 = vpop.permute.xlu0 %3016
    %v3018 = vadd.f32 %v3006, %v3011
    %v3019 = vadd.f32 %v3007, %v3013
    %v3020 = vadd.f32 %v3008, %v3015
    %v3021 = vadd.f32 %v3009, %v3017
    %v3022 = vld [vmem:[%s2291 + $0x5] sm:$0x1]
    %v3023 = vperm.slane %v3022, 0
    %v3024 = vmul.f32 %v12, %v3023
    %v3025 = vmul.f32 %v13, %v3023
    %v3026 = vmul.f32 %v14, %v3023
    %v3027 = vmul.f32 %v15, %v3023
    %3028 = vrot.lane.b32.xlu0 %v3024, 64
    %v3029 = vpop.permute.xlu0 %3028
    %3030 = vrot.lane.b32.xlu0 %v3025, 64
    %v3031 = vpop.permute.xlu0 %3030
    %3032 = vrot.lane.b32.xlu0 %v3026, 64
    %v3033 = vpop.permute.xlu0 %3032
    %3034 = vrot.lane.b32.xlu0 %v3027, 64
    %v3035 = vpop.permute.xlu0 %3034
    %v3036 = vadd.f32 %v3024, %v3029
    %v3037 = vadd.f32 %v3025, %v3031
    %v3038 = vadd.f32 %v3026, %v3033
    %v3039 = vadd.f32 %v3027, %v3035
    %3040 = vrot.lane.b32.xlu0 %v3036, 32
    %v3041 = vpop.permute.xlu0 %3040
    %3042 = vrot.lane.b32.xlu0 %v3037, 32
    %v3043 = vpop.permute.xlu0 %3042
    %3044 = vrot.lane.b32.xlu0 %v3038, 32
    %v3045 = vpop.permute.xlu0 %3044
    %3046 = vrot.lane.b32.xlu0 %v3039, 32
    %v3047 = vpop.permute.xlu0 %3046
    %v3048 = vadd.f32 %v3036, %v3041
    %v3049 = vadd.f32 %v3037, %v3043
    %v3050 = vadd.f32 %v3038, %v3045
    %v3051 = vadd.f32 %v3039, %v3047
    %v3053 = vsel %vm76, %v3018, 0
    %v3056 = vsel %vm76, %v3019, 0
    %v3059 = vsel %vm76, %v3020, 0
    %v3062 = vsel %vm76, %v3021, 0
    %3064 = vmatpush.msra.mxu0 0.0
    %3065 = vmatpush.msra.mxu0 0.0
    %3066 = vmatpush.msra.mxu0 0.0
    %3067 = vmatpush.msra.mxu0 0.0
    %3068 = vmatpush.msra.mxu0 0.0
    %3069 = vmatpush.msra.mxu0 0.0
    %3070 = vmatpush.msra.mxu0 0.0
    %3071 = vmatpush.msra.mxu0 0.0
    %3072 = vmatpush.msra.mxu0 0.0
    %3073 = vmatpush.msra.mxu0 0.0
    %3074 = vmatpush.msra.mxu0 0.0
    %3075 = vmatpush.msra.mxu0 0.0
    %v3076 = vand.u32 %v3051, 4294901760
    %3077 = vmatpush.msra.mxu0 %v3076
    %v3078 = vand.u32 %v3050, 4294901760
    %3079 = vmatpush.msra.mxu0 %v3078
    %v3080 = vand.u32 %v3049, 4294901760
    %3081 = vmatpush.msra.mxu0 %v3080
    %v3082 = vand.u32 %v3048, 4294901760
    %3083 = vmatpush.msra.mxu0 %v3082
    %v3084 = vand.u32 %v3053, 4294901760
    %v3085 = vsub.f32 %v3053, %v3084
    %v3086 = vand.u32 %v3085, 4294901760
    %v3087 = vsub.f32 %v3085, %v3086
    %v3088 = vand.u32 %v3087, 4294901760
    %3089 = vmatmul.f32.gmra.mxu0 %v3088
    %v3090 = vpop.f32.mrf.mxu0
    %v3091 = vadd.f32 0.0, %v3090
    %v3092 = vand.u32 %v3056, 4294901760
    %v3093 = vsub.f32 %v3056, %v3092
    %v3094 = vand.u32 %v3093, 4294901760
    %v3095 = vsub.f32 %v3093, %v3094
    %v3096 = vand.u32 %v3095, 4294901760
    %3097 = vmatmul.f32.gmra.mxu0 %v3096
    %v3098 = vpop.f32.mrf.mxu0
    %v3099 = vadd.f32 0.0, %v3098
    %v3100 = vand.u32 %v3059, 4294901760
    %v3101 = vsub.f32 %v3059, %v3100
    %v3102 = vand.u32 %v3101, 4294901760
    %v3103 = vsub.f32 %v3101, %v3102
    %v3104 = vand.u32 %v3103, 4294901760
    %3105 = vmatmul.f32.gmra.mxu0 %v3104
    %v3106 = vpop.f32.mrf.mxu0
    %v3107 = vadd.f32 0.0, %v3106
    %v3108 = vand.u32 %v3062, 4294901760
    %v3109 = vsub.f32 %v3062, %v3108
    %v3110 = vand.u32 %v3109, 4294901760
    %v3111 = vsub.f32 %v3109, %v3110
    %v3112 = vand.u32 %v3111, 4294901760
    %3113 = vmatmul.f32.gmra.mxu0 %v3112
    %v3114 = vpop.f32.mrf.mxu0
    %v3115 = vadd.f32 0.0, %v3114
    %3116 = vdwg.mxu0
    %3117 = vmatpush.msra.mxu0 0.0
    %3118 = vmatpush.msra.mxu0 0.0
    %3119 = vmatpush.msra.mxu0 0.0
    %3120 = vmatpush.msra.mxu0 0.0
    %3121 = vmatpush.msra.mxu0 0.0
    %3122 = vmatpush.msra.mxu0 0.0
    %3123 = vmatpush.msra.mxu0 0.0
    %3124 = vmatpush.msra.mxu0 0.0
    %3125 = vmatpush.msra.mxu0 0.0
    %3126 = vmatpush.msra.mxu0 0.0
    %3127 = vmatpush.msra.mxu0 0.0
    %3128 = vmatpush.msra.mxu0 0.0
    %v3129 = vand.u32 %v3051, 4294901760
    %v3130 = vsub.f32 %v3051, %v3129
    %v3131 = vand.u32 %v3130, 4294901760
    %v3132 = vsub.f32 %v3130, %v3131
    %v3133 = vand.u32 %v3132, 4294901760
    %3134 = vmatpush.msra.mxu0 %v3133
    %v3135 = vand.u32 %v3050, 4294901760
    %v3136 = vsub.f32 %v3050, %v3135
    %v3137 = vand.u32 %v3136, 4294901760
    %v3138 = vsub.f32 %v3136, %v3137
    %v3139 = vand.u32 %v3138, 4294901760
    %3140 = vmatpush.msra.mxu0 %v3139
    %v3141 = vand.u32 %v3049, 4294901760
    %v3142 = vsub.f32 %v3049, %v3141
    %v3143 = vand.u32 %v3142, 4294901760
    %v3144 = vsub.f32 %v3142, %v3143
    %v3145 = vand.u32 %v3144, 4294901760
    %3146 = vmatpush.msra.mxu0 %v3145
    %v3147 = vand.u32 %v3048, 4294901760
    %v3148 = vsub.f32 %v3048, %v3147
    %v3149 = vand.u32 %v3148, 4294901760
    %v3150 = vsub.f32 %v3148, %v3149
    %v3151 = vand.u32 %v3150, 4294901760
    %3152 = vmatpush.msra.mxu0 %v3151
    %v3153 = vand.u32 %v3053, 4294901760
    %3154 = vmatmul.f32.gmra.mxu0 %v3153
    %v3155 = vpop.f32.mrf.mxu0
    %v3156 = vadd.f32 %v3091, %v3155
    %v3157 = vand.u32 %v3056, 4294901760
    %3158 = vmatmul.f32.gmra.mxu0 %v3157
    %v3159 = vpop.f32.mrf.mxu0
    %v3160 = vadd.f32 %v3099, %v3159
    %v3161 = vand.u32 %v3059, 4294901760
    %3162 = vmatmul.f32.gmra.mxu0 %v3161
    %v3163 = vpop.f32.mrf.mxu0
    %v3164 = vadd.f32 %v3107, %v3163
    %v3165 = vand.u32 %v3062, 4294901760
    %3166 = vmatmul.f32.gmra.mxu0 %v3165
    %v3167 = vpop.f32.mrf.mxu0
    %v3168 = vadd.f32 %v3115, %v3167
    %3169 = vdwg.mxu0
    %3170 = vmatpush.msra.mxu0 0.0
    %3171 = vmatpush.msra.mxu0 0.0
    %3172 = vmatpush.msra.mxu0 0.0
    %3173 = vmatpush.msra.mxu0 0.0
    %3174 = vmatpush.msra.mxu0 0.0
    %3175 = vmatpush.msra.mxu0 0.0
    %3176 = vmatpush.msra.mxu0 0.0
    %3177 = vmatpush.msra.mxu0 0.0
    %3178 = vmatpush.msra.mxu0 0.0
    %3179 = vmatpush.msra.mxu0 0.0
    %3180 = vmatpush.msra.mxu0 0.0
    %3181 = vmatpush.msra.mxu0 0.0
    %v3182 = vand.u32 %v3051, 4294901760
    %v3183 = vsub.f32 %v3051, %v3182
    %3184 = vmatpush.msra.mxu0 %v3183
    %v3185 = vand.u32 %v3050, 4294901760
    %v3186 = vsub.f32 %v3050, %v3185
    %3187 = vmatpush.msra.mxu0 %v3186
    %v3188 = vand.u32 %v3049, 4294901760
    %v3189 = vsub.f32 %v3049, %v3188
    %3190 = vmatpush.msra.mxu0 %v3189
    %v3191 = vand.u32 %v3048, 4294901760
    %v3192 = vsub.f32 %v3048, %v3191
    %3193 = vmatpush.msra.mxu0 %v3192
    %v3194 = vand.u32 %v3053, 4294901760
    %v3195 = vsub.f32 %v3053, %v3194
    %3196 = vmatmul.f32.gmra.mxu0 %v3195
    %v3197 = vpop.f32.mrf.mxu0
    %v3198 = vadd.f32 %v3156, %v3197
    %v3199 = vand.u32 %v3056, 4294901760
    %v3200 = vsub.f32 %v3056, %v3199
    %3201 = vmatmul.f32.gmra.mxu0 %v3200
    %v3202 = vpop.f32.mrf.mxu0
    %v3203 = vadd.f32 %v3160, %v3202
    %v3204 = vand.u32 %v3059, 4294901760
    %v3205 = vsub.f32 %v3059, %v3204
    %3206 = vmatmul.f32.gmra.mxu0 %v3205
    %v3207 = vpop.f32.mrf.mxu0
    %v3208 = vadd.f32 %v3164, %v3207
    %v3209 = vand.u32 %v3062, 4294901760
    %v3210 = vsub.f32 %v3062, %v3209
    %3211 = vmatmul.f32.gmra.mxu0 %v3210
    %v3212 = vpop.f32.mrf.mxu0
    %v3213 = vadd.f32 %v3168, %v3212
    %3214 = vdwg.mxu0
    %3215 = vmatpush.msra.mxu0 0.0
    %3216 = vmatpush.msra.mxu0 0.0
    %3217 = vmatpush.msra.mxu0 0.0
    %3218 = vmatpush.msra.mxu0 0.0
    %3219 = vmatpush.msra.mxu0 0.0
    %3220 = vmatpush.msra.mxu0 0.0
    %3221 = vmatpush.msra.mxu0 0.0
    %3222 = vmatpush.msra.mxu0 0.0
    %3223 = vmatpush.msra.mxu0 0.0
    %3224 = vmatpush.msra.mxu0 0.0
    %3225 = vmatpush.msra.mxu0 0.0
    %3226 = vmatpush.msra.mxu0 0.0
    %v3227 = vand.u32 %v3051, 4294901760
    %3228 = vmatpush.msra.mxu0 %v3227
    %v3229 = vand.u32 %v3050, 4294901760
    %3230 = vmatpush.msra.mxu0 %v3229
    %v3231 = vand.u32 %v3049, 4294901760
    %3232 = vmatpush.msra.mxu0 %v3231
    %v3233 = vand.u32 %v3048, 4294901760
    %3234 = vmatpush.msra.mxu0 %v3233
    %v3235 = vand.u32 %v3053, 4294901760
    %v3236 = vsub.f32 %v3053, %v3235
    %v3237 = vand.u32 %v3236, 4294901760
    %3238 = vmatmul.f32.gmra.mxu0 %v3237
    %v3239 = vpop.f32.mrf.mxu0
    %v3240 = vadd.f32 %v3198, %v3239
    %v3241 = vand.u32 %v3056, 4294901760
    %v3242 = vsub.f32 %v3056, %v3241
    %v3243 = vand.u32 %v3242, 4294901760
    %3244 = vmatmul.f32.gmra.mxu0 %v3243
    %v3245 = vpop.f32.mrf.mxu0
    %v3246 = vadd.f32 %v3203, %v3245
    %v3247 = vand.u32 %v3059, 4294901760
    %v3248 = vsub.f32 %v3059, %v3247
    %v3249 = vand.u32 %v3248, 4294901760
    %3250 = vmatmul.f32.gmra.mxu0 %v3249
    %v3251 = vpop.f32.mrf.mxu0
    %v3252 = vadd.f32 %v3208, %v3251
    %v3253 = vand.u32 %v3062, 4294901760
    %v3254 = vsub.f32 %v3062, %v3253
    %v3255 = vand.u32 %v3254, 4294901760
    %3256 = vmatmul.f32.gmra.mxu0 %v3255
    %v3257 = vpop.f32.mrf.mxu0
    %v3258 = vadd.f32 %v3213, %v3257
    %3259 = vdwg.mxu0
    %3260 = vmatpush.msra.mxu0 0.0
    %3261 = vmatpush.msra.mxu0 0.0
    %3262 = vmatpush.msra.mxu0 0.0
    %3263 = vmatpush.msra.mxu0 0.0
    %3264 = vmatpush.msra.mxu0 0.0
    %3265 = vmatpush.msra.mxu0 0.0
    %3266 = vmatpush.msra.mxu0 0.0
    %3267 = vmatpush.msra.mxu0 0.0
    %3268 = vmatpush.msra.mxu0 0.0
    %3269 = vmatpush.msra.mxu0 0.0
    %3270 = vmatpush.msra.mxu0 0.0
    %3271 = vmatpush.msra.mxu0 0.0
    %v3272 = vand.u32 %v3051, 4294901760
    %v3273 = vsub.f32 %v3051, %v3272
    %v3274 = vand.u32 %v3273, 4294901760
    %3275 = vmatpush.msra.mxu0 %v3274
    %v3276 = vand.u32 %v3050, 4294901760
    %v3277 = vsub.f32 %v3050, %v3276
    %v3278 = vand.u32 %v3277, 4294901760
    %3279 = vmatpush.msra.mxu0 %v3278
    %v3280 = vand.u32 %v3049, 4294901760
    %v3281 = vsub.f32 %v3049, %v3280
    %v3282 = vand.u32 %v3281, 4294901760
    %3283 = vmatpush.msra.mxu0 %v3282
    %v3284 = vand.u32 %v3048, 4294901760
    %v3285 = vsub.f32 %v3048, %v3284
    %v3286 = vand.u32 %v3285, 4294901760
    %3287 = vmatpush.msra.mxu0 %v3286
    %v3288 = vand.u32 %v3053, 4294901760
    %3289 = vmatmul.f32.gmra.mxu0 %v3288
    %v3290 = vpop.f32.mrf.mxu0
    %v3291 = vadd.f32 %v3240, %v3290
    %v3292 = vand.u32 %v3056, 4294901760
    %3293 = vmatmul.f32.gmra.mxu0 %v3292
    %v3294 = vpop.f32.mrf.mxu0
    %v3295 = vadd.f32 %v3246, %v3294
    %v3296 = vand.u32 %v3059, 4294901760
    %3297 = vmatmul.f32.gmra.mxu0 %v3296
    %v3298 = vpop.f32.mrf.mxu0
    %v3299 = vadd.f32 %v3252, %v3298
    %v3300 = vand.u32 %v3062, 4294901760
    %3301 = vmatmul.f32.gmra.mxu0 %v3300
    %v3302 = vpop.f32.mrf.mxu0
    %v3303 = vadd.f32 %v3258, %v3302
    %3304 = vdwg.mxu0
    %3305 = vmatpush.msra.mxu0 0.0
    %3306 = vmatpush.msra.mxu0 0.0
    %3307 = vmatpush.msra.mxu0 0.0
    %3308 = vmatpush.msra.mxu0 0.0
    %3309 = vmatpush.msra.mxu0 0.0
    %3310 = vmatpush.msra.mxu0 0.0
    %3311 = vmatpush.msra.mxu0 0.0
    %3312 = vmatpush.msra.mxu0 0.0
    %3313 = vmatpush.msra.mxu0 0.0
    %3314 = vmatpush.msra.mxu0 0.0
    %3315 = vmatpush.msra.mxu0 0.0
    %3316 = vmatpush.msra.mxu0 0.0
    %v3317 = vand.u32 %v3051, 4294901760
    %3318 = vmatpush.msra.mxu0 %v3317
    %v3319 = vand.u32 %v3050, 4294901760
    %3320 = vmatpush.msra.mxu0 %v3319
    %v3321 = vand.u32 %v3049, 4294901760
    %3322 = vmatpush.msra.mxu0 %v3321
    %v3323 = vand.u32 %v3048, 4294901760
    %3324 = vmatpush.msra.mxu0 %v3323
    %v3325 = vand.u32 %v3053, 4294901760
    %3326 = vmatmul.f32.gmra.mxu0 %v3325
    %v3327 = vpop.f32.mrf.mxu0
    %v3328 = vadd.f32 %v3291, %v3327
    %v3329 = vand.u32 %v3056, 4294901760
    %3330 = vmatmul.f32.gmra.mxu0 %v3329
    %v3331 = vpop.f32.mrf.mxu0
    %v3332 = vadd.f32 %v3295, %v3331
    %v3333 = vand.u32 %v3059, 4294901760
    %3334 = vmatmul.f32.gmra.mxu0 %v3333
    %v3335 = vpop.f32.mrf.mxu0
    %v3336 = vadd.f32 %v3299, %v3335
    %v3337 = vand.u32 %v3062, 4294901760
    %3338 = vmatmul.f32.gmra.mxu0 %v3337
    %v3339 = vpop.f32.mrf.mxu0
    %v3340 = vadd.f32 %v3303, %v3339
    %3341 = vdwg.mxu0
    %v3342 = vld [vmem:[%s2291 + $0x6] sm:$0x1]
    %v3343 = vperm.slane %v3342, 0
    %v3344 = vmul.f32 %v12, %v3343
    %v3345 = vmul.f32 %v13, %v3343
    %v3346 = vmul.f32 %v14, %v3343
    %v3347 = vmul.f32 %v15, %v3343
    %3348 = vrot.lane.b32.xlu0 %v3344, 64
    %v3349 = vpop.permute.xlu0 %3348
    %3350 = vrot.lane.b32.xlu0 %v3345, 64
    %v3351 = vpop.permute.xlu0 %3350
    %3352 = vrot.lane.b32.xlu0 %v3346, 64
    %v3353 = vpop.permute.xlu0 %3352
    %3354 = vrot.lane.b32.xlu0 %v3347, 64
    %v3355 = vpop.permute.xlu0 %3354
    %v3356 = vadd.f32 %v3344, %v3349
    %v3357 = vadd.f32 %v3345, %v3351
    %v3358 = vadd.f32 %v3346, %v3353
    %v3359 = vadd.f32 %v3347, %v3355
    %3360 = vrot.lane.b32.xlu0 %v3356, 32
    %v3361 = vpop.permute.xlu0 %3360
    %3362 = vrot.lane.b32.xlu0 %v3357, 32
    %v3363 = vpop.permute.xlu0 %3362
    %3364 = vrot.lane.b32.xlu0 %v3358, 32
    %v3365 = vpop.permute.xlu0 %3364
    %3366 = vrot.lane.b32.xlu0 %v3359, 32
    %v3367 = vpop.permute.xlu0 %3366
    %v3368 = vadd.f32 %v3356, %v3361
    %v3369 = vadd.f32 %v3357, %v3363
    %v3370 = vadd.f32 %v3358, %v3365
    %v3371 = vadd.f32 %v3359, %v3367
    %v3372 = vld [vmem:[%s2291 + $0x7] sm:$0x1]
    %v3373 = vperm.slane %v3372, 0
    %v3374 = vmul.f32 %v12, %v3373
    %v3375 = vmul.f32 %v13, %v3373
    %v3376 = vmul.f32 %v14, %v3373
    %v3377 = vmul.f32 %v15, %v3373
    %3378 = vrot.lane.b32.xlu0 %v3374, 64
    %v3379 = vpop.permute.xlu0 %3378
    %3380 = vrot.lane.b32.xlu0 %v3375, 64
    %v3381 = vpop.permute.xlu0 %3380
    %3382 = vrot.lane.b32.xlu0 %v3376, 64
    %v3383 = vpop.permute.xlu0 %3382
    %3384 = vrot.lane.b32.xlu0 %v3377, 64
    %v3385 = vpop.permute.xlu0 %3384
    %v3386 = vadd.f32 %v3374, %v3379
    %v3387 = vadd.f32 %v3375, %v3381
    %v3388 = vadd.f32 %v3376, %v3383
    %v3389 = vadd.f32 %v3377, %v3385
    %3390 = vrot.lane.b32.xlu0 %v3386, 32
    %v3391 = vpop.permute.xlu0 %3390
    %3392 = vrot.lane.b32.xlu0 %v3387, 32
    %v3393 = vpop.permute.xlu0 %3392
    %3394 = vrot.lane.b32.xlu0 %v3388, 32
    %v3395 = vpop.permute.xlu0 %3394
    %3396 = vrot.lane.b32.xlu0 %v3389, 32
    %v3397 = vpop.permute.xlu0 %3396
    %v3398 = vadd.f32 %v3386, %v3391
    %v3399 = vadd.f32 %v3387, %v3393
    %v3400 = vadd.f32 %v3388, %v3395
    %v3401 = vadd.f32 %v3389, %v3397
    %v3403 = vsel %vm76, %v3368, 0
    %v3406 = vsel %vm76, %v3369, 0
    %v3409 = vsel %vm76, %v3370, 0
    %v3412 = vsel %vm76, %v3371, 0
    %3414 = vmatpush.msra.mxu0 0.0
    %3415 = vmatpush.msra.mxu0 0.0
    %3416 = vmatpush.msra.mxu0 0.0
    %3417 = vmatpush.msra.mxu0 0.0
    %3418 = vmatpush.msra.mxu0 0.0
    %3419 = vmatpush.msra.mxu0 0.0
    %3420 = vmatpush.msra.mxu0 0.0
    %3421 = vmatpush.msra.mxu0 0.0
    %3422 = vmatpush.msra.mxu0 0.0
    %3423 = vmatpush.msra.mxu0 0.0
    %3424 = vmatpush.msra.mxu0 0.0
    %3425 = vmatpush.msra.mxu0 0.0
    %v3426 = vand.u32 %v3401, 4294901760
    %3427 = vmatpush.msra.mxu0 %v3426
    %v3428 = vand.u32 %v3400, 4294901760
    %3429 = vmatpush.msra.mxu0 %v3428
    %v3430 = vand.u32 %v3399, 4294901760
    %3431 = vmatpush.msra.mxu0 %v3430
    %v3432 = vand.u32 %v3398, 4294901760
    %3433 = vmatpush.msra.mxu0 %v3432
    %v3434 = vand.u32 %v3403, 4294901760
    %v3435 = vsub.f32 %v3403, %v3434
    %v3436 = vand.u32 %v3435, 4294901760
    %v3437 = vsub.f32 %v3435, %v3436
    %v3438 = vand.u32 %v3437, 4294901760
    %3439 = vmatmul.f32.gmra.mxu0 %v3438
    %v3440 = vpop.f32.mrf.mxu0
    %v3441 = vadd.f32 0.0, %v3440
    %v3442 = vand.u32 %v3406, 4294901760
    %v3443 = vsub.f32 %v3406, %v3442
    %v3444 = vand.u32 %v3443, 4294901760
    %v3445 = vsub.f32 %v3443, %v3444
    %v3446 = vand.u32 %v3445, 4294901760
    %3447 = vmatmul.f32.gmra.mxu0 %v3446
    %v3448 = vpop.f32.mrf.mxu0
    %v3449 = vadd.f32 0.0, %v3448
    %v3450 = vand.u32 %v3409, 4294901760
    %v3451 = vsub.f32 %v3409, %v3450
    %v3452 = vand.u32 %v3451, 4294901760
    %v3453 = vsub.f32 %v3451, %v3452
    %v3454 = vand.u32 %v3453, 4294901760
    %3455 = vmatmul.f32.gmra.mxu0 %v3454
    %v3456 = vpop.f32.mrf.mxu0
    %v3457 = vadd.f32 0.0, %v3456
    %v3458 = vand.u32 %v3412, 4294901760
    %v3459 = vsub.f32 %v3412, %v3458
    %v3460 = vand.u32 %v3459, 4294901760
    %v3461 = vsub.f32 %v3459, %v3460
    %v3462 = vand.u32 %v3461, 4294901760
    %3463 = vmatmul.f32.gmra.mxu0 %v3462
    %v3464 = vpop.f32.mrf.mxu0
    %v3465 = vadd.f32 0.0, %v3464
    %3466 = vdwg.mxu0
    %3467 = vmatpush.msra.mxu0 0.0
    %3468 = vmatpush.msra.mxu0 0.0
    %3469 = vmatpush.msra.mxu0 0.0
    %3470 = vmatpush.msra.mxu0 0.0
    %3471 = vmatpush.msra.mxu0 0.0
    %3472 = vmatpush.msra.mxu0 0.0
    %3473 = vmatpush.msra.mxu0 0.0
    %3474 = vmatpush.msra.mxu0 0.0
    %3475 = vmatpush.msra.mxu0 0.0
    %3476 = vmatpush.msra.mxu0 0.0
    %3477 = vmatpush.msra.mxu0 0.0
    %3478 = vmatpush.msra.mxu0 0.0
    %v3479 = vand.u32 %v3401, 4294901760
    %v3480 = vsub.f32 %v3401, %v3479
    %v3481 = vand.u32 %v3480, 4294901760
    %v3482 = vsub.f32 %v3480, %v3481
    %v3483 = vand.u32 %v3482, 4294901760
    %3484 = vmatpush.msra.mxu0 %v3483
    %v3485 = vand.u32 %v3400, 4294901760
    %v3486 = vsub.f32 %v3400, %v3485
    %v3487 = vand.u32 %v3486, 4294901760
    %v3488 = vsub.f32 %v3486, %v3487
    %v3489 = vand.u32 %v3488, 4294901760
    %3490 = vmatpush.msra.mxu0 %v3489
    %v3491 = vand.u32 %v3399, 4294901760
    %v3492 = vsub.f32 %v3399, %v3491
    %v3493 = vand.u32 %v3492, 4294901760
    %v3494 = vsub.f32 %v3492, %v3493
    %v3495 = vand.u32 %v3494, 4294901760
    %3496 = vmatpush.msra.mxu0 %v3495
    %v3497 = vand.u32 %v3398, 4294901760
    %v3498 = vsub.f32 %v3398, %v3497
    %v3499 = vand.u32 %v3498, 4294901760
    %v3500 = vsub.f32 %v3498, %v3499
    %v3501 = vand.u32 %v3500, 4294901760
    %3502 = vmatpush.msra.mxu0 %v3501
    %v3503 = vand.u32 %v3403, 4294901760
    %3504 = vmatmul.f32.gmra.mxu0 %v3503
    %v3505 = vpop.f32.mrf.mxu0
    %v3506 = vadd.f32 %v3441, %v3505
    %v3507 = vand.u32 %v3406, 4294901760
    %3508 = vmatmul.f32.gmra.mxu0 %v3507
    %v3509 = vpop.f32.mrf.mxu0
    %v3510 = vadd.f32 %v3449, %v3509
    %v3511 = vand.u32 %v3409, 4294901760
    %3512 = vmatmul.f32.gmra.mxu0 %v3511
    %v3513 = vpop.f32.mrf.mxu0
    %v3514 = vadd.f32 %v3457, %v3513
    %v3515 = vand.u32 %v3412, 4294901760
    %3516 = vmatmul.f32.gmra.mxu0 %v3515
    %v3517 = vpop.f32.mrf.mxu0
    %v3518 = vadd.f32 %v3465, %v3517
    %3519 = vdwg.mxu0
    %3520 = vmatpush.msra.mxu0 0.0
    %3521 = vmatpush.msra.mxu0 0.0
    %3522 = vmatpush.msra.mxu0 0.0
    %3523 = vmatpush.msra.mxu0 0.0
    %3524 = vmatpush.msra.mxu0 0.0
    %3525 = vmatpush.msra.mxu0 0.0
    %3526 = vmatpush.msra.mxu0 0.0
    %3527 = vmatpush.msra.mxu0 0.0
    %3528 = vmatpush.msra.mxu0 0.0
    %3529 = vmatpush.msra.mxu0 0.0
    %3530 = vmatpush.msra.mxu0 0.0
    %3531 = vmatpush.msra.mxu0 0.0
    %v3532 = vand.u32 %v3401, 4294901760
    %v3533 = vsub.f32 %v3401, %v3532
    %3534 = vmatpush.msra.mxu0 %v3533
    %v3535 = vand.u32 %v3400, 4294901760
    %v3536 = vsub.f32 %v3400, %v3535
    %3537 = vmatpush.msra.mxu0 %v3536
    %v3538 = vand.u32 %v3399, 4294901760
    %v3539 = vsub.f32 %v3399, %v3538
    %3540 = vmatpush.msra.mxu0 %v3539
    %v3541 = vand.u32 %v3398, 4294901760
    %v3542 = vsub.f32 %v3398, %v3541
    %3543 = vmatpush.msra.mxu0 %v3542
    %v3544 = vand.u32 %v3403, 4294901760
    %v3545 = vsub.f32 %v3403, %v3544
    %3546 = vmatmul.f32.gmra.mxu0 %v3545
    %v3547 = vpop.f32.mrf.mxu0
    %v3548 = vadd.f32 %v3506, %v3547
    %v3549 = vand.u32 %v3406, 4294901760
    %v3550 = vsub.f32 %v3406, %v3549
    %3551 = vmatmul.f32.gmra.mxu0 %v3550
    %v3552 = vpop.f32.mrf.mxu0
    %v3553 = vadd.f32 %v3510, %v3552
    %v3554 = vand.u32 %v3409, 4294901760
    %v3555 = vsub.f32 %v3409, %v3554
    %3556 = vmatmul.f32.gmra.mxu0 %v3555
    %v3557 = vpop.f32.mrf.mxu0
    %v3558 = vadd.f32 %v3514, %v3557
    %v3559 = vand.u32 %v3412, 4294901760
    %v3560 = vsub.f32 %v3412, %v3559
    %3561 = vmatmul.f32.gmra.mxu0 %v3560
    %v3562 = vpop.f32.mrf.mxu0
    %v3563 = vadd.f32 %v3518, %v3562
    %3564 = vdwg.mxu0
    %3565 = vmatpush.msra.mxu0 0.0
    %3566 = vmatpush.msra.mxu0 0.0
    %3567 = vmatpush.msra.mxu0 0.0
    %3568 = vmatpush.msra.mxu0 0.0
    %3569 = vmatpush.msra.mxu0 0.0
    %3570 = vmatpush.msra.mxu0 0.0
    %3571 = vmatpush.msra.mxu0 0.0
    %3572 = vmatpush.msra.mxu0 0.0
    %3573 = vmatpush.msra.mxu0 0.0
    %3574 = vmatpush.msra.mxu0 0.0
    %3575 = vmatpush.msra.mxu0 0.0
    %3576 = vmatpush.msra.mxu0 0.0
    %v3577 = vand.u32 %v3401, 4294901760
    %3578 = vmatpush.msra.mxu0 %v3577
    %v3579 = vand.u32 %v3400, 4294901760
    %3580 = vmatpush.msra.mxu0 %v3579
    %v3581 = vand.u32 %v3399, 4294901760
    %3582 = vmatpush.msra.mxu0 %v3581
    %v3583 = vand.u32 %v3398, 4294901760
    %3584 = vmatpush.msra.mxu0 %v3583
    %v3585 = vand.u32 %v3403, 4294901760
    %v3586 = vsub.f32 %v3403, %v3585
    %v3587 = vand.u32 %v3586, 4294901760
    %3588 = vmatmul.f32.gmra.mxu0 %v3587
    %v3589 = vpop.f32.mrf.mxu0
    %v3590 = vadd.f32 %v3548, %v3589
    %v3591 = vand.u32 %v3406, 4294901760
    %v3592 = vsub.f32 %v3406, %v3591
    %v3593 = vand.u32 %v3592, 4294901760
    %3594 = vmatmul.f32.gmra.mxu0 %v3593
    %v3595 = vpop.f32.mrf.mxu0
    %v3596 = vadd.f32 %v3553, %v3595
    %v3597 = vand.u32 %v3409, 4294901760
    %v3598 = vsub.f32 %v3409, %v3597
    %v3599 = vand.u32 %v3598, 4294901760
    %3600 = vmatmul.f32.gmra.mxu0 %v3599
    %v3601 = vpop.f32.mrf.mxu0
    %v3602 = vadd.f32 %v3558, %v3601
    %v3603 = vand.u32 %v3412, 4294901760
    %v3604 = vsub.f32 %v3412, %v3603
    %v3605 = vand.u32 %v3604, 4294901760
    %3606 = vmatmul.f32.gmra.mxu0 %v3605
    %v3607 = vpop.f32.mrf.mxu0
    %v3608 = vadd.f32 %v3563, %v3607
    %3609 = vdwg.mxu0
    %3610 = vmatpush.msra.mxu0 0.0
    %3611 = vmatpush.msra.mxu0 0.0
    %3612 = vmatpush.msra.mxu0 0.0
    %3613 = vmatpush.msra.mxu0 0.0
    %3614 = vmatpush.msra.mxu0 0.0
    %3615 = vmatpush.msra.mxu0 0.0
    %3616 = vmatpush.msra.mxu0 0.0
    %3617 = vmatpush.msra.mxu0 0.0
    %3618 = vmatpush.msra.mxu0 0.0
    %3619 = vmatpush.msra.mxu0 0.0
    %3620 = vmatpush.msra.mxu0 0.0
    %3621 = vmatpush.msra.mxu0 0.0
    %v3622 = vand.u32 %v3401, 4294901760
    %v3623 = vsub.f32 %v3401, %v3622
    %v3624 = vand.u32 %v3623, 4294901760
    %3625 = vmatpush.msra.mxu0 %v3624
    %v3626 = vand.u32 %v3400, 4294901760
    %v3627 = vsub.f32 %v3400, %v3626
    %v3628 = vand.u32 %v3627, 4294901760
    %3629 = vmatpush.msra.mxu0 %v3628
    %v3630 = vand.u32 %v3399, 4294901760
    %v3631 = vsub.f32 %v3399, %v3630
    %v3632 = vand.u32 %v3631, 4294901760
    %3633 = vmatpush.msra.mxu0 %v3632
    %v3634 = vand.u32 %v3398, 4294901760
    %v3635 = vsub.f32 %v3398, %v3634
    %v3636 = vand.u32 %v3635, 4294901760
    %3637 = vmatpush.msra.mxu0 %v3636
    %v3638 = vand.u32 %v3403, 4294901760
    %3639 = vmatmul.f32.gmra.mxu0 %v3638
    %v3640 = vpop.f32.mrf.mxu0
    %v3641 = vadd.f32 %v3590, %v3640
    %v3642 = vand.u32 %v3406, 4294901760
    %3643 = vmatmul.f32.gmra.mxu0 %v3642
    %v3644 = vpop.f32.mrf.mxu0
    %v3645 = vadd.f32 %v3596, %v3644
    %v3646 = vand.u32 %v3409, 4294901760
    %3647 = vmatmul.f32.gmra.mxu0 %v3646
    %v3648 = vpop.f32.mrf.mxu0
    %v3649 = vadd.f32 %v3602, %v3648
    %v3650 = vand.u32 %v3412, 4294901760
    %3651 = vmatmul.f32.gmra.mxu0 %v3650
    %v3652 = vpop.f32.mrf.mxu0
    %v3653 = vadd.f32 %v3608, %v3652
    %3654 = vdwg.mxu0
    %3655 = vmatpush.msra.mxu0 0.0
    %3656 = vmatpush.msra.mxu0 0.0
    %3657 = vmatpush.msra.mxu0 0.0
    %3658 = vmatpush.msra.mxu0 0.0
    %3659 = vmatpush.msra.mxu0 0.0
    %3660 = vmatpush.msra.mxu0 0.0
    %3661 = vmatpush.msra.mxu0 0.0
    %3662 = vmatpush.msra.mxu0 0.0
    %3663 = vmatpush.msra.mxu0 0.0
    %3664 = vmatpush.msra.mxu0 0.0
    %3665 = vmatpush.msra.mxu0 0.0
    %3666 = vmatpush.msra.mxu0 0.0
    %v3667 = vand.u32 %v3401, 4294901760
    %3668 = vmatpush.msra.mxu0 %v3667
    %v3669 = vand.u32 %v3400, 4294901760
    %3670 = vmatpush.msra.mxu0 %v3669
    %v3671 = vand.u32 %v3399, 4294901760
    %3672 = vmatpush.msra.mxu0 %v3671
    %v3673 = vand.u32 %v3398, 4294901760
    %3674 = vmatpush.msra.mxu0 %v3673
    %v3675 = vand.u32 %v3403, 4294901760
    %3676 = vmatmul.f32.gmra.mxu0 %v3675
    %v3677 = vpop.f32.mrf.mxu0
    %v3678 = vadd.f32 %v3641, %v3677
    %v3679 = vand.u32 %v3406, 4294901760
    %3680 = vmatmul.f32.gmra.mxu0 %v3679
    %v3681 = vpop.f32.mrf.mxu0
    %v3682 = vadd.f32 %v3645, %v3681
    %v3683 = vand.u32 %v3409, 4294901760
    %3684 = vmatmul.f32.gmra.mxu0 %v3683
    %v3685 = vpop.f32.mrf.mxu0
    %v3686 = vadd.f32 %v3649, %v3685
    %v3687 = vand.u32 %v3412, 4294901760
    %3688 = vmatmul.f32.gmra.mxu0 %v3687
    %v3689 = vpop.f32.mrf.mxu0
    %v3690 = vadd.f32 %v3653, %v3689
    %3691 = vdwg.mxu0
    %v3693 = vsel %vm76, %v2628, 0
    %v3696 = vsel %vm76, %v2632, 0
    %v3699 = vsel %vm76, %v2636, 0
    %v3702 = vsel %vm76, %v2640, 0
    %3704 = vmatpush.msra.mxu0 0.0
    %3705 = vmatpush.msra.mxu0 0.0
    %3706 = vmatpush.msra.mxu0 0.0
    %3707 = vmatpush.msra.mxu0 0.0
    %3708 = vmatpush.msra.mxu0 0.0
    %3709 = vmatpush.msra.mxu0 0.0
    %3710 = vmatpush.msra.mxu0 0.0
    %3711 = vmatpush.msra.mxu0 0.0
    %3712 = vmatpush.msra.mxu0 0.0
    %3713 = vmatpush.msra.mxu0 0.0
    %3714 = vmatpush.msra.mxu0 0.0
    %3715 = vmatpush.msra.mxu0 0.0
    %v3716 = vand.u32 %v2990, 4294901760
    %3717 = vmatpush.msra.mxu0 %v3716
    %v3718 = vand.u32 %v2986, 4294901760
    %3719 = vmatpush.msra.mxu0 %v3718
    %v3720 = vand.u32 %v2982, 4294901760
    %3721 = vmatpush.msra.mxu0 %v3720
    %v3722 = vand.u32 %v2978, 4294901760
    %3723 = vmatpush.msra.mxu0 %v3722
    %v3724 = vand.u32 %v3693, 4294901760
    %v3725 = vsub.f32 %v3693, %v3724
    %v3726 = vand.u32 %v3725, 4294901760
    %v3727 = vsub.f32 %v3725, %v3726
    %v3728 = vand.u32 %v3727, 4294901760
    %3729 = vmatmul.f32.gmra.mxu0 %v3728
    %v3730 = vpop.f32.mrf.mxu0
    %v3731 = vadd.f32 0.0, %v3730
    %v3732 = vand.u32 %v3696, 4294901760
    %v3733 = vsub.f32 %v3696, %v3732
    %v3734 = vand.u32 %v3733, 4294901760
    %v3735 = vsub.f32 %v3733, %v3734
    %v3736 = vand.u32 %v3735, 4294901760
    %3737 = vmatmul.f32.gmra.mxu0 %v3736
    %v3738 = vpop.f32.mrf.mxu0
    %v3739 = vadd.f32 0.0, %v3738
    %v3740 = vand.u32 %v3699, 4294901760
    %v3741 = vsub.f32 %v3699, %v3740
    %v3742 = vand.u32 %v3741, 4294901760
    %v3743 = vsub.f32 %v3741, %v3742
    %v3744 = vand.u32 %v3743, 4294901760
    %3745 = vmatmul.f32.gmra.mxu0 %v3744
    %v3746 = vpop.f32.mrf.mxu0
    %v3747 = vadd.f32 0.0, %v3746
    %v3748 = vand.u32 %v3702, 4294901760
    %v3749 = vsub.f32 %v3702, %v3748
    %v3750 = vand.u32 %v3749, 4294901760
    %v3751 = vsub.f32 %v3749, %v3750
    %v3752 = vand.u32 %v3751, 4294901760
    %3753 = vmatmul.f32.gmra.mxu0 %v3752
    %v3754 = vpop.f32.mrf.mxu0
    %v3755 = vadd.f32 0.0, %v3754
    %3756 = vdwg.mxu0
    %3757 = vmatpush.msra.mxu0 0.0
    %3758 = vmatpush.msra.mxu0 0.0
    %3759 = vmatpush.msra.mxu0 0.0
    %3760 = vmatpush.msra.mxu0 0.0
    %3761 = vmatpush.msra.mxu0 0.0
    %3762 = vmatpush.msra.mxu0 0.0
    %3763 = vmatpush.msra.mxu0 0.0
    %3764 = vmatpush.msra.mxu0 0.0
    %3765 = vmatpush.msra.mxu0 0.0
    %3766 = vmatpush.msra.mxu0 0.0
    %3767 = vmatpush.msra.mxu0 0.0
    %3768 = vmatpush.msra.mxu0 0.0
    %v3769 = vand.u32 %v2990, 4294901760
    %v3770 = vsub.f32 %v2990, %v3769
    %v3771 = vand.u32 %v3770, 4294901760
    %v3772 = vsub.f32 %v3770, %v3771
    %v3773 = vand.u32 %v3772, 4294901760
    %3774 = vmatpush.msra.mxu0 %v3773
    %v3775 = vand.u32 %v2986, 4294901760
    %v3776 = vsub.f32 %v2986, %v3775
    %v3777 = vand.u32 %v3776, 4294901760
    %v3778 = vsub.f32 %v3776, %v3777
    %v3779 = vand.u32 %v3778, 4294901760
    %3780 = vmatpush.msra.mxu0 %v3779
    %v3781 = vand.u32 %v2982, 4294901760
    %v3782 = vsub.f32 %v2982, %v3781
    %v3783 = vand.u32 %v3782, 4294901760
    %v3784 = vsub.f32 %v3782, %v3783
    %v3785 = vand.u32 %v3784, 4294901760
    %3786 = vmatpush.msra.mxu0 %v3785
    %v3787 = vand.u32 %v2978, 4294901760
    %v3788 = vsub.f32 %v2978, %v3787
    %v3789 = vand.u32 %v3788, 4294901760
    %v3790 = vsub.f32 %v3788, %v3789
    %v3791 = vand.u32 %v3790, 4294901760
    %3792 = vmatpush.msra.mxu0 %v3791
    %v3793 = vand.u32 %v3693, 4294901760
    %3794 = vmatmul.f32.gmra.mxu0 %v3793
    %v3795 = vpop.f32.mrf.mxu0
    %v3796 = vadd.f32 %v3731, %v3795
    %v3797 = vand.u32 %v3696, 4294901760
    %3798 = vmatmul.f32.gmra.mxu0 %v3797
    %v3799 = vpop.f32.mrf.mxu0
    %v3800 = vadd.f32 %v3739, %v3799
    %v3801 = vand.u32 %v3699, 4294901760
    %3802 = vmatmul.f32.gmra.mxu0 %v3801
    %v3803 = vpop.f32.mrf.mxu0
    %v3804 = vadd.f32 %v3747, %v3803
    %v3805 = vand.u32 %v3702, 4294901760
    %3806 = vmatmul.f32.gmra.mxu0 %v3805
    %v3807 = vpop.f32.mrf.mxu0
    %v3808 = vadd.f32 %v3755, %v3807
    %3809 = vdwg.mxu0
    %3810 = vmatpush.msra.mxu0 0.0
    %3811 = vmatpush.msra.mxu0 0.0
    %3812 = vmatpush.msra.mxu0 0.0
    %3813 = vmatpush.msra.mxu0 0.0
    %3814 = vmatpush.msra.mxu0 0.0
    %3815 = vmatpush.msra.mxu0 0.0
    %3816 = vmatpush.msra.mxu0 0.0
    %3817 = vmatpush.msra.mxu0 0.0
    %3818 = vmatpush.msra.mxu0 0.0
    %3819 = vmatpush.msra.mxu0 0.0
    %3820 = vmatpush.msra.mxu0 0.0
    %3821 = vmatpush.msra.mxu0 0.0
    %v3822 = vand.u32 %v2990, 4294901760
    %v3823 = vsub.f32 %v2990, %v3822
    %3824 = vmatpush.msra.mxu0 %v3823
    %v3825 = vand.u32 %v2986, 4294901760
    %v3826 = vsub.f32 %v2986, %v3825
    %3827 = vmatpush.msra.mxu0 %v3826
    %v3828 = vand.u32 %v2982, 4294901760
    %v3829 = vsub.f32 %v2982, %v3828
    %3830 = vmatpush.msra.mxu0 %v3829
    %v3831 = vand.u32 %v2978, 4294901760
    %v3832 = vsub.f32 %v2978, %v3831
    %3833 = vmatpush.msra.mxu0 %v3832
    %v3834 = vand.u32 %v3693, 4294901760
    %v3835 = vsub.f32 %v3693, %v3834
    %3836 = vmatmul.f32.gmra.mxu0 %v3835
    %v3837 = vpop.f32.mrf.mxu0
    %v3838 = vadd.f32 %v3796, %v3837
    %v3839 = vand.u32 %v3696, 4294901760
    %v3840 = vsub.f32 %v3696, %v3839
    %3841 = vmatmul.f32.gmra.mxu0 %v3840
    %v3842 = vpop.f32.mrf.mxu0
    %v3843 = vadd.f32 %v3800, %v3842
    %v3844 = vand.u32 %v3699, 4294901760
    %v3845 = vsub.f32 %v3699, %v3844
    %3846 = vmatmul.f32.gmra.mxu0 %v3845
    %v3847 = vpop.f32.mrf.mxu0
    %v3848 = vadd.f32 %v3804, %v3847
    %v3849 = vand.u32 %v3702, 4294901760
    %v3850 = vsub.f32 %v3702, %v3849
    %3851 = vmatmul.f32.gmra.mxu0 %v3850
    %v3852 = vpop.f32.mrf.mxu0
    %v3853 = vadd.f32 %v3808, %v3852
    %3854 = vdwg.mxu0
    %3855 = vmatpush.msra.mxu0 0.0
    %3856 = vmatpush.msra.mxu0 0.0
    %3857 = vmatpush.msra.mxu0 0.0
    %3858 = vmatpush.msra.mxu0 0.0
    %3859 = vmatpush.msra.mxu0 0.0
    %3860 = vmatpush.msra.mxu0 0.0
    %3861 = vmatpush.msra.mxu0 0.0
    %3862 = vmatpush.msra.mxu0 0.0
    %3863 = vmatpush.msra.mxu0 0.0
    %3864 = vmatpush.msra.mxu0 0.0
    %3865 = vmatpush.msra.mxu0 0.0
    %3866 = vmatpush.msra.mxu0 0.0
    %v3867 = vand.u32 %v2990, 4294901760
    %3868 = vmatpush.msra.mxu0 %v3867
    %v3869 = vand.u32 %v2986, 4294901760
    %3870 = vmatpush.msra.mxu0 %v3869
    %v3871 = vand.u32 %v2982, 4294901760
    %3872 = vmatpush.msra.mxu0 %v3871
    %v3873 = vand.u32 %v2978, 4294901760
    %3874 = vmatpush.msra.mxu0 %v3873
    %v3875 = vand.u32 %v3693, 4294901760
    %v3876 = vsub.f32 %v3693, %v3875
    %v3877 = vand.u32 %v3876, 4294901760
    %3878 = vmatmul.f32.gmra.mxu0 %v3877
    %v3879 = vpop.f32.mrf.mxu0
    %v3880 = vadd.f32 %v3838, %v3879
    %v3881 = vand.u32 %v3696, 4294901760
    %v3882 = vsub.f32 %v3696, %v3881
    %v3883 = vand.u32 %v3882, 4294901760
    %3884 = vmatmul.f32.gmra.mxu0 %v3883
    %v3885 = vpop.f32.mrf.mxu0
    %v3886 = vadd.f32 %v3843, %v3885
    %v3887 = vand.u32 %v3699, 4294901760
    %v3888 = vsub.f32 %v3699, %v3887
    %v3889 = vand.u32 %v3888, 4294901760
    %3890 = vmatmul.f32.gmra.mxu0 %v3889
    %v3891 = vpop.f32.mrf.mxu0
    %v3892 = vadd.f32 %v3848, %v3891
    %v3893 = vand.u32 %v3702, 4294901760
    %v3894 = vsub.f32 %v3702, %v3893
    %v3895 = vand.u32 %v3894, 4294901760
    %3896 = vmatmul.f32.gmra.mxu0 %v3895
    %v3897 = vpop.f32.mrf.mxu0
    %v3898 = vadd.f32 %v3853, %v3897
    %3899 = vdwg.mxu0
    %3900 = vmatpush.msra.mxu0 0.0
    %3901 = vmatpush.msra.mxu0 0.0
    %3902 = vmatpush.msra.mxu0 0.0
    %3903 = vmatpush.msra.mxu0 0.0
    %3904 = vmatpush.msra.mxu0 0.0
    %3905 = vmatpush.msra.mxu0 0.0
    %3906 = vmatpush.msra.mxu0 0.0
    %3907 = vmatpush.msra.mxu0 0.0
    %3908 = vmatpush.msra.mxu0 0.0
    %3909 = vmatpush.msra.mxu0 0.0
    %3910 = vmatpush.msra.mxu0 0.0
    %3911 = vmatpush.msra.mxu0 0.0
    %v3912 = vand.u32 %v2990, 4294901760
    %v3913 = vsub.f32 %v2990, %v3912
    %v3914 = vand.u32 %v3913, 4294901760
    %3915 = vmatpush.msra.mxu0 %v3914
    %v3916 = vand.u32 %v2986, 4294901760
    %v3917 = vsub.f32 %v2986, %v3916
    %v3918 = vand.u32 %v3917, 4294901760
    %3919 = vmatpush.msra.mxu0 %v3918
    %v3920 = vand.u32 %v2982, 4294901760
    %v3921 = vsub.f32 %v2982, %v3920
    %v3922 = vand.u32 %v3921, 4294901760
    %3923 = vmatpush.msra.mxu0 %v3922
    %v3924 = vand.u32 %v2978, 4294901760
    %v3925 = vsub.f32 %v2978, %v3924
    %v3926 = vand.u32 %v3925, 4294901760
    %3927 = vmatpush.msra.mxu0 %v3926
    %v3928 = vand.u32 %v3693, 4294901760
    %3929 = vmatmul.f32.gmra.mxu0 %v3928
    %v3930 = vpop.f32.mrf.mxu0
    %v3931 = vadd.f32 %v3880, %v3930
    %v3932 = vand.u32 %v3696, 4294901760
    %3933 = vmatmul.f32.gmra.mxu0 %v3932
    %v3934 = vpop.f32.mrf.mxu0
    %v3935 = vadd.f32 %v3886, %v3934
    %v3936 = vand.u32 %v3699, 4294901760
    %3937 = vmatmul.f32.gmra.mxu0 %v3936
    %v3938 = vpop.f32.mrf.mxu0
    %v3939 = vadd.f32 %v3892, %v3938
    %v3940 = vand.u32 %v3702, 4294901760
    %3941 = vmatmul.f32.gmra.mxu0 %v3940
    %v3942 = vpop.f32.mrf.mxu0
    %v3943 = vadd.f32 %v3898, %v3942
    %3944 = vdwg.mxu0
    %3945 = vmatpush.msra.mxu0 0.0
    %3946 = vmatpush.msra.mxu0 0.0
    %3947 = vmatpush.msra.mxu0 0.0
    %3948 = vmatpush.msra.mxu0 0.0
    %3949 = vmatpush.msra.mxu0 0.0
    %3950 = vmatpush.msra.mxu0 0.0
    %3951 = vmatpush.msra.mxu0 0.0
    %3952 = vmatpush.msra.mxu0 0.0
    %3953 = vmatpush.msra.mxu0 0.0
    %3954 = vmatpush.msra.mxu0 0.0
    %3955 = vmatpush.msra.mxu0 0.0
    %3956 = vmatpush.msra.mxu0 0.0
    %v3957 = vand.u32 %v2990, 4294901760
    %3958 = vmatpush.msra.mxu0 %v3957
    %v3959 = vand.u32 %v2986, 4294901760
    %3960 = vmatpush.msra.mxu0 %v3959
    %v3961 = vand.u32 %v2982, 4294901760
    %3962 = vmatpush.msra.mxu0 %v3961
    %v3963 = vand.u32 %v2978, 4294901760
    %3964 = vmatpush.msra.mxu0 %v3963
    %v3965 = vand.u32 %v3693, 4294901760
    %3966 = vmatmul.f32.gmra.mxu0 %v3965
    %v3967 = vpop.f32.mrf.mxu0
    %v3968 = vadd.f32 %v3931, %v3967
    %v3969 = vand.u32 %v3696, 4294901760
    %3970 = vmatmul.f32.gmra.mxu0 %v3969
    %v3971 = vpop.f32.mrf.mxu0
    %v3972 = vadd.f32 %v3935, %v3971
    %v3973 = vand.u32 %v3699, 4294901760
    %3974 = vmatmul.f32.gmra.mxu0 %v3973
    %v3975 = vpop.f32.mrf.mxu0
    %v3976 = vadd.f32 %v3939, %v3975
    %v3977 = vand.u32 %v3702, 4294901760
    %3978 = vmatmul.f32.gmra.mxu0 %v3977
    %v3979 = vpop.f32.mrf.mxu0
    %v3980 = vadd.f32 %v3943, %v3979
    %3981 = vdwg.mxu0
    %v3983 = vsel %vm76, %v3328, 0
    %v3986 = vsel %vm76, %v3332, 0
    %v3989 = vsel %vm76, %v3336, 0
    %v3992 = vsel %vm76, %v3340, 0
    %3994 = vmatpush.msra.mxu0 0.0
    %3995 = vmatpush.msra.mxu0 0.0
    %3996 = vmatpush.msra.mxu0 0.0
    %3997 = vmatpush.msra.mxu0 0.0
    %3998 = vmatpush.msra.mxu0 0.0
    %3999 = vmatpush.msra.mxu0 0.0
    %4000 = vmatpush.msra.mxu0 0.0
    %4001 = vmatpush.msra.mxu0 0.0
    %4002 = vmatpush.msra.mxu0 0.0
    %4003 = vmatpush.msra.mxu0 0.0
    %4004 = vmatpush.msra.mxu0 0.0
    %4005 = vmatpush.msra.mxu0 0.0
    %v4006 = vand.u32 %v3690, 4294901760
    %4007 = vmatpush.msra.mxu0 %v4006
    %v4008 = vand.u32 %v3686, 4294901760
    %4009 = vmatpush.msra.mxu0 %v4008
    %v4010 = vand.u32 %v3682, 4294901760
    %4011 = vmatpush.msra.mxu0 %v4010
    %v4012 = vand.u32 %v3678, 4294901760
    %4013 = vmatpush.msra.mxu0 %v4012
    %v4014 = vand.u32 %v3983, 4294901760
    %v4015 = vsub.f32 %v3983, %v4014
    %v4016 = vand.u32 %v4015, 4294901760
    %v4017 = vsub.f32 %v4015, %v4016
    %v4018 = vand.u32 %v4017, 4294901760
    %4019 = vmatmul.f32.gmra.mxu0 %v4018
    %v4020 = vpop.f32.mrf.mxu0
    %v4021 = vadd.f32 0.0, %v4020
    %v4022 = vand.u32 %v3986, 4294901760
    %v4023 = vsub.f32 %v3986, %v4022
    %v4024 = vand.u32 %v4023, 4294901760
    %v4025 = vsub.f32 %v4023, %v4024
    %v4026 = vand.u32 %v4025, 4294901760
    %4027 = vmatmul.f32.gmra.mxu0 %v4026
    %v4028 = vpop.f32.mrf.mxu0
    %v4029 = vadd.f32 0.0, %v4028
    %v4030 = vand.u32 %v3989, 4294901760
    %v4031 = vsub.f32 %v3989, %v4030
    %v4032 = vand.u32 %v4031, 4294901760
    %v4033 = vsub.f32 %v4031, %v4032
    %v4034 = vand.u32 %v4033, 4294901760
    %4035 = vmatmul.f32.gmra.mxu0 %v4034
    %v4036 = vpop.f32.mrf.mxu0
    %v4037 = vadd.f32 0.0, %v4036
    %v4038 = vand.u32 %v3992, 4294901760
    %v4039 = vsub.f32 %v3992, %v4038
    %v4040 = vand.u32 %v4039, 4294901760
    %v4041 = vsub.f32 %v4039, %v4040
    %v4042 = vand.u32 %v4041, 4294901760
    %4043 = vmatmul.f32.gmra.mxu0 %v4042
    %v4044 = vpop.f32.mrf.mxu0
    %v4045 = vadd.f32 0.0, %v4044
    %4046 = vdwg.mxu0
    %4047 = vmatpush.msra.mxu0 0.0
    %4048 = vmatpush.msra.mxu0 0.0
    %4049 = vmatpush.msra.mxu0 0.0
    %4050 = vmatpush.msra.mxu0 0.0
    %4051 = vmatpush.msra.mxu0 0.0
    %4052 = vmatpush.msra.mxu0 0.0
    %4053 = vmatpush.msra.mxu0 0.0
    %4054 = vmatpush.msra.mxu0 0.0
    %4055 = vmatpush.msra.mxu0 0.0
    %4056 = vmatpush.msra.mxu0 0.0
    %4057 = vmatpush.msra.mxu0 0.0
    %4058 = vmatpush.msra.mxu0 0.0
    %v4059 = vand.u32 %v3690, 4294901760
    %v4060 = vsub.f32 %v3690, %v4059
    %v4061 = vand.u32 %v4060, 4294901760
    %v4062 = vsub.f32 %v4060, %v4061
    %v4063 = vand.u32 %v4062, 4294901760
    %4064 = vmatpush.msra.mxu0 %v4063
    %v4065 = vand.u32 %v3686, 4294901760
    %v4066 = vsub.f32 %v3686, %v4065
    %v4067 = vand.u32 %v4066, 4294901760
    %v4068 = vsub.f32 %v4066, %v4067
    %v4069 = vand.u32 %v4068, 4294901760
    %4070 = vmatpush.msra.mxu0 %v4069
    %v4071 = vand.u32 %v3682, 4294901760
    %v4072 = vsub.f32 %v3682, %v4071
    %v4073 = vand.u32 %v4072, 4294901760
    %v4074 = vsub.f32 %v4072, %v4073
    %v4075 = vand.u32 %v4074, 4294901760
    %4076 = vmatpush.msra.mxu0 %v4075
    %v4077 = vand.u32 %v3678, 4294901760
    %v4078 = vsub.f32 %v3678, %v4077
    %v4079 = vand.u32 %v4078, 4294901760
    %v4080 = vsub.f32 %v4078, %v4079
    %v4081 = vand.u32 %v4080, 4294901760
    %4082 = vmatpush.msra.mxu0 %v4081
    %v4083 = vand.u32 %v3983, 4294901760
    %4084 = vmatmul.f32.gmra.mxu0 %v4083
    %v4085 = vpop.f32.mrf.mxu0
    %v4086 = vadd.f32 %v4021, %v4085
    %v4087 = vand.u32 %v3986, 4294901760
    %4088 = vmatmul.f32.gmra.mxu0 %v4087
    %v4089 = vpop.f32.mrf.mxu0
    %v4090 = vadd.f32 %v4029, %v4089
    %v4091 = vand.u32 %v3989, 4294901760
    %4092 = vmatmul.f32.gmra.mxu0 %v4091
    %v4093 = vpop.f32.mrf.mxu0
    %v4094 = vadd.f32 %v4037, %v4093
    %v4095 = vand.u32 %v3992, 4294901760
    %4096 = vmatmul.f32.gmra.mxu0 %v4095
    %v4097 = vpop.f32.mrf.mxu0
    %v4098 = vadd.f32 %v4045, %v4097
    %4099 = vdwg.mxu0
    %4100 = vmatpush.msra.mxu0 0.0
    %4101 = vmatpush.msra.mxu0 0.0
    %4102 = vmatpush.msra.mxu0 0.0
    %4103 = vmatpush.msra.mxu0 0.0
    %4104 = vmatpush.msra.mxu0 0.0
    %4105 = vmatpush.msra.mxu0 0.0
    %4106 = vmatpush.msra.mxu0 0.0
    %4107 = vmatpush.msra.mxu0 0.0
    %4108 = vmatpush.msra.mxu0 0.0
    %4109 = vmatpush.msra.mxu0 0.0
    %4110 = vmatpush.msra.mxu0 0.0
    %4111 = vmatpush.msra.mxu0 0.0
    %v4112 = vand.u32 %v3690, 4294901760
    %v4113 = vsub.f32 %v3690, %v4112
    %4114 = vmatpush.msra.mxu0 %v4113
    %v4115 = vand.u32 %v3686, 4294901760
    %v4116 = vsub.f32 %v3686, %v4115
    %4117 = vmatpush.msra.mxu0 %v4116
    %v4118 = vand.u32 %v3682, 4294901760
    %v4119 = vsub.f32 %v3682, %v4118
    %4120 = vmatpush.msra.mxu0 %v4119
    %v4121 = vand.u32 %v3678, 4294901760
    %v4122 = vsub.f32 %v3678, %v4121
    %4123 = vmatpush.msra.mxu0 %v4122
    %v4124 = vand.u32 %v3983, 4294901760
    %v4125 = vsub.f32 %v3983, %v4124
    %4126 = vmatmul.f32.gmra.mxu0 %v4125
    %v4127 = vpop.f32.mrf.mxu0
    %v4128 = vadd.f32 %v4086, %v4127
    %v4129 = vand.u32 %v3986, 4294901760
    %v4130 = vsub.f32 %v3986, %v4129
    %4131 = vmatmul.f32.gmra.mxu0 %v4130
    %v4132 = vpop.f32.mrf.mxu0
    %v4133 = vadd.f32 %v4090, %v4132
    %v4134 = vand.u32 %v3989, 4294901760
    %v4135 = vsub.f32 %v3989, %v4134
    %4136 = vmatmul.f32.gmra.mxu0 %v4135
    %v4137 = vpop.f32.mrf.mxu0
    %v4138 = vadd.f32 %v4094, %v4137
    %v4139 = vand.u32 %v3992, 4294901760
    %v4140 = vsub.f32 %v3992, %v4139
    %4141 = vmatmul.f32.gmra.mxu0 %v4140
    %v4142 = vpop.f32.mrf.mxu0
    %v4143 = vadd.f32 %v4098, %v4142
    %4144 = vdwg.mxu0
    %4145 = vmatpush.msra.mxu0 0.0
    %4146 = vmatpush.msra.mxu0 0.0
    %4147 = vmatpush.msra.mxu0 0.0
    %4148 = vmatpush.msra.mxu0 0.0
    %4149 = vmatpush.msra.mxu0 0.0
    %4150 = vmatpush.msra.mxu0 0.0
    %4151 = vmatpush.msra.mxu0 0.0
    %4152 = vmatpush.msra.mxu0 0.0
    %4153 = vmatpush.msra.mxu0 0.0
    %4154 = vmatpush.msra.mxu0 0.0
    %4155 = vmatpush.msra.mxu0 0.0
    %4156 = vmatpush.msra.mxu0 0.0
    %v4157 = vand.u32 %v3690, 4294901760
    %4158 = vmatpush.msra.mxu0 %v4157
    %v4159 = vand.u32 %v3686, 4294901760
    %4160 = vmatpush.msra.mxu0 %v4159
    %v4161 = vand.u32 %v3682, 4294901760
    %4162 = vmatpush.msra.mxu0 %v4161
    %v4163 = vand.u32 %v3678, 4294901760
    %4164 = vmatpush.msra.mxu0 %v4163
    %v4165 = vand.u32 %v3983, 4294901760
    %v4166 = vsub.f32 %v3983, %v4165
    %v4167 = vand.u32 %v4166, 4294901760
    %4168 = vmatmul.f32.gmra.mxu0 %v4167
    %v4169 = vpop.f32.mrf.mxu0
    %v4170 = vadd.f32 %v4128, %v4169
    %v4171 = vand.u32 %v3986, 4294901760
    %v4172 = vsub.f32 %v3986, %v4171
    %v4173 = vand.u32 %v4172, 4294901760
    %4174 = vmatmul.f32.gmra.mxu0 %v4173
    %v4175 = vpop.f32.mrf.mxu0
    %v4176 = vadd.f32 %v4133, %v4175
    %v4177 = vand.u32 %v3989, 4294901760
    %v4178 = vsub.f32 %v3989, %v4177
    %v4179 = vand.u32 %v4178, 4294901760
    %4180 = vmatmul.f32.gmra.mxu0 %v4179
    %v4181 = vpop.f32.mrf.mxu0
    %v4182 = vadd.f32 %v4138, %v4181
    %v4183 = vand.u32 %v3992, 4294901760
    %v4184 = vsub.f32 %v3992, %v4183
    %v4185 = vand.u32 %v4184, 4294901760
    %4186 = vmatmul.f32.gmra.mxu0 %v4185
    %v4187 = vpop.f32.mrf.mxu0
    %v4188 = vadd.f32 %v4143, %v4187
    %4189 = vdwg.mxu0
    %4190 = vmatpush.msra.mxu0 0.0
    %4191 = vmatpush.msra.mxu0 0.0
    %4192 = vmatpush.msra.mxu0 0.0
    %4193 = vmatpush.msra.mxu0 0.0
    %4194 = vmatpush.msra.mxu0 0.0
    %4195 = vmatpush.msra.mxu0 0.0
    %4196 = vmatpush.msra.mxu0 0.0
    %4197 = vmatpush.msra.mxu0 0.0
    %4198 = vmatpush.msra.mxu0 0.0
    %4199 = vmatpush.msra.mxu0 0.0
    %4200 = vmatpush.msra.mxu0 0.0
    %4201 = vmatpush.msra.mxu0 0.0
    %v4202 = vand.u32 %v3690, 4294901760
    %v4203 = vsub.f32 %v3690, %v4202
    %v4204 = vand.u32 %v4203, 4294901760
    %4205 = vmatpush.msra.mxu0 %v4204
    %v4206 = vand.u32 %v3686, 4294901760
    %v4207 = vsub.f32 %v3686, %v4206
    %v4208 = vand.u32 %v4207, 4294901760
    %4209 = vmatpush.msra.mxu0 %v4208
    %v4210 = vand.u32 %v3682, 4294901760
    %v4211 = vsub.f32 %v3682, %v4210
    %v4212 = vand.u32 %v4211, 4294901760
    %4213 = vmatpush.msra.mxu0 %v4212
    %v4214 = vand.u32 %v3678, 4294901760
    %v4215 = vsub.f32 %v3678, %v4214
    %v4216 = vand.u32 %v4215, 4294901760
    %4217 = vmatpush.msra.mxu0 %v4216
    %v4218 = vand.u32 %v3983, 4294901760
    %4219 = vmatmul.f32.gmra.mxu0 %v4218
    %v4220 = vpop.f32.mrf.mxu0
    %v4221 = vadd.f32 %v4170, %v4220
    %v4222 = vand.u32 %v3986, 4294901760
    %4223 = vmatmul.f32.gmra.mxu0 %v4222
    %v4224 = vpop.f32.mrf.mxu0
    %v4225 = vadd.f32 %v4176, %v4224
    %v4226 = vand.u32 %v3989, 4294901760
    %4227 = vmatmul.f32.gmra.mxu0 %v4226
    %v4228 = vpop.f32.mrf.mxu0
    %v4229 = vadd.f32 %v4182, %v4228
    %v4230 = vand.u32 %v3992, 4294901760
    %4231 = vmatmul.f32.gmra.mxu0 %v4230
    %v4232 = vpop.f32.mrf.mxu0
    %v4233 = vadd.f32 %v4188, %v4232
    %4234 = vdwg.mxu0
    %4235 = vmatpush.msra.mxu0 0.0
    %4236 = vmatpush.msra.mxu0 0.0
    %4237 = vmatpush.msra.mxu0 0.0
    %4238 = vmatpush.msra.mxu0 0.0
    %4239 = vmatpush.msra.mxu0 0.0
    %4240 = vmatpush.msra.mxu0 0.0
    %4241 = vmatpush.msra.mxu0 0.0
    %4242 = vmatpush.msra.mxu0 0.0
    %4243 = vmatpush.msra.mxu0 0.0
    %4244 = vmatpush.msra.mxu0 0.0
    %4245 = vmatpush.msra.mxu0 0.0
    %4246 = vmatpush.msra.mxu0 0.0
    %v4247 = vand.u32 %v3690, 4294901760
    %4248 = vmatpush.msra.mxu0 %v4247
    %v4249 = vand.u32 %v3686, 4294901760
    %4250 = vmatpush.msra.mxu0 %v4249
    %v4251 = vand.u32 %v3682, 4294901760
    %4252 = vmatpush.msra.mxu0 %v4251
    %v4253 = vand.u32 %v3678, 4294901760
    %4254 = vmatpush.msra.mxu0 %v4253
    %v4255 = vand.u32 %v3983, 4294901760
    %4256 = vmatmul.f32.gmra.mxu0 %v4255
    %v4257 = vpop.f32.mrf.mxu0
    %v4258 = vadd.f32 %v4221, %v4257
    %v4259 = vand.u32 %v3986, 4294901760
    %4260 = vmatmul.f32.gmra.mxu0 %v4259
    %v4261 = vpop.f32.mrf.mxu0
    %v4262 = vadd.f32 %v4225, %v4261
    %v4263 = vand.u32 %v3989, 4294901760
    %4264 = vmatmul.f32.gmra.mxu0 %v4263
    %v4265 = vpop.f32.mrf.mxu0
    %v4266 = vadd.f32 %v4229, %v4265
    %v4267 = vand.u32 %v3992, 4294901760
    %4268 = vmatmul.f32.gmra.mxu0 %v4267
    %v4269 = vpop.f32.mrf.mxu0
    %v4270 = vadd.f32 %v4233, %v4269
    %4271 = vdwg.mxu0
    %v4273 = vsel %vm76, %v3968, 0
    %v4276 = vsel %vm76, %v3972, 0
    %v4279 = vsel %vm76, %v3976, 0
    %v4282 = vsel %vm76, %v3980, 0
    %4284 = vmatpush.msra.mxu0 0.0
    %4285 = vmatpush.msra.mxu0 0.0
    %4286 = vmatpush.msra.mxu0 0.0
    %4287 = vmatpush.msra.mxu0 0.0
    %4288 = vmatpush.msra.mxu0 0.0
    %4289 = vmatpush.msra.mxu0 0.0
    %4290 = vmatpush.msra.mxu0 0.0
    %4291 = vmatpush.msra.mxu0 0.0
    %4292 = vmatpush.msra.mxu0 0.0
    %4293 = vmatpush.msra.mxu0 0.0
    %4294 = vmatpush.msra.mxu0 0.0
    %4295 = vmatpush.msra.mxu0 0.0
    %v4296 = vand.u32 %v4270, 4294901760
    %4297 = vmatpush.msra.mxu0 %v4296
    %v4298 = vand.u32 %v4266, 4294901760
    %4299 = vmatpush.msra.mxu0 %v4298
    %v4300 = vand.u32 %v4262, 4294901760
    %4301 = vmatpush.msra.mxu0 %v4300
    %v4302 = vand.u32 %v4258, 4294901760
    %4303 = vmatpush.msra.mxu0 %v4302
    %v4304 = vand.u32 %v4273, 4294901760
    %v4305 = vsub.f32 %v4273, %v4304
    %v4306 = vand.u32 %v4305, 4294901760
    %v4307 = vsub.f32 %v4305, %v4306
    %v4308 = vand.u32 %v4307, 4294901760
    %4309 = vmatmul.f32.gmra.mxu0 %v4308
    %v4310 = vpop.f32.mrf.mxu0
    %v4311 = vadd.f32 0.0, %v4310
    %v4312 = vand.u32 %v4276, 4294901760
    %v4313 = vsub.f32 %v4276, %v4312
    %v4314 = vand.u32 %v4313, 4294901760
    %v4315 = vsub.f32 %v4313, %v4314
    %v4316 = vand.u32 %v4315, 4294901760
    %4317 = vmatmul.f32.gmra.mxu0 %v4316
    %v4318 = vpop.f32.mrf.mxu0
    %v4319 = vadd.f32 0.0, %v4318
    %v4320 = vand.u32 %v4279, 4294901760
    %v4321 = vsub.f32 %v4279, %v4320
    %v4322 = vand.u32 %v4321, 4294901760
    %v4323 = vsub.f32 %v4321, %v4322
    %v4324 = vand.u32 %v4323, 4294901760
    %4325 = vmatmul.f32.gmra.mxu0 %v4324
    %v4326 = vpop.f32.mrf.mxu0
    %v4327 = vadd.f32 0.0, %v4326
    %v4328 = vand.u32 %v4282, 4294901760
    %v4329 = vsub.f32 %v4282, %v4328
    %v4330 = vand.u32 %v4329, 4294901760
    %v4331 = vsub.f32 %v4329, %v4330
    %v4332 = vand.u32 %v4331, 4294901760
    %4333 = vmatmul.f32.gmra.mxu0 %v4332
    %v4334 = vpop.f32.mrf.mxu0
    %v4335 = vadd.f32 0.0, %v4334
    %4336 = vdwg.mxu0
    %4337 = vmatpush.msra.mxu0 0.0
    %4338 = vmatpush.msra.mxu0 0.0
    %4339 = vmatpush.msra.mxu0 0.0
    %4340 = vmatpush.msra.mxu0 0.0
    %4341 = vmatpush.msra.mxu0 0.0
    %4342 = vmatpush.msra.mxu0 0.0
    %4343 = vmatpush.msra.mxu0 0.0
    %4344 = vmatpush.msra.mxu0 0.0
    %4345 = vmatpush.msra.mxu0 0.0
    %4346 = vmatpush.msra.mxu0 0.0
    %4347 = vmatpush.msra.mxu0 0.0
    %4348 = vmatpush.msra.mxu0 0.0
    %v4349 = vand.u32 %v4270, 4294901760
    %v4350 = vsub.f32 %v4270, %v4349
    %v4351 = vand.u32 %v4350, 4294901760
    %v4352 = vsub.f32 %v4350, %v4351
    %v4353 = vand.u32 %v4352, 4294901760
    %4354 = vmatpush.msra.mxu0 %v4353
    %v4355 = vand.u32 %v4266, 4294901760
    %v4356 = vsub.f32 %v4266, %v4355
    %v4357 = vand.u32 %v4356, 4294901760
    %v4358 = vsub.f32 %v4356, %v4357
    %v4359 = vand.u32 %v4358, 4294901760
    %4360 = vmatpush.msra.mxu0 %v4359
    %v4361 = vand.u32 %v4262, 4294901760
    %v4362 = vsub.f32 %v4262, %v4361
    %v4363 = vand.u32 %v4362, 4294901760
    %v4364 = vsub.f32 %v4362, %v4363
    %v4365 = vand.u32 %v4364, 4294901760
    %4366 = vmatpush.msra.mxu0 %v4365
    %v4367 = vand.u32 %v4258, 4294901760
    %v4368 = vsub.f32 %v4258, %v4367
    %v4369 = vand.u32 %v4368, 4294901760
    %v4370 = vsub.f32 %v4368, %v4369
    %v4371 = vand.u32 %v4370, 4294901760
    %4372 = vmatpush.msra.mxu0 %v4371
    %v4373 = vand.u32 %v4273, 4294901760
    %4374 = vmatmul.f32.gmra.mxu0 %v4373
    %v4375 = vpop.f32.mrf.mxu0
    %v4376 = vadd.f32 %v4311, %v4375
    %v4377 = vand.u32 %v4276, 4294901760
    %4378 = vmatmul.f32.gmra.mxu0 %v4377
    %v4379 = vpop.f32.mrf.mxu0
    %v4380 = vadd.f32 %v4319, %v4379
    %v4381 = vand.u32 %v4279, 4294901760
    %4382 = vmatmul.f32.gmra.mxu0 %v4381
    %v4383 = vpop.f32.mrf.mxu0
    %v4384 = vadd.f32 %v4327, %v4383
    %v4385 = vand.u32 %v4282, 4294901760
    %4386 = vmatmul.f32.gmra.mxu0 %v4385
    %v4387 = vpop.f32.mrf.mxu0
    %v4388 = vadd.f32 %v4335, %v4387
    %4389 = vdwg.mxu0
    %4390 = vmatpush.msra.mxu0 0.0
    %4391 = vmatpush.msra.mxu0 0.0
    %4392 = vmatpush.msra.mxu0 0.0
    %4393 = vmatpush.msra.mxu0 0.0
    %4394 = vmatpush.msra.mxu0 0.0
    %4395 = vmatpush.msra.mxu0 0.0
    %4396 = vmatpush.msra.mxu0 0.0
    %4397 = vmatpush.msra.mxu0 0.0
    %4398 = vmatpush.msra.mxu0 0.0
    %4399 = vmatpush.msra.mxu0 0.0
    %4400 = vmatpush.msra.mxu0 0.0
    %4401 = vmatpush.msra.mxu0 0.0
    %v4402 = vand.u32 %v4270, 4294901760
    %v4403 = vsub.f32 %v4270, %v4402
    %4404 = vmatpush.msra.mxu0 %v4403
    %v4405 = vand.u32 %v4266, 4294901760
    %v4406 = vsub.f32 %v4266, %v4405
    %4407 = vmatpush.msra.mxu0 %v4406
    %v4408 = vand.u32 %v4262, 4294901760
    %v4409 = vsub.f32 %v4262, %v4408
    %4410 = vmatpush.msra.mxu0 %v4409
    %v4411 = vand.u32 %v4258, 4294901760
    %v4412 = vsub.f32 %v4258, %v4411
    %4413 = vmatpush.msra.mxu0 %v4412
    %v4414 = vand.u32 %v4273, 4294901760
    %v4415 = vsub.f32 %v4273, %v4414
    %4416 = vmatmul.f32.gmra.mxu0 %v4415
    %v4417 = vpop.f32.mrf.mxu0
    %v4418 = vadd.f32 %v4376, %v4417
    %v4419 = vand.u32 %v4276, 4294901760
    %v4420 = vsub.f32 %v4276, %v4419
    %4421 = vmatmul.f32.gmra.mxu0 %v4420
    %v4422 = vpop.f32.mrf.mxu0
    %v4423 = vadd.f32 %v4380, %v4422
    %v4424 = vand.u32 %v4279, 4294901760
    %v4425 = vsub.f32 %v4279, %v4424
    %4426 = vmatmul.f32.gmra.mxu0 %v4425
    %v4427 = vpop.f32.mrf.mxu0
    %v4428 = vadd.f32 %v4384, %v4427
    %v4429 = vand.u32 %v4282, 4294901760
    %v4430 = vsub.f32 %v4282, %v4429
    %4431 = vmatmul.f32.gmra.mxu0 %v4430
    %v4432 = vpop.f32.mrf.mxu0
    %v4433 = vadd.f32 %v4388, %v4432
    %4434 = vdwg.mxu0
    %4435 = vmatpush.msra.mxu0 0.0
    %4436 = vmatpush.msra.mxu0 0.0
    %4437 = vmatpush.msra.mxu0 0.0
    %4438 = vmatpush.msra.mxu0 0.0
    %4439 = vmatpush.msra.mxu0 0.0
    %4440 = vmatpush.msra.mxu0 0.0
    %4441 = vmatpush.msra.mxu0 0.0
    %4442 = vmatpush.msra.mxu0 0.0
    %4443 = vmatpush.msra.mxu0 0.0
    %4444 = vmatpush.msra.mxu0 0.0
    %4445 = vmatpush.msra.mxu0 0.0
    %4446 = vmatpush.msra.mxu0 0.0
    %v4447 = vand.u32 %v4270, 4294901760
    %4448 = vmatpush.msra.mxu0 %v4447
    %v4449 = vand.u32 %v4266, 4294901760
    %4450 = vmatpush.msra.mxu0 %v4449
    %v4451 = vand.u32 %v4262, 4294901760
    %4452 = vmatpush.msra.mxu0 %v4451
    %v4453 = vand.u32 %v4258, 4294901760
    %4454 = vmatpush.msra.mxu0 %v4453
    %v4455 = vand.u32 %v4273, 4294901760
    %v4456 = vsub.f32 %v4273, %v4455
    %v4457 = vand.u32 %v4456, 4294901760
    %4458 = vmatmul.f32.gmra.mxu0 %v4457
    %v4459 = vpop.f32.mrf.mxu0
    %v4460 = vadd.f32 %v4418, %v4459
    %v4461 = vand.u32 %v4276, 4294901760
    %v4462 = vsub.f32 %v4276, %v4461
    %v4463 = vand.u32 %v4462, 4294901760
    %4464 = vmatmul.f32.gmra.mxu0 %v4463
    %v4465 = vpop.f32.mrf.mxu0
    %v4466 = vadd.f32 %v4423, %v4465
    %v4467 = vand.u32 %v4279, 4294901760
    %v4468 = vsub.f32 %v4279, %v4467
    %v4469 = vand.u32 %v4468, 4294901760
    %4470 = vmatmul.f32.gmra.mxu0 %v4469
    %v4471 = vpop.f32.mrf.mxu0
    %v4472 = vadd.f32 %v4428, %v4471
    %v4473 = vand.u32 %v4282, 4294901760
    %v4474 = vsub.f32 %v4282, %v4473
    %v4475 = vand.u32 %v4474, 4294901760
    %4476 = vmatmul.f32.gmra.mxu0 %v4475
    %v4477 = vpop.f32.mrf.mxu0
    %v4478 = vadd.f32 %v4433, %v4477
    %4479 = vdwg.mxu0
    %4480 = vmatpush.msra.mxu0 0.0
    %4481 = vmatpush.msra.mxu0 0.0
    %4482 = vmatpush.msra.mxu0 0.0
    %4483 = vmatpush.msra.mxu0 0.0
    %4484 = vmatpush.msra.mxu0 0.0
    %4485 = vmatpush.msra.mxu0 0.0
    %4486 = vmatpush.msra.mxu0 0.0
    %4487 = vmatpush.msra.mxu0 0.0
    %4488 = vmatpush.msra.mxu0 0.0
    %4489 = vmatpush.msra.mxu0 0.0
    %4490 = vmatpush.msra.mxu0 0.0
    %4491 = vmatpush.msra.mxu0 0.0
    %v4492 = vand.u32 %v4270, 4294901760
    %v4493 = vsub.f32 %v4270, %v4492
    %v4494 = vand.u32 %v4493, 4294901760
    %4495 = vmatpush.msra.mxu0 %v4494
    %v4496 = vand.u32 %v4266, 4294901760
    %v4497 = vsub.f32 %v4266, %v4496
    %v4498 = vand.u32 %v4497, 4294901760
    %4499 = vmatpush.msra.mxu0 %v4498
    %v4500 = vand.u32 %v4262, 4294901760
    %v4501 = vsub.f32 %v4262, %v4500
    %v4502 = vand.u32 %v4501, 4294901760
    %4503 = vmatpush.msra.mxu0 %v4502
    %v4504 = vand.u32 %v4258, 4294901760
    %v4505 = vsub.f32 %v4258, %v4504
    %v4506 = vand.u32 %v4505, 4294901760
    %4507 = vmatpush.msra.mxu0 %v4506
    %v4508 = vand.u32 %v4273, 4294901760
    %4509 = vmatmul.f32.gmra.mxu0 %v4508
    %v4510 = vpop.f32.mrf.mxu0
    %v4511 = vadd.f32 %v4460, %v4510
    %v4512 = vand.u32 %v4276, 4294901760
    %4513 = vmatmul.f32.gmra.mxu0 %v4512
    %v4514 = vpop.f32.mrf.mxu0
    %v4515 = vadd.f32 %v4466, %v4514
    %v4516 = vand.u32 %v4279, 4294901760
    %4517 = vmatmul.f32.gmra.mxu0 %v4516
    %v4518 = vpop.f32.mrf.mxu0
    %v4519 = vadd.f32 %v4472, %v4518
    %v4520 = vand.u32 %v4282, 4294901760
    %4521 = vmatmul.f32.gmra.mxu0 %v4520
    %v4522 = vpop.f32.mrf.mxu0
    %v4523 = vadd.f32 %v4478, %v4522
    %4524 = vdwg.mxu0
    %4525 = vmatpush.msra.mxu0 0.0
    %4526 = vmatpush.msra.mxu0 0.0
    %4527 = vmatpush.msra.mxu0 0.0
    %4528 = vmatpush.msra.mxu0 0.0
    %4529 = vmatpush.msra.mxu0 0.0
    %4530 = vmatpush.msra.mxu0 0.0
    %4531 = vmatpush.msra.mxu0 0.0
    %4532 = vmatpush.msra.mxu0 0.0
    %4533 = vmatpush.msra.mxu0 0.0
    %4534 = vmatpush.msra.mxu0 0.0
    %4535 = vmatpush.msra.mxu0 0.0
    %4536 = vmatpush.msra.mxu0 0.0
    %v4537 = vand.u32 %v4270, 4294901760
    %4538 = vmatpush.msra.mxu0 %v4537
    %v4539 = vand.u32 %v4266, 4294901760
    %4540 = vmatpush.msra.mxu0 %v4539
    %v4541 = vand.u32 %v4262, 4294901760
    %4542 = vmatpush.msra.mxu0 %v4541
    %v4543 = vand.u32 %v4258, 4294901760
    %4544 = vmatpush.msra.mxu0 %v4543
    %v4545 = vand.u32 %v4273, 4294901760
    %4546 = vmatmul.f32.gmra.mxu0 %v4545
    %v4547 = vpop.f32.mrf.mxu0
    %v4548 = vadd.f32 %v4511, %v4547
    %v4549 = vand.u32 %v4276, 4294901760
    %4550 = vmatmul.f32.gmra.mxu0 %v4549
    %v4551 = vpop.f32.mrf.mxu0
    %v4552 = vadd.f32 %v4515, %v4551
    %v4553 = vand.u32 %v4279, 4294901760
    %4554 = vmatmul.f32.gmra.mxu0 %v4553
    %v4555 = vpop.f32.mrf.mxu0
    %v4556 = vadd.f32 %v4519, %v4555
    %v4557 = vand.u32 %v4282, 4294901760
    %4558 = vmatmul.f32.gmra.mxu0 %v4557
    %v4559 = vpop.f32.mrf.mxu0
    %v4560 = vadd.f32 %v4523, %v4559
    %4561 = vdwg.mxu0
    %s4562 = scalar_lea.vmem [#allocation2], 32
    %4563 = vst.msk [vmem:[%s4562] sm:$0xff] %vm76, %v4548
    %4564 = vst.msk [vmem:[%s4562 + $0x8] sm:$0xff] %vm76, %v4552
    %4565 = vst.msk [vmem:[%s4562 + $0x10] sm:$0xff] %vm76, %v4556
    %4566 = vst.msk [vmem:[%s4562 + $0x18] sm:$0xff] %vm76, %v4560
    // Predicated region
    $region10: #{execution_unit_forward.1} parent=1 // pred_check
      _
    $region11: #{execution_unit_forward.1} parent=1 // pred_check_branch
      %4568 = sbr.rel (0) target = $region13
    $region12: #{execution_unit_forward.1} parent=1 // pred_region
      %4570 = vsyncadd [#allocation3], 0
      %s4571 = sshll.u32 [#allocation2], 4
      %s4572 = int_to_ptr.vmem [resolvable:$true] %s4571
      %s4573 = sshll.u32 %s2, 4
      %s4574 = int_to_ptr.hbm [resolvable:$true] %s4573
      %4579 = dma.vmem_to_hbm [thread:$0]  %s4572, 1024, %s4574, [#allocation3], 128, 128, 8
    $region13: #{execution_unit_forward.1} parent=1 // pred_fallthru
      _
    // Predicated region
    $region14: #{execution_unit_forward.1} parent=1 // pred_check
      _
    $region15: #{execution_unit_forward.1} parent=1 // pred_check_branch
      %4581 = sbr.rel (0) target = $region17
    $region16: #{execution_unit_forward.1} parent=1 // pred_region
      %4583 = dma.done [#allocation3], 1024
    $region17: #{execution_unit_forward.1} parent=1 // pred_fallthru
      _
    %4584 = vsyncpa [#allocation3], 1

</llo_original>
